<compile_context>
chip_gen: v6e
topology: v6e:2x2x1
jax: 0.10.0
libtpu: 0.0.40
codegen_flags: <defaults>
</compile_context>

<pallas_src>
import functools

import jax
import jax.numpy as jnp
from jax import lax
from jax.experimental import pallas as pl
from jax.experimental.pallas import tpu as pltpu


# ----------------------------------------------------------------------------
# Constants for the synthetic setup (small shapes, consistent with the module)
# ----------------------------------------------------------------------------
FOCAL = 512.0
CENTER = 64.0                  # rasterize_size = 2 * center = 128
IMG_H = IMG_W = int(2 * CENTER)
ALIGN_SIZE = (64, 64)          # kornia.warp_affine dsize
EMBED_DIM = 128
SPLAT_RADIUS = 6.0             # pixel radius of the point splat
NPAD = 128                     # lane-aligned width of the vertex table
ROW_CHUNK = 32                 # image rows processed per in-kernel loop iteration
K_SPLIT = 2                    # parallel K-shards for the embedding matmul (v7x TCs)


def perspective_projection(focal, center):
    # identical to the numpy helper in the PyTorch module
    return jnp.array([focal, 0, center, 0, focal, center, 0, 0, 1],
                     dtype=jnp.float32).reshape(3, 3).T


# ----------------------------------------------------------------------------
# Kernel 1: point-splat render + composite
# ----------------------------------------------------------------------------
def render_composite_kernel(verts_ref, img_ref, out_ref, *, n_verts, radius2,
                            row_chunk):
    # verts_ref: SMEM (B*8, NPAD); rows per batch: u, v, packed_color, pad...
    # img_ref  : VMEM (1, 3, H, W)
    # out_ref  : VMEM (1, 3, H, W)
    h = out_ref.shape[2]
    w = out_ref.shape[3]
    bi = pl.program_id(0)
    base = bi * 8

    # lane coordinate grid is loop-invariant; captured by the row-chunk loop
    xs = lax.broadcasted_iota(jnp.int32, (row_chunk, w), 1).astype(jnp.float32)

    @pl.loop(0, h // row_chunk)
    def _(ci):
        off = pl.multiple_of(ci * row_chunk, row_chunk)
        row0 = (ci * row_chunk).astype(jnp.float32)
        ys = row0 + lax.broadcasted_iota(jnp.int32, (row_chunk, w), 0).astype(jnp.float32)

        best_d2 = jnp.full((row_chunk, w), 1e30, dtype=jnp.float32)
        best_c = jnp.zeros((row_chunk, w), jnp.float32)

        # static unroll over the (small) vertex set; per-vertex params come in as
        # SMEM scalar reads. Colors are pre-scaled by 255 and packed r|g<<8|b<<16
        # (exact in f32, < 2^24) so each vertex costs 7 VALU ops, not 9.
        for n in range(n_verts):
            u = verts_ref[base, n]
            v = verts_ref[base + 1, n]
            c = verts_ref[base + 2, n]
            dx = xs - u
            dy = ys - v
            d2 = dx * dx + dy * dy
            m = d2 < best_d2
            best_d2 = jnp.minimum(best_d2, d2)
            best_c = jnp.where(m, c, best_c)

        # unpack the 8-bit channels (already 255-scaled)
        cb = jnp.floor(best_c * (1.0 / 65536.0))
        rem = best_c - cb * 65536.0
        cg = jnp.floor(rem * (1.0 / 256.0))
        cr = rem - cg * 256.0

        # pred_face = 255 * pred_face * pred_mask + (1 - pred_mask) * img_tensor
        # (mask is binary -> a single select per channel; the 255x is pre-folded)
        in_face = best_d2 < radius2
        out_ref[0, 0, pl.ds(off, row_chunk), :] = jnp.where(
            in_face, cr, img_ref[0, 0, pl.ds(off, row_chunk), :])
        out_ref[0, 1, pl.ds(off, row_chunk), :] = jnp.where(
            in_face, cg, img_ref[0, 1, pl.ds(off, row_chunk), :])
        out_ref[0, 2, pl.ds(off, row_chunk), :] = jnp.where(
            in_face, cb, img_ref[0, 2, pl.ds(off, row_chunk), :])


def render_and_composite(verts_table, img_tensor, n_verts):
    # TODO(synk): the external MeshRenderer (triangle rasterizer + z-buffer) has no
    # clean Pallas equivalent; a nearest-vertex point-splat kernel stands in for it.
    b, c, h, w = img_tensor.shape
    assert h % ROW_CHUNK == 0 and w % 128 == 0
    kernel = functools.partial(render_composite_kernel,
                               n_verts=n_verts, radius2=SPLAT_RADIUS ** 2,
                               row_chunk=ROW_CHUNK)
    return pl.pallas_call(
        kernel,
        out_shape=jax.ShapeDtypeStruct((b, c, h, w), jnp.float32),
        grid=(b,),
        in_specs=[
            # whole vertex table resident in SMEM (B*8*NPAD f32 = 4 KB/batch)
            pl.BlockSpec(memory_space=pltpu.MemorySpace.SMEM),
            pl.BlockSpec((1, c, h, w), lambda bi: (bi, 0, 0, 0)),
        ],
        out_specs=pl.BlockSpec((1, c, h, w), lambda bi: (bi, 0, 0, 0)),
        compiler_params=pltpu.CompilerParams(
            dimension_semantics=("parallel",)),
    )(verts_table, img_tensor)


# ----------------------------------------------------------------------------
# Kernel 2: linear embedding (synthetic face_veri_model) -- MXU matmul
# ----------------------------------------------------------------------------
def linear_embed_kernel(x_ref, w_ref, o_ref):
    # Weight arrives as bf16 (halves the HBM-bound weight stream); upcast so only
    # the weight *storage* is quantized, accumulate in f32 on the MXU.
    w = w_ref[...].astype(jnp.float32)
    o_ref[0] = jnp.dot(x_ref[...], w, preferred_element_type=jnp.float32)


def linear_embed(x_flat, w, bias, k_split=K_SPLIT):
    # TODO(synk): the real face_veri_model is an external CNN checkpoint; a single
    # deterministic linear projection stands in for it (the matmul is in Pallas).
    b, k_dim = x_flat.shape
    _, e = w.shape
    assert k_dim % (k_split * 128) == 0
    ks = k_dim // k_split
    # HBM-bound weight stream; bf16 halves bytes moved, f32 accumulation kept,
    # activations stay f32 (numerics change limited to weight quantization).
    w = w.astype(jnp.bfloat16)
    partial = pl.pallas_call(
        linear_embed_kernel,
        out_shape=jax.ShapeDtypeStruct((k_split, b, e), jnp.float32),
        grid=(k_split,),
        in_specs=[
            pl.BlockSpec((b, ks), lambda s: (0, s)),
            pl.BlockSpec((ks, e), lambda s: (s, 0)),
        ],
        out_specs=pl.BlockSpec((1, b, e), lambda s: (s, 0, 0)),
        # K-shards are independent partials -> parallel axis; on v7x both
        # TensorCores get one shard each, on v5e/v6e it runs as 2 cheap steps.
        compiler_params=pltpu.CompilerParams(
            dimension_semantics=("parallel",)),
    )(x_flat, w)
    # tiny (k_split, B, E) partial-sum + bias stays in XLA glue
    return partial.sum(axis=0) + bias


# ----------------------------------------------------------------------------
# Glue: kornia.warp_affine-style bilinear resample (zero padding)
# ----------------------------------------------------------------------------
def warp_affine_bilinear(src, m, dsize):
    # TODO(synk): data-dependent bilinear gather kept in plain JAX (no clean Pallas
    # TPU equivalent); semantics follow cv2/kornia: M maps src->dst, sampling uses
    # the inverse transform with bilinear interpolation and zero padding.
    b, c, h, w = src.shape
    hd, wd = dsize
    bottom = jnp.tile(jnp.array([[[0.0, 0.0, 1.0]]], src.dtype), (b, 1, 1))
    m3 = jnp.concatenate([m, bottom], axis=1)
    minv = jnp.linalg.inv(m3)                                    # (B, 3, 3)

    yd, xd = jnp.meshgrid(jnp.arange(hd, dtype=src.dtype),
                          jnp.arange(wd, dtype=src.dtype), indexing="ij")
    dst = jnp.stack([xd, yd, jnp.ones_like(xd)], axis=0).reshape(3, -1)  # (3, P)
    sc = jnp.einsum("bij,jp->bip", minv, dst)                     # (B, 3, P)
    xs, ys = sc[:, 0], sc[:, 1]

    x0 = jnp.floor(xs)
    y0 = jnp.floor(ys)
    fx = xs - x0
    fy = ys - y0
    x0i = x0.astype(jnp.int32)
    y0i = y0.astype(jnp.int32)
    src_flat = src.reshape(b, c, h * w)

    def gather(yi, xi):
        valid = (xi >= 0) & (xi < w) & (yi >= 0) & (yi < h)
        xc = jnp.clip(xi, 0, w - 1)
        yc = jnp.clip(yi, 0, h - 1)
        flat = (yc * w + xc)[:, None, :]
        flat = jnp.broadcast_to(flat, (b, c, flat.shape[-1]))
        vals = jnp.take_along_axis(src_flat, flat, axis=2)
        return vals * valid[:, None, :].astype(src.dtype)

    v00 = gather(y0i, x0i)
    v01 = gather(y0i, x0i + 1)
    v10 = gather(y0i + 1, x0i)
    v11 = gather(y0i + 1, x0i + 1)
    wx = fx[:, None, :]
    wy = fy[:, None, :]
    out = (v00 * (1 - wx) * (1 - wy) + v01 * wx * (1 - wy)
           + v10 * (1 - wx) * wy + v11 * wx * wy)
    return out.reshape(b, c, hd, wd)


# ----------------------------------------------------------------------------
# Baseline.forward equivalent
# ----------------------------------------------------------------------------
def baseline_forward(face_vertex, face_color, m_affine, align_size, img_tensor,
                     w_embed, b_embed):
    b, n, _ = face_vertex.shape
    assert n <= NPAD

    # --- project vertices to pixel space (to_image-style pinhole), glue ---
    p = perspective_projection(FOCAL, CENTER)        # (3, 3)
    proj = face_vertex @ p                           # (B, N, 3)
    uv = proj[..., :2] / proj[..., 2:]               # (B, N, 2)

    # pack splat table (B*8, NPAD): rows per batch: u, v, packed_color.
    # The 255x scale is folded in here (one-time op on a 64-entry table) and the
    # three channels are packed into a single exact 24-bit integer-in-f32 word so
    # the kernel does ONE select per vertex. Quantizes color to 1/255.
    c255 = jnp.round(jnp.clip(face_color, 0.0, 1.0) * 255.0)     # (B, N, 3)
    packed = c255[..., 0] + 256.0 * c255[..., 1] + 65536.0 * c255[..., 2]

    verts = jnp.zeros((b, 8, NPAD), jnp.float32)
    verts = verts.at[:, 0, :n].set(uv[..., 0])
    verts = verts.at[:, 1, :n].set(uv[..., 1])
    verts = verts.at[:, 2, :n].set(packed)
    verts = verts.reshape(b * 8, NPAD)

    # --- Pallas: render (point splat) + composite with background image ---
    pred_face = render_and_composite(verts, img_tensor, n)
    pred_face = pred_face.astype(jnp.float32)        # pred_face.float()

    # --- warp_affine (glue) ---
    face_input = warp_affine_bilinear(pred_face, m_affine, align_size)

    # --- Pallas: synthetic face-verification embedding (matmul) ---
    x_flat = face_input.reshape(b, -1)
    face_embedding = linear_embed(x_flat, w_embed, b_embed)

    return face_embedding, pred_face


# ----------------------------------------------------------------------------
if __name__ == "__main__":
    key = jax.random.PRNGKey(0)
    k1, k2, k3, k4, k5, k6 = jax.random.split(key, 6)

    B, N = 2, 64

    # camera-space vertices (already "to_camera"-ed, z ~ camera_distance = 10)
    xy = jax.random.uniform(k1, (B, N, 2), minval=-1.0, maxval=1.0)
    z = 10.0 + jax.random.uniform(k2, (B, N, 1), minval=-0.5, maxval=0.5)
    face_vertex = jnp.concatenate([xy, z], axis=-1).astype(jnp.float32)

    face_color = jax.random.uniform(k3, (B, N, 3)).astype(jnp.float32)      # (0,1)
    img_tensor = (255.0 * 0.2 *
                  jax.random.uniform(k4, (B, 3, IMG_H, IMG_W))).astype(jnp.float32)

    # affine src->dst matrices (B, 2, 3)
    m_affine = jnp.tile(jnp.array([[[0.6, 0.0, 8.0],
                                    [0.0, 0.6, 8.0]]], jnp.float32), (B, 1, 1))

    # deterministic synthetic embedding weights
    k_dim = 3 * ALIGN_SIZE[0] * ALIGN_SIZE[1]                    # 12288
    w_embed = (0.02 * jax.random.normal(k5, (k_dim, EMBED_DIM))).astype(jnp.float32)
    b_embed = (0.02 * jax.random.normal(k6, (1, EMBED_DIM))).astype(jnp.float32)

    emb, pred_face = baseline_forward(face_vertex, face_color, m_affine,
                                      ALIGN_SIZE, img_tensor, w_embed, b_embed)
    jax.block_until_ready((emb, pred_face))
    assert emb.shape == (B, EMBED_DIM)
    assert pred_face.shape == (B, 3, IMG_H, IMG_W)
    print("KERNEL_OK")
</pallas_src>

<mosaic_0001>
module attributes {stable_mosaic.version = 11 : i64} {
  func.func @render_composite_kernel(%arg0: i32, %arg1: memref<16x128xf32, #tpu.memory_space<smem>>, %arg2: memref<1x3x128x128xf32, #tpu.memory_space<vmem>>, %arg3: memref<1x3x128x128xf32, #tpu.memory_space<vmem>>) attributes {dimension_semantics = [#tpu.dimension_semantics<parallel>], iteration_bounds = array<i64: 2>, scalar_prefetch = 0 : i64, scratch_operands = 0 : i64, tpu.core_type = #tpu.core_type<tc>, window_params = [{transform_indices = @transform_0, window_bounds = array<i64: 16, 128>}, {transform_indices = @transform_1, window_bounds = array<i64: 1, 3, 128, 128>}, {transform_indices = @transform_2, window_bounds = array<i64: 1, 3, 128, 128>}]} {
    %c8_i32 = arith.constant 8 : i32
    %0 = arith.muli %arg0, %c8_i32 : i32
    %1 = tpu.iota {dimensions = array<i32: 1>} : vector<32x128xi32>
    %2 = arith.sitofp %1 : vector<32x128xi32> to vector<32x128xf32>
    %c0_i32 = arith.constant 0 : i32
    %c4_i32 = arith.constant 4 : i32
    %3 = arith.addi %c0_i32, %c4_i32 : i32
    %c1_i32 = arith.constant 1 : i32
    scf.for %arg4 = %c0_i32 to %3 step %c1_i32  : i32 {
      %c1_i32_1 = arith.constant 1 : i32
      %4 = arith.muli %arg4, %c1_i32_1 : i32
      %c0_i32_2 = arith.constant 0 : i32
      %5 = arith.addi %c0_i32_2, %4 : i32
      %c32_i32 = arith.constant 32 : i32
      %6 = arith.muli %5, %c32_i32 : i32
      %7 = tpu.assume_multiple %6, 32 : i32
      %c32_i32_3 = arith.constant 32 : i32
      %8 = arith.muli %5, %c32_i32_3 : i32
      %9 = arith.sitofp %8 : i32 to f32
      %10 = tpu.iota {dimensions = array<i32: 0>} : vector<32x128xi32>
      %11 = arith.sitofp %10 : vector<32x128xi32> to vector<32x128xf32>
      %12 = vector.broadcast %9 : f32 to vector<32x128xf32>
      %13 = arith.addf %12, %11 : vector<32x128xf32>
      %cst = arith.constant 1.000000e+30 : f32
      %14 = vector.broadcast %cst : f32 to vector<32x128xf32>
      %cst_4 = arith.constant 0.000000e+00 : f32
      %15 = vector.broadcast %cst_4 : f32 to vector<32x128xf32>
      %16 = arith.index_cast %0 : i32 to index
      %c0 = arith.constant 0 : index
      %17 = memref.load %arg1[%16, %c0] : memref<16x128xf32, #tpu.memory_space<smem>>
      %c1_i32_5 = arith.constant 1 : i32
      %18 = arith.addi %0, %c1_i32_5 : i32
      %19 = arith.index_cast %18 : i32 to index
      %c0_6 = arith.constant 0 : index
      %20 = memref.load %arg1[%19, %c0_6] : memref<16x128xf32, #tpu.memory_space<smem>>
      %c2_i32 = arith.constant 2 : i32
      %21 = arith.addi %0, %c2_i32 : i32
      %22 = arith.index_cast %21 : i32 to index
      %c0_7 = arith.constant 0 : index
      %23 = memref.load %arg1[%22, %c0_7] : memref<16x128xf32, #tpu.memory_space<smem>>
      %24 = vector.broadcast %17 : f32 to vector<32x128xf32>
      %25 = arith.subf %2, %24 : vector<32x128xf32>
      %26 = vector.broadcast %20 : f32 to vector<32x128xf32>
      %27 = arith.subf %13, %26 : vector<32x128xf32>
      %28 = arith.mulf %25, %25 : vector<32x128xf32>
      %29 = arith.mulf %27, %27 : vector<32x128xf32>
      %30 = arith.addf %28, %29 : vector<32x128xf32>
      %31 = arith.cmpf olt, %30, %14 : vector<32x128xf32>
      %32 = arith.minimumf %14, %30 : vector<32x128xf32>
      %33 = vector.broadcast %23 : f32 to vector<32x128xf32>
      %34 = arith.select %31, %33, %15 : vector<32x128xi1>, vector<32x128xf32>
      %35 = arith.index_cast %0 : i32 to index
      %c1 = arith.constant 1 : index
      %36 = memref.load %arg1[%35, %c1] : memref<16x128xf32, #tpu.memory_space<smem>>
      %c1_i32_8 = arith.constant 1 : i32
      %37 = arith.addi %0, %c1_i32_8 : i32
      %38 = arith.index_cast %37 : i32 to index
      %c1_9 = arith.constant 1 : index
      %39 = memref.load %arg1[%38, %c1_9] : memref<16x128xf32, #tpu.memory_space<smem>>
      %c2_i32_10 = arith.constant 2 : i32
      %40 = arith.addi %0, %c2_i32_10 : i32
      %41 = arith.index_cast %40 : i32 to index
      %c1_11 = arith.constant 1 : index
      %42 = memref.load %arg1[%41, %c1_11] : memref<16x128xf32, #tpu.memory_space<smem>>
      %43 = vector.broadcast %36 : f32 to vector<32x128xf32>
      %44 = arith.subf %2, %43 : vector<32x128xf32>
      %45 = vector.broadcast %39 : f32 to vector<32x128xf32>
      %46 = arith.subf %13, %45 : vector<32x128xf32>
      %47 = arith.mulf %44, %44 : vector<32x128xf32>
      %48 = arith.mulf %46, %46 : vector<32x128xf32>
      %49 = arith.addf %47, %48 : vector<32x128xf32>
      %50 = arith.cmpf olt, %49, %32 : vector<32x128xf32>
      %51 = arith.minimumf %32, %49 : vector<32x128xf32>
      %52 = vector.broadcast %42 : f32 to vector<32x128xf32>
      %53 = arith.select %50, %52, %34 : vector<32x128xi1>, vector<32x128xf32>
      %54 = arith.index_cast %0 : i32 to index
      %c2 = arith.constant 2 : index
      %55 = memref.load %arg1[%54, %c2] : memref<16x128xf32, #tpu.memory_space<smem>>
      %c1_i32_12 = arith.constant 1 : i32
      %56 = arith.addi %0, %c1_i32_12 : i32
      %57 = arith.index_cast %56 : i32 to index
      %c2_13 = arith.constant 2 : index
      %58 = memref.load %arg1[%57, %c2_13] : memref<16x128xf32, #tpu.memory_space<smem>>
      %c2_i32_14 = arith.constant 2 : i32
      %59 = arith.addi %0, %c2_i32_14 : i32
      %60 = arith.index_cast %59 : i32 to index
      %c2_15 = arith.constant 2 : index
      %61 = memref.load %arg1[%60, %c2_15] : memref<16x128xf32, #tpu.memory_space<smem>>
      %62 = vector.broadcast %55 : f32 to vector<32x128xf32>
      %63 = arith.subf %2, %62 : vector<32x128xf32>
      %64 = vector.broadcast %58 : f32 to vector<32x128xf32>
      %65 = arith.subf %13, %64 : vector<32x128xf32>
      %66 = arith.mulf %63, %63 : vector<32x128xf32>
      %67 = arith.mulf %65, %65 : vector<32x128xf32>
      %68 = arith.addf %66, %67 : vector<32x128xf32>
      %69 = arith.cmpf olt, %68, %51 : vector<32x128xf32>
      %70 = arith.minimumf %51, %68 : vector<32x128xf32>
      %71 = vector.broadcast %61 : f32 to vector<32x128xf32>
      %72 = arith.select %69, %71, %53 : vector<32x128xi1>, vector<32x128xf32>
      %73 = arith.index_cast %0 : i32 to index
      %c3 = arith.constant 3 : index
      %74 = memref.load %arg1[%73, %c3] : memref<16x128xf32, #tpu.memory_space<smem>>
      %c1_i32_16 = arith.constant 1 : i32
      %75 = arith.addi %0, %c1_i32_16 : i32
      %76 = arith.index_cast %75 : i32 to index
      %c3_17 = arith.constant 3 : index
      %77 = memref.load %arg1[%76, %c3_17] : memref<16x128xf32, #tpu.memory_space<smem>>
      %c2_i32_18 = arith.constant 2 : i32
      %78 = arith.addi %0, %c2_i32_18 : i32
      %79 = arith.index_cast %78 : i32 to index
      %c3_19 = arith.constant 3 : index
      %80 = memref.load %arg1[%79, %c3_19] : memref<16x128xf32, #tpu.memory_space<smem>>
      %81 = vector.broadcast %74 : f32 to vector<32x128xf32>
      %82 = arith.subf %2, %81 : vector<32x128xf32>
      %83 = vector.broadcast %77 : f32 to vector<32x128xf32>
      %84 = arith.subf %13, %83 : vector<32x128xf32>
      %85 = arith.mulf %82, %82 : vector<32x128xf32>
      %86 = arith.mulf %84, %84 : vector<32x128xf32>
      %87 = arith.addf %85, %86 : vector<32x128xf32>
      %88 = arith.cmpf olt, %87, %70 : vector<32x128xf32>
      %89 = arith.minimumf %70, %87 : vector<32x128xf32>
      %90 = vector.broadcast %80 : f32 to vector<32x128xf32>
      %91 = arith.select %88, %90, %72 : vector<32x128xi1>, vector<32x128xf32>
      %92 = arith.index_cast %0 : i32 to index
      %c4 = arith.constant 4 : index
      %93 = memref.load %arg1[%92, %c4] : memref<16x128xf32, #tpu.memory_space<smem>>
      %c1_i32_20 = arith.constant 1 : i32
      %94 = arith.addi %0, %c1_i32_20 : i32
      %95 = arith.index_cast %94 : i32 to index
      %c4_21 = arith.constant 4 : index
      %96 = memref.load %arg1[%95, %c4_21] : memref<16x128xf32, #tpu.memory_space<smem>>
      %c2_i32_22 = arith.constant 2 : i32
      %97 = arith.addi %0, %c2_i32_22 : i32
      %98 = arith.index_cast %97 : i32 to index
      %c4_23 = arith.constant 4 : index
      %99 = memref.load %arg1[%98, %c4_23] : memref<16x128xf32, #tpu.memory_space<smem>>
      %100 = vector.broadcast %93 : f32 to vector<32x128xf32>
      %101 = arith.subf %2, %100 : vector<32x128xf32>
      %102 = vector.broadcast %96 : f32 to vector<32x128xf32>
      %103 = arith.subf %13, %102 : vector<32x128xf32>
      %104 = arith.mulf %101, %101 : vector<32x128xf32>
      %105 = arith.mulf %103, %103 : vector<32x128xf32>
      %106 = arith.addf %104, %105 : vector<32x128xf32>
      %107 = arith.cmpf olt, %106, %89 : vector<32x128xf32>
      %108 = arith.minimumf %89, %106 : vector<32x128xf32>
      %109 = vector.broadcast %99 : f32 to vector<32x128xf32>
      %110 = arith.select %107, %109, %91 : vector<32x128xi1>, vector<32x128xf32>
      %111 = arith.index_cast %0 : i32 to index
      %c5 = arith.constant 5 : index
      %112 = memref.load %arg1[%111, %c5] : memref<16x128xf32, #tpu.memory_space<smem>>
      %c1_i32_24 = arith.constant 1 : i32
      %113 = arith.addi %0, %c1_i32_24 : i32
      %114 = arith.index_cast %113 : i32 to index
      %c5_25 = arith.constant 5 : index
      %115 = memref.load %arg1[%114, %c5_25] : memref<16x128xf32, #tpu.memory_space<smem>>
      %c2_i32_26 = arith.constant 2 : i32
      %116 = arith.addi %0, %c2_i32_26 : i32
      %117 = arith.index_cast %116 : i32 to index
      %c5_27 = arith.constant 5 : index
      %118 = memref.load %arg1[%117, %c5_27] : memref<16x128xf32, #tpu.memory_space<smem>>
      %119 = vector.broadcast %112 : f32 to vector<32x128xf32>
      %120 = arith.subf %2, %119 : vector<32x128xf32>
      %121 = vector.broadcast %115 : f32 to vector<32x128xf32>
      %122 = arith.subf %13, %121 : vector<32x128xf32>
      %123 = arith.mulf %120, %120 : vector<32x128xf32>
      %124 = arith.mulf %122, %122 : vector<32x128xf32>
      %125 = arith.addf %123, %124 : vector<32x128xf32>
      %126 = arith.cmpf olt, %125, %108 : vector<32x128xf32>
      %127 = arith.minimumf %108, %125 : vector<32x128xf32>
      %128 = vector.broadcast %118 : f32 to vector<32x128xf32>
      %129 = arith.select %126, %128, %110 : vector<32x128xi1>, vector<32x128xf32>
      %130 = arith.index_cast %0 : i32 to index
      %c6 = arith.constant 6 : index
      %131 = memref.load %arg1[%130, %c6] : memref<16x128xf32, #tpu.memory_space<smem>>
      %c1_i32_28 = arith.constant 1 : i32
      %132 = arith.addi %0, %c1_i32_28 : i32
      %133 = arith.index_cast %132 : i32 to index
      %c6_29 = arith.constant 6 : index
      %134 = memref.load %arg1[%133, %c6_29] : memref<16x128xf32, #tpu.memory_space<smem>>
      %c2_i32_30 = arith.constant 2 : i32
      %135 = arith.addi %0, %c2_i32_30 : i32
      %136 = arith.index_cast %135 : i32 to index
      %c6_31 = arith.constant 6 : index
      %137 = memref.load %arg1[%136, %c6_31] : memref<16x128xf32, #tpu.memory_space<smem>>
      %138 = vector.broadcast %131 : f32 to vector<32x128xf32>
      %139 = arith.subf %2, %138 : vector<32x128xf32>
      %140 = vector.broadcast %134 : f32 to vector<32x128xf32>
      %141 = arith.subf %13, %140 : vector<32x128xf32>
      %142 = arith.mulf %139, %139 : vector<32x128xf32>
      %143 = arith.mulf %141, %141 : vector<32x128xf32>
      %144 = arith.addf %142, %143 : vector<32x128xf32>
      %145 = arith.cmpf olt, %144, %127 : vector<32x128xf32>
      %146 = arith.minimumf %127, %144 : vector<32x128xf32>
      %147 = vector.broadcast %137 : f32 to vector<32x128xf32>
      %148 = arith.select %145, %147, %129 : vector<32x128xi1>, vector<32x128xf32>
      %149 = arith.index_cast %0 : i32 to index
      %c7 = arith.constant 7 : index
      %150 = memref.load %arg1[%149, %c7] : memref<16x128xf32, #tpu.memory_space<smem>>
      %c1_i32_32 = arith.constant 1 : i32
      %151 = arith.addi %0, %c1_i32_32 : i32
      %152 = arith.index_cast %151 : i32 to index
      %c7_33 = arith.constant 7 : index
      %153 = memref.load %arg1[%152, %c7_33] : memref<16x128xf32, #tpu.memory_space<smem>>
      %c2_i32_34 = arith.constant 2 : i32
      %154 = arith.addi %0, %c2_i32_34 : i32
      %155 = arith.index_cast %154 : i32 to index
      %c7_35 = arith.constant 7 : index
      %156 = memref.load %arg1[%155, %c7_35] : memref<16x128xf32, #tpu.memory_space<smem>>
      %157 = vector.broadcast %150 : f32 to vector<32x128xf32>
      %158 = arith.subf %2, %157 : vector<32x128xf32>
      %159 = vector.broadcast %153 : f32 to vector<32x128xf32>
      %160 = arith.subf %13, %159 : vector<32x128xf32>
      %161 = arith.mulf %158, %158 : vector<32x128xf32>
      %162 = arith.mulf %160, %160 : vector<32x128xf32>
      %163 = arith.addf %161, %162 : vector<32x128xf32>
      %164 = arith.cmpf olt, %163, %146 : vector<32x128xf32>
      %165 = arith.minimumf %146, %163 : vector<32x128xf32>
      %166 = vector.broadcast %156 : f32 to vector<32x128xf32>
      %167 = arith.select %164, %166, %148 : vector<32x128xi1>, vector<32x128xf32>
      %168 = arith.index_cast %0 : i32 to index
      %c8 = arith.constant 8 : index
      %169 = memref.load %arg1[%168, %c8] : memref<16x128xf32, #tpu.memory_space<smem>>
      %c1_i32_36 = arith.constant 1 : i32
      %170 = arith.addi %0, %c1_i32_36 : i32
      %171 = arith.index_cast %170 : i32 to index
      %c8_37 = arith.constant 8 : index
      %172 = memref.load %arg1[%171, %c8_37] : memref<16x128xf32, #tpu.memory_space<smem>>
      %c2_i32_38 = arith.constant 2 : i32
      %173 = arith.addi %0, %c2_i32_38 : i32
      %174 = arith.index_cast %173 : i32 to index
      %c8_39 = arith.constant 8 : index
      %175 = memref.load %arg1[%174, %c8_39] : memref<16x128xf32, #tpu.memory_space<smem>>
      %176 = vector.broadcast %169 : f32 to vector<32x128xf32>
      %177 = arith.subf %2, %176 : vector<32x128xf32>
      %178 = vector.broadcast %172 : f32 to vector<32x128xf32>
      %179 = arith.subf %13, %178 : vector<32x128xf32>
      %180 = arith.mulf %177, %177 : vector<32x128xf32>
      %181 = arith.mulf %179, %179 : vector<32x128xf32>
      %182 = arith.addf %180, %181 : vector<32x128xf32>
      %183 = arith.cmpf olt, %182, %165 : vector<32x128xf32>
      %184 = arith.minimumf %165, %182 : vector<32x128xf32>
      %185 = vector.broadcast %175 : f32 to vector<32x128xf32>
      %186 = arith.select %183, %185, %167 : vector<32x128xi1>, vector<32x128xf32>
      %187 = arith.index_cast %0 : i32 to index
      %c9 = arith.constant 9 : index
      %188 = memref.load %arg1[%187, %c9] : memref<16x128xf32, #tpu.memory_space<smem>>
      %c1_i32_40 = arith.constant 1 : i32
      %189 = arith.addi %0, %c1_i32_40 : i32
      %190 = arith.index_cast %189 : i32 to index
      %c9_41 = arith.constant 9 : index
      %191 = memref.load %arg1[%190, %c9_41] : memref<16x128xf32, #tpu.memory_space<smem>>
      %c2_i32_42 = arith.constant 2 : i32
      %192 = arith.addi %0, %c2_i32_42 : i32
      %193 = arith.index_cast %192 : i32 to index
      %c9_43 = arith.constant 9 : index
      %194 = memref.load %arg1[%193, %c9_43] : memref<16x128xf32, #tpu.memory_space<smem>>
      %195 = vector.broadcast %188 : f32 to vector<32x128xf32>
      %196 = arith.subf %2, %195 : vector<32x128xf32>
      %197 = vector.broadcast %191 : f32 to vector<32x128xf32>
      %198 = arith.subf %13, %197 : vector<32x128xf32>
      %199 = arith.mulf %196, %196 : vector<32x128xf32>
      %200 = arith.mulf %198, %198 : vector<32x128xf32>
      %201 = arith.addf %199, %200 : vector<32x128xf32>
      %202 = arith.cmpf olt, %201, %184 : vector<32x128xf32>
      %203 = arith.minimumf %184, %201 : vector<32x128xf32>
      %204 = vector.broadcast %194 : f32 to vector<32x128xf32>
      %205 = arith.select %202, %204, %186 : vector<32x128xi1>, vector<32x128xf32>
      %206 = arith.index_cast %0 : i32 to index
      %c10 = arith.constant 10 : index
      %207 = memref.load %arg1[%206, %c10] : memref<16x128xf32, #tpu.memory_space<smem>>
      %c1_i32_44 = arith.constant 1 : i32
      %208 = arith.addi %0, %c1_i32_44 : i32
      %209 = arith.index_cast %208 : i32 to index
      %c10_45 = arith.constant 10 : index
      %210 = memref.load %arg1[%209, %c10_45] : memref<16x128xf32, #tpu.memory_space<smem>>
      %c2_i32_46 = arith.constant 2 : i32
      %211 = arith.addi %0, %c2_i32_46 : i32
      %212 = arith.index_cast %211 : i32 to index
      %c10_47 = arith.constant 10 : index
      %213 = memref.load %arg1[%212, %c10_47] : memref<16x128xf32, #tpu.memory_space<smem>>
      %214 = vector.broadcast %207 : f32 to vector<32x128xf32>
      %215 = arith.subf %2, %214 : vector<32x128xf32>
      %216 = vector.broadcast %210 : f32 to vector<32x128xf32>
      %217 = arith.subf %13, %216 : vector<32x128xf32>
      %218 = arith.mulf %215, %215 : vector<32x128xf32>
      %219 = arith.mulf %217, %217 : vector<32x128xf32>
      %220 = arith.addf %218, %219 : vector<32x128xf32>
      %221 = arith.cmpf olt, %220, %203 : vector<32x128xf32>
      %222 = arith.minimumf %203, %220 : vector<32x128xf32>
      %223 = vector.broadcast %213 : f32 to vector<32x128xf32>
      %224 = arith.select %221, %223, %205 : vector<32x128xi1>, vector<32x128xf32>
      %225 = arith.index_cast %0 : i32 to index
      %c11 = arith.constant 11 : index
      %226 = memref.load %arg1[%225, %c11] : memref<16x128xf32, #tpu.memory_space<smem>>
      %c1_i32_48 = arith.constant 1 : i32
      %227 = arith.addi %0, %c1_i32_48 : i32
      %228 = arith.index_cast %227 : i32 to index
      %c11_49 = arith.constant 11 : index
      %229 = memref.load %arg1[%228, %c11_49] : memref<16x128xf32, #tpu.memory_space<smem>>
      %c2_i32_50 = arith.constant 2 : i32
      %230 = arith.addi %0, %c2_i32_50 : i32
      %231 = arith.index_cast %230 : i32 to index
      %c11_51 = arith.constant 11 : index
      %232 = memref.load %arg1[%231, %c11_51] : memref<16x128xf32, #tpu.memory_space<smem>>
      %233 = vector.broadcast %226 : f32 to vector<32x128xf32>
      %234 = arith.subf %2, %233 : vector<32x128xf32>
      %235 = vector.broadcast %229 : f32 to vector<32x128xf32>
      %236 = arith.subf %13, %235 : vector<32x128xf32>
      %237 = arith.mulf %234, %234 : vector<32x128xf32>
      %238 = arith.mulf %236, %236 : vector<32x128xf32>
      %239 = arith.addf %237, %238 : vector<32x128xf32>
      %240 = arith.cmpf olt, %239, %222 : vector<32x128xf32>
      %241 = arith.minimumf %222, %239 : vector<32x128xf32>
      %242 = vector.broadcast %232 : f32 to vector<32x128xf32>
      %243 = arith.select %240, %242, %224 : vector<32x128xi1>, vector<32x128xf32>
      %244 = arith.index_cast %0 : i32 to index
      %c12 = arith.constant 12 : index
      %245 = memref.load %arg1[%244, %c12] : memref<16x128xf32, #tpu.memory_space<smem>>
      %c1_i32_52 = arith.constant 1 : i32
      %246 = arith.addi %0, %c1_i32_52 : i32
      %247 = arith.index_cast %246 : i32 to index
      %c12_53 = arith.constant 12 : index
      %248 = memref.load %arg1[%247, %c12_53] : memref<16x128xf32, #tpu.memory_space<smem>>
      %c2_i32_54 = arith.constant 2 : i32
      %249 = arith.addi %0, %c2_i32_54 : i32
      %250 = arith.index_cast %249 : i32 to index
      %c12_55 = arith.constant 12 : index
      %251 = memref.load %arg1[%250, %c12_55] : memref<16x128xf32, #tpu.memory_space<smem>>
      %252 = vector.broadcast %245 : f32 to vector<32x128xf32>
      %253 = arith.subf %2, %252 : vector<32x128xf32>
      %254 = vector.broadcast %248 : f32 to vector<32x128xf32>
      %255 = arith.subf %13, %254 : vector<32x128xf32>
      %256 = arith.mulf %253, %253 : vector<32x128xf32>
      %257 = arith.mulf %255, %255 : vector<32x128xf32>
      %258 = arith.addf %256, %257 : vector<32x128xf32>
      %259 = arith.cmpf olt, %258, %241 : vector<32x128xf32>
      %260 = arith.minimumf %241, %258 : vector<32x128xf32>
      %261 = vector.broadcast %251 : f32 to vector<32x128xf32>
      %262 = arith.select %259, %261, %243 : vector<32x128xi1>, vector<32x128xf32>
      %263 = arith.index_cast %0 : i32 to index
      %c13 = arith.constant 13 : index
      %264 = memref.load %arg1[%263, %c13] : memref<16x128xf32, #tpu.memory_space<smem>>
      %c1_i32_56 = arith.constant 1 : i32
      %265 = arith.addi %0, %c1_i32_56 : i32
      %266 = arith.index_cast %265 : i32 to index
      %c13_57 = arith.constant 13 : index
      %267 = memref.load %arg1[%266, %c13_57] : memref<16x128xf32, #tpu.memory_space<smem>>
      %c2_i32_58 = arith.constant 2 : i32
      %268 = arith.addi %0, %c2_i32_58 : i32
      %269 = arith.index_cast %268 : i32 to index
      %c13_59 = arith.constant 13 : index
      %270 = memref.load %arg1[%269, %c13_59] : memref<16x128xf32, #tpu.memory_space<smem>>
      %271 = vector.broadcast %264 : f32 to vector<32x128xf32>
      %272 = arith.subf %2, %271 : vector<32x128xf32>
      %273 = vector.broadcast %267 : f32 to vector<32x128xf32>
      %274 = arith.subf %13, %273 : vector<32x128xf32>
      %275 = arith.mulf %272, %272 : vector<32x128xf32>
      %276 = arith.mulf %274, %274 : vector<32x128xf32>
      %277 = arith.addf %275, %276 : vector<32x128xf32>
      %278 = arith.cmpf olt, %277, %260 : vector<32x128xf32>
      %279 = arith.minimumf %260, %277 : vector<32x128xf32>
      %280 = vector.broadcast %270 : f32 to vector<32x128xf32>
      %281 = arith.select %278, %280, %262 : vector<32x128xi1>, vector<32x128xf32>
      %282 = arith.index_cast %0 : i32 to index
      %c14 = arith.constant 14 : index
      %283 = memref.load %arg1[%282, %c14] : memref<16x128xf32, #tpu.memory_space<smem>>
      %c1_i32_60 = arith.constant 1 : i32
      %284 = arith.addi %0, %c1_i32_60 : i32
      %285 = arith.index_cast %284 : i32 to index
      %c14_61 = arith.constant 14 : index
      %286 = memref.load %arg1[%285, %c14_61] : memref<16x128xf32, #tpu.memory_space<smem>>
      %c2_i32_62 = arith.constant 2 : i32
      %287 = arith.addi %0, %c2_i32_62 : i32
      %288 = arith.index_cast %287 : i32 to index
      %c14_63 = arith.constant 14 : index
      %289 = memref.load %arg1[%288, %c14_63] : memref<16x128xf32, #tpu.memory_space<smem>>
      %290 = vector.broadcast %283 : f32 to vector<32x128xf32>
      %291 = arith.subf %2, %290 : vector<32x128xf32>
      %292 = vector.broadcast %286 : f32 to vector<32x128xf32>
      %293 = arith.subf %13, %292 : vector<32x128xf32>
      %294 = arith.mulf %291, %291 : vector<32x128xf32>
      %295 = arith.mulf %293, %293 : vector<32x128xf32>
      %296 = arith.addf %294, %295 : vector<32x128xf32>
      %297 = arith.cmpf olt, %296, %279 : vector<32x128xf32>
      %298 = arith.minimumf %279, %296 : vector<32x128xf32>
      %299 = vector.broadcast %289 : f32 to vector<32x128xf32>
      %300 = arith.select %297, %299, %281 : vector<32x128xi1>, vector<32x128xf32>
      %301 = arith.index_cast %0 : i32 to index
      %c15 = arith.constant 15 : index
      %302 = memref.load %arg1[%301, %c15] : memref<16x128xf32, #tpu.memory_space<smem>>
      %c1_i32_64 = arith.constant 1 : i32
      %303 = arith.addi %0, %c1_i32_64 : i32
      %304 = arith.index_cast %303 : i32 to index
      %c15_65 = arith.constant 15 : index
      %305 = memref.load %arg1[%304, %c15_65] : memref<16x128xf32, #tpu.memory_space<smem>>
      %c2_i32_66 = arith.constant 2 : i32
      %306 = arith.addi %0, %c2_i32_66 : i32
      %307 = arith.index_cast %306 : i32 to index
      %c15_67 = arith.constant 15 : index
      %308 = memref.load %arg1[%307, %c15_67] : memref<16x128xf32, #tpu.memory_space<smem>>
      %309 = vector.broadcast %302 : f32 to vector<32x128xf32>
      %310 = arith.subf %2, %309 : vector<32x128xf32>
      %311 = vector.broadcast %305 : f32 to vector<32x128xf32>
      %312 = arith.subf %13, %311 : vector<32x128xf32>
      %313 = arith.mulf %310, %310 : vector<32x128xf32>
      %314 = arith.mulf %312, %312 : vector<32x128xf32>
      %315 = arith.addf %313, %314 : vector<32x128xf32>
      %316 = arith.cmpf olt, %315, %298 : vector<32x128xf32>
      %317 = arith.minimumf %298, %315 : vector<32x128xf32>
      %318 = vector.broadcast %308 : f32 to vector<32x128xf32>
      %319 = arith.select %316, %318, %300 : vector<32x128xi1>, vector<32x128xf32>
      %320 = arith.index_cast %0 : i32 to index
      %c16 = arith.constant 16 : index
      %321 = memref.load %arg1[%320, %c16] : memref<16x128xf32, #tpu.memory_space<smem>>
      %c1_i32_68 = arith.constant 1 : i32
      %322 = arith.addi %0, %c1_i32_68 : i32
      %323 = arith.index_cast %322 : i32 to index
      %c16_69 = arith.constant 16 : index
      %324 = memref.load %arg1[%323, %c16_69] : memref<16x128xf32, #tpu.memory_space<smem>>
      %c2_i32_70 = arith.constant 2 : i32
      %325 = arith.addi %0, %c2_i32_70 : i32
      %326 = arith.index_cast %325 : i32 to index
      %c16_71 = arith.constant 16 : index
      %327 = memref.load %arg1[%326, %c16_71] : memref<16x128xf32, #tpu.memory_space<smem>>
      %328 = vector.broadcast %321 : f32 to vector<32x128xf32>
      %329 = arith.subf %2, %328 : vector<32x128xf32>
      %330 = vector.broadcast %324 : f32 to vector<32x128xf32>
      %331 = arith.subf %13, %330 : vector<32x128xf32>
      %332 = arith.mulf %329, %329 : vector<32x128xf32>
      %333 = arith.mulf %331, %331 : vector<32x128xf32>
      %334 = arith.addf %332, %333 : vector<32x128xf32>
      %335 = arith.cmpf olt, %334, %317 : vector<32x128xf32>
      %336 = arith.minimumf %317, %334 : vector<32x128xf32>
      %337 = vector.broadcast %327 : f32 to vector<32x128xf32>
      %338 = arith.select %335, %337, %319 : vector<32x128xi1>, vector<32x128xf32>
      %339 = arith.index_cast %0 : i32 to index
      %c17 = arith.constant 17 : index
      %340 = memref.load %arg1[%339, %c17] : memref<16x128xf32, #tpu.memory_space<smem>>
      %c1_i32_72 = arith.constant 1 : i32
      %341 = arith.addi %0, %c1_i32_72 : i32
      %342 = arith.index_cast %341 : i32 to index
      %c17_73 = arith.constant 17 : index
      %343 = memref.load %arg1[%342, %c17_73] : memref<16x128xf32, #tpu.memory_space<smem>>
      %c2_i32_74 = arith.constant 2 : i32
      %344 = arith.addi %0, %c2_i32_74 : i32
      %345 = arith.index_cast %344 : i32 to index
      %c17_75 = arith.constant 17 : index
      %346 = memref.load %arg1[%345, %c17_75] : memref<16x128xf32, #tpu.memory_space<smem>>
      %347 = vector.broadcast %340 : f32 to vector<32x128xf32>
      %348 = arith.subf %2, %347 : vector<32x128xf32>
      %349 = vector.broadcast %343 : f32 to vector<32x128xf32>
      %350 = arith.subf %13, %349 : vector<32x128xf32>
      %351 = arith.mulf %348, %348 : vector<32x128xf32>
      %352 = arith.mulf %350, %350 : vector<32x128xf32>
      %353 = arith.addf %351, %352 : vector<32x128xf32>
      %354 = arith.cmpf olt, %353, %336 : vector<32x128xf32>
      %355 = arith.minimumf %336, %353 : vector<32x128xf32>
      %356 = vector.broadcast %346 : f32 to vector<32x128xf32>
      %357 = arith.select %354, %356, %338 : vector<32x128xi1>, vector<32x128xf32>
      %358 = arith.index_cast %0 : i32 to index
      %c18 = arith.constant 18 : index
      %359 = memref.load %arg1[%358, %c18] : memref<16x128xf32, #tpu.memory_space<smem>>
      %c1_i32_76 = arith.constant 1 : i32
      %360 = arith.addi %0, %c1_i32_76 : i32
      %361 = arith.index_cast %360 : i32 to index
      %c18_77 = arith.constant 18 : index
      %362 = memref.load %arg1[%361, %c18_77] : memref<16x128xf32, #tpu.memory_space<smem>>
      %c2_i32_78 = arith.constant 2 : i32
      %363 = arith.addi %0, %c2_i32_78 : i32
      %364 = arith.index_cast %363 : i32 to index
      %c18_79 = arith.constant 18 : index
      %365 = memref.load %arg1[%364, %c18_79] : memref<16x128xf32, #tpu.memory_space<smem>>
      %366 = vector.broadcast %359 : f32 to vector<32x128xf32>
      %367 = arith.subf %2, %366 : vector<32x128xf32>
      %368 = vector.broadcast %362 : f32 to vector<32x128xf32>
      %369 = arith.subf %13, %368 : vector<32x128xf32>
      %370 = arith.mulf %367, %367 : vector<32x128xf32>
      %371 = arith.mulf %369, %369 : vector<32x128xf32>
      %372 = arith.addf %370, %371 : vector<32x128xf32>
      %373 = arith.cmpf olt, %372, %355 : vector<32x128xf32>
      %374 = arith.minimumf %355, %372 : vector<32x128xf32>
      %375 = vector.broadcast %365 : f32 to vector<32x128xf32>
      %376 = arith.select %373, %375, %357 : vector<32x128xi1>, vector<32x128xf32>
      %377 = arith.index_cast %0 : i32 to index
      %c19 = arith.constant 19 : index
      %378 = memref.load %arg1[%377, %c19] : memref<16x128xf32, #tpu.memory_space<smem>>
      %c1_i32_80 = arith.constant 1 : i32
      %379 = arith.addi %0, %c1_i32_80 : i32
      %380 = arith.index_cast %379 : i32 to index
      %c19_81 = arith.constant 19 : index
      %381 = memref.load %arg1[%380, %c19_81] : memref<16x128xf32, #tpu.memory_space<smem>>
      %c2_i32_82 = arith.constant 2 : i32
      %382 = arith.addi %0, %c2_i32_82 : i32
      %383 = arith.index_cast %382 : i32 to index
      %c19_83 = arith.constant 19 : index
      %384 = memref.load %arg1[%383, %c19_83] : memref<16x128xf32, #tpu.memory_space<smem>>
      %385 = vector.broadcast %378 : f32 to vector<32x128xf32>
      %386 = arith.subf %2, %385 : vector<32x128xf32>
      %387 = vector.broadcast %381 : f32 to vector<32x128xf32>
      %388 = arith.subf %13, %387 : vector<32x128xf32>
      %389 = arith.mulf %386, %386 : vector<32x128xf32>
      %390 = arith.mulf %388, %388 : vector<32x128xf32>
      %391 = arith.addf %389, %390 : vector<32x128xf32>
      %392 = arith.cmpf olt, %391, %374 : vector<32x128xf32>
      %393 = arith.minimumf %374, %391 : vector<32x128xf32>
      %394 = vector.broadcast %384 : f32 to vector<32x128xf32>
      %395 = arith.select %392, %394, %376 : vector<32x128xi1>, vector<32x128xf32>
      %396 = arith.index_cast %0 : i32 to index
      %c20 = arith.constant 20 : index
      %397 = memref.load %arg1[%396, %c20] : memref<16x128xf32, #tpu.memory_space<smem>>
      %c1_i32_84 = arith.constant 1 : i32
      %398 = arith.addi %0, %c1_i32_84 : i32
      %399 = arith.index_cast %398 : i32 to index
      %c20_85 = arith.constant 20 : index
      %400 = memref.load %arg1[%399, %c20_85] : memref<16x128xf32, #tpu.memory_space<smem>>
      %c2_i32_86 = arith.constant 2 : i32
      %401 = arith.addi %0, %c2_i32_86 : i32
      %402 = arith.index_cast %401 : i32 to index
      %c20_87 = arith.constant 20 : index
      %403 = memref.load %arg1[%402, %c20_87] : memref<16x128xf32, #tpu.memory_space<smem>>
      %404 = vector.broadcast %397 : f32 to vector<32x128xf32>
      %405 = arith.subf %2, %404 : vector<32x128xf32>
      %406 = vector.broadcast %400 : f32 to vector<32x128xf32>
      %407 = arith.subf %13, %406 : vector<32x128xf32>
      %408 = arith.mulf %405, %405 : vector<32x128xf32>
      %409 = arith.mulf %407, %407 : vector<32x128xf32>
      %410 = arith.addf %408, %409 : vector<32x128xf32>
      %411 = arith.cmpf olt, %410, %393 : vector<32x128xf32>
      %412 = arith.minimumf %393, %410 : vector<32x128xf32>
      %413 = vector.broadcast %403 : f32 to vector<32x128xf32>
      %414 = arith.select %411, %413, %395 : vector<32x128xi1>, vector<32x128xf32>
      %415 = arith.index_cast %0 : i32 to index
      %c21 = arith.constant 21 : index
      %416 = memref.load %arg1[%415, %c21] : memref<16x128xf32, #tpu.memory_space<smem>>
      %c1_i32_88 = arith.constant 1 : i32
      %417 = arith.addi %0, %c1_i32_88 : i32
      %418 = arith.index_cast %417 : i32 to index
      %c21_89 = arith.constant 21 : index
      %419 = memref.load %arg1[%418, %c21_89] : memref<16x128xf32, #tpu.memory_space<smem>>
      %c2_i32_90 = arith.constant 2 : i32
      %420 = arith.addi %0, %c2_i32_90 : i32
      %421 = arith.index_cast %420 : i32 to index
      %c21_91 = arith.constant 21 : index
      %422 = memref.load %arg1[%421, %c21_91] : memref<16x128xf32, #tpu.memory_space<smem>>
      %423 = vector.broadcast %416 : f32 to vector<32x128xf32>
      %424 = arith.subf %2, %423 : vector<32x128xf32>
      %425 = vector.broadcast %419 : f32 to vector<32x128xf32>
      %426 = arith.subf %13, %425 : vector<32x128xf32>
      %427 = arith.mulf %424, %424 : vector<32x128xf32>
      %428 = arith.mulf %426, %426 : vector<32x128xf32>
      %429 = arith.addf %427, %428 : vector<32x128xf32>
      %430 = arith.cmpf olt, %429, %412 : vector<32x128xf32>
      %431 = arith.minimumf %412, %429 : vector<32x128xf32>
      %432 = vector.broadcast %422 : f32 to vector<32x128xf32>
      %433 = arith.select %430, %432, %414 : vector<32x128xi1>, vector<32x128xf32>
      %434 = arith.index_cast %0 : i32 to index
      %c22 = arith.constant 22 : index
      %435 = memref.load %arg1[%434, %c22] : memref<16x128xf32, #tpu.memory_space<smem>>
      %c1_i32_92 = arith.constant 1 : i32
      %436 = arith.addi %0, %c1_i32_92 : i32
      %437 = arith.index_cast %436 : i32 to index
      %c22_93 = arith.constant 22 : index
      %438 = memref.load %arg1[%437, %c22_93] : memref<16x128xf32, #tpu.memory_space<smem>>
      %c2_i32_94 = arith.constant 2 : i32
      %439 = arith.addi %0, %c2_i32_94 : i32
      %440 = arith.index_cast %439 : i32 to index
      %c22_95 = arith.constant 22 : index
      %441 = memref.load %arg1[%440, %c22_95] : memref<16x128xf32, #tpu.memory_space<smem>>
      %442 = vector.broadcast %435 : f32 to vector<32x128xf32>
      %443 = arith.subf %2, %442 : vector<32x128xf32>
      %444 = vector.broadcast %438 : f32 to vector<32x128xf32>
      %445 = arith.subf %13, %444 : vector<32x128xf32>
      %446 = arith.mulf %443, %443 : vector<32x128xf32>
      %447 = arith.mulf %445, %445 : vector<32x128xf32>
      %448 = arith.addf %446, %447 : vector<32x128xf32>
      %449 = arith.cmpf olt, %448, %431 : vector<32x128xf32>
      %450 = arith.minimumf %431, %448 : vector<32x128xf32>
      %451 = vector.broadcast %441 : f32 to vector<32x128xf32>
      %452 = arith.select %449, %451, %433 : vector<32x128xi1>, vector<32x128xf32>
      %453 = arith.index_cast %0 : i32 to index
      %c23 = arith.constant 23 : index
      %454 = memref.load %arg1[%453, %c23] : memref<16x128xf32, #tpu.memory_space<smem>>
      %c1_i32_96 = arith.constant 1 : i32
      %455 = arith.addi %0, %c1_i32_96 : i32
      %456 = arith.index_cast %455 : i32 to index
      %c23_97 = arith.constant 23 : index
      %457 = memref.load %arg1[%456, %c23_97] : memref<16x128xf32, #tpu.memory_space<smem>>
      %c2_i32_98 = arith.constant 2 : i32
      %458 = arith.addi %0, %c2_i32_98 : i32
      %459 = arith.index_cast %458 : i32 to index
      %c23_99 = arith.constant 23 : index
      %460 = memref.load %arg1[%459, %c23_99] : memref<16x128xf32, #tpu.memory_space<smem>>
      %461 = vector.broadcast %454 : f32 to vector<32x128xf32>
      %462 = arith.subf %2, %461 : vector<32x128xf32>
      %463 = vector.broadcast %457 : f32 to vector<32x128xf32>
      %464 = arith.subf %13, %463 : vector<32x128xf32>
      %465 = arith.mulf %462, %462 : vector<32x128xf32>
      %466 = arith.mulf %464, %464 : vector<32x128xf32>
      %467 = arith.addf %465, %466 : vector<32x128xf32>
      %468 = arith.cmpf olt, %467, %450 : vector<32x128xf32>
      %469 = arith.minimumf %450, %467 : vector<32x128xf32>
      %470 = vector.broadcast %460 : f32 to vector<32x128xf32>
      %471 = arith.select %468, %470, %452 : vector<32x128xi1>, vector<32x128xf32>
      %472 = arith.index_cast %0 : i32 to index
      %c24 = arith.constant 24 : index
      %473 = memref.load %arg1[%472, %c24] : memref<16x128xf32, #tpu.memory_space<smem>>
      %c1_i32_100 = arith.constant 1 : i32
      %474 = arith.addi %0, %c1_i32_100 : i32
      %475 = arith.index_cast %474 : i32 to index
      %c24_101 = arith.constant 24 : index
      %476 = memref.load %arg1[%475, %c24_101] : memref<16x128xf32, #tpu.memory_space<smem>>
      %c2_i32_102 = arith.constant 2 : i32
      %477 = arith.addi %0, %c2_i32_102 : i32
      %478 = arith.index_cast %477 : i32 to index
      %c24_103 = arith.constant 24 : index
      %479 = memref.load %arg1[%478, %c24_103] : memref<16x128xf32, #tpu.memory_space<smem>>
      %480 = vector.broadcast %473 : f32 to vector<32x128xf32>
      %481 = arith.subf %2, %480 : vector<32x128xf32>
      %482 = vector.broadcast %476 : f32 to vector<32x128xf32>
      %483 = arith.subf %13, %482 : vector<32x128xf32>
      %484 = arith.mulf %481, %481 : vector<32x128xf32>
      %485 = arith.mulf %483, %483 : vector<32x128xf32>
      %486 = arith.addf %484, %485 : vector<32x128xf32>
      %487 = arith.cmpf olt, %486, %469 : vector<32x128xf32>
      %488 = arith.minimumf %469, %486 : vector<32x128xf32>
      %489 = vector.broadcast %479 : f32 to vector<32x128xf32>
      %490 = arith.select %487, %489, %471 : vector<32x128xi1>, vector<32x128xf32>
      %491 = arith.index_cast %0 : i32 to index
      %c25 = arith.constant 25 : index
      %492 = memref.load %arg1[%491, %c25] : memref<16x128xf32, #tpu.memory_space<smem>>
      %c1_i32_104 = arith.constant 1 : i32
      %493 = arith.addi %0, %c1_i32_104 : i32
      %494 = arith.index_cast %493 : i32 to index
      %c25_105 = arith.constant 25 : index
      %495 = memref.load %arg1[%494, %c25_105] : memref<16x128xf32, #tpu.memory_space<smem>>
      %c2_i32_106 = arith.constant 2 : i32
      %496 = arith.addi %0, %c2_i32_106 : i32
      %497 = arith.index_cast %496 : i32 to index
      %c25_107 = arith.constant 25 : index
      %498 = memref.load %arg1[%497, %c25_107] : memref<16x128xf32, #tpu.memory_space<smem>>
      %499 = vector.broadcast %492 : f32 to vector<32x128xf32>
      %500 = arith.subf %2, %499 : vector<32x128xf32>
      %501 = vector.broadcast %495 : f32 to vector<32x128xf32>
      %502 = arith.subf %13, %501 : vector<32x128xf32>
      %503 = arith.mulf %500, %500 : vector<32x128xf32>
      %504 = arith.mulf %502, %502 : vector<32x128xf32>
      %505 = arith.addf %503, %504 : vector<32x128xf32>
      %506 = arith.cmpf olt, %505, %488 : vector<32x128xf32>
      %507 = arith.minimumf %488, %505 : vector<32x128xf32>
      %508 = vector.broadcast %498 : f32 to vector<32x128xf32>
      %509 = arith.select %506, %508, %490 : vector<32x128xi1>, vector<32x128xf32>
      %510 = arith.index_cast %0 : i32 to index
      %c26 = arith.constant 26 : index
      %511 = memref.load %arg1[%510, %c26] : memref<16x128xf32, #tpu.memory_space<smem>>
      %c1_i32_108 = arith.constant 1 : i32
      %512 = arith.addi %0, %c1_i32_108 : i32
      %513 = arith.index_cast %512 : i32 to index
      %c26_109 = arith.constant 26 : index
      %514 = memref.load %arg1[%513, %c26_109] : memref<16x128xf32, #tpu.memory_space<smem>>
      %c2_i32_110 = arith.constant 2 : i32
      %515 = arith.addi %0, %c2_i32_110 : i32
      %516 = arith.index_cast %515 : i32 to index
      %c26_111 = arith.constant 26 : index
      %517 = memref.load %arg1[%516, %c26_111] : memref<16x128xf32, #tpu.memory_space<smem>>
      %518 = vector.broadcast %511 : f32 to vector<32x128xf32>
      %519 = arith.subf %2, %518 : vector<32x128xf32>
      %520 = vector.broadcast %514 : f32 to vector<32x128xf32>
      %521 = arith.subf %13, %520 : vector<32x128xf32>
      %522 = arith.mulf %519, %519 : vector<32x128xf32>
      %523 = arith.mulf %521, %521 : vector<32x128xf32>
      %524 = arith.addf %522, %523 : vector<32x128xf32>
      %525 = arith.cmpf olt, %524, %507 : vector<32x128xf32>
      %526 = arith.minimumf %507, %524 : vector<32x128xf32>
      %527 = vector.broadcast %517 : f32 to vector<32x128xf32>
      %528 = arith.select %525, %527, %509 : vector<32x128xi1>, vector<32x128xf32>
      %529 = arith.index_cast %0 : i32 to index
      %c27 = arith.constant 27 : index
      %530 = memref.load %arg1[%529, %c27] : memref<16x128xf32, #tpu.memory_space<smem>>
      %c1_i32_112 = arith.constant 1 : i32
      %531 = arith.addi %0, %c1_i32_112 : i32
      %532 = arith.index_cast %531 : i32 to index
      %c27_113 = arith.constant 27 : index
      %533 = memref.load %arg1[%532, %c27_113] : memref<16x128xf32, #tpu.memory_space<smem>>
      %c2_i32_114 = arith.constant 2 : i32
      %534 = arith.addi %0, %c2_i32_114 : i32
      %535 = arith.index_cast %534 : i32 to index
      %c27_115 = arith.constant 27 : index
      %536 = memref.load %arg1[%535, %c27_115] : memref<16x128xf32, #tpu.memory_space<smem>>
      %537 = vector.broadcast %530 : f32 to vector<32x128xf32>
      %538 = arith.subf %2, %537 : vector<32x128xf32>
      %539 = vector.broadcast %533 : f32 to vector<32x128xf32>
      %540 = arith.subf %13, %539 : vector<32x128xf32>
      %541 = arith.mulf %538, %538 : vector<32x128xf32>
      %542 = arith.mulf %540, %540 : vector<32x128xf32>
      %543 = arith.addf %541, %542 : vector<32x128xf32>
      %544 = arith.cmpf olt, %543, %526 : vector<32x128xf32>
      %545 = arith.minimumf %526, %543 : vector<32x128xf32>
      %546 = vector.broadcast %536 : f32 to vector<32x128xf32>
      %547 = arith.select %544, %546, %528 : vector<32x128xi1>, vector<32x128xf32>
      %548 = arith.index_cast %0 : i32 to index
      %c28 = arith.constant 28 : index
      %549 = memref.load %arg1[%548, %c28] : memref<16x128xf32, #tpu.memory_space<smem>>
      %c1_i32_116 = arith.constant 1 : i32
      %550 = arith.addi %0, %c1_i32_116 : i32
      %551 = arith.index_cast %550 : i32 to index
      %c28_117 = arith.constant 28 : index
      %552 = memref.load %arg1[%551, %c28_117] : memref<16x128xf32, #tpu.memory_space<smem>>
      %c2_i32_118 = arith.constant 2 : i32
      %553 = arith.addi %0, %c2_i32_118 : i32
      %554 = arith.index_cast %553 : i32 to index
      %c28_119 = arith.constant 28 : index
      %555 = memref.load %arg1[%554, %c28_119] : memref<16x128xf32, #tpu.memory_space<smem>>
      %556 = vector.broadcast %549 : f32 to vector<32x128xf32>
      %557 = arith.subf %2, %556 : vector<32x128xf32>
      %558 = vector.broadcast %552 : f32 to vector<32x128xf32>
      %559 = arith.subf %13, %558 : vector<32x128xf32>
      %560 = arith.mulf %557, %557 : vector<32x128xf32>
      %561 = arith.mulf %559, %559 : vector<32x128xf32>
      %562 = arith.addf %560, %561 : vector<32x128xf32>
      %563 = arith.cmpf olt, %562, %545 : vector<32x128xf32>
      %564 = arith.minimumf %545, %562 : vector<32x128xf32>
      %565 = vector.broadcast %555 : f32 to vector<32x128xf32>
      %566 = arith.select %563, %565, %547 : vector<32x128xi1>, vector<32x128xf32>
      %567 = arith.index_cast %0 : i32 to index
      %c29 = arith.constant 29 : index
      %568 = memref.load %arg1[%567, %c29] : memref<16x128xf32, #tpu.memory_space<smem>>
      %c1_i32_120 = arith.constant 1 : i32
      %569 = arith.addi %0, %c1_i32_120 : i32
      %570 = arith.index_cast %569 : i32 to index
      %c29_121 = arith.constant 29 : index
      %571 = memref.load %arg1[%570, %c29_121] : memref<16x128xf32, #tpu.memory_space<smem>>
      %c2_i32_122 = arith.constant 2 : i32
      %572 = arith.addi %0, %c2_i32_122 : i32
      %573 = arith.index_cast %572 : i32 to index
      %c29_123 = arith.constant 29 : index
      %574 = memref.load %arg1[%573, %c29_123] : memref<16x128xf32, #tpu.memory_space<smem>>
      %575 = vector.broadcast %568 : f32 to vector<32x128xf32>
      %576 = arith.subf %2, %575 : vector<32x128xf32>
      %577 = vector.broadcast %571 : f32 to vector<32x128xf32>
      %578 = arith.subf %13, %577 : vector<32x128xf32>
      %579 = arith.mulf %576, %576 : vector<32x128xf32>
      %580 = arith.mulf %578, %578 : vector<32x128xf32>
      %581 = arith.addf %579, %580 : vector<32x128xf32>
      %582 = arith.cmpf olt, %581, %564 : vector<32x128xf32>
      %583 = arith.minimumf %564, %581 : vector<32x128xf32>
      %584 = vector.broadcast %574 : f32 to vector<32x128xf32>
      %585 = arith.select %582, %584, %566 : vector<32x128xi1>, vector<32x128xf32>
      %586 = arith.index_cast %0 : i32 to index
      %c30 = arith.constant 30 : index
      %587 = memref.load %arg1[%586, %c30] : memref<16x128xf32, #tpu.memory_space<smem>>
      %c1_i32_124 = arith.constant 1 : i32
      %588 = arith.addi %0, %c1_i32_124 : i32
      %589 = arith.index_cast %588 : i32 to index
      %c30_125 = arith.constant 30 : index
      %590 = memref.load %arg1[%589, %c30_125] : memref<16x128xf32, #tpu.memory_space<smem>>
      %c2_i32_126 = arith.constant 2 : i32
      %591 = arith.addi %0, %c2_i32_126 : i32
      %592 = arith.index_cast %591 : i32 to index
      %c30_127 = arith.constant 30 : index
      %593 = memref.load %arg1[%592, %c30_127] : memref<16x128xf32, #tpu.memory_space<smem>>
      %594 = vector.broadcast %587 : f32 to vector<32x128xf32>
      %595 = arith.subf %2, %594 : vector<32x128xf32>
      %596 = vector.broadcast %590 : f32 to vector<32x128xf32>
      %597 = arith.subf %13, %596 : vector<32x128xf32>
      %598 = arith.mulf %595, %595 : vector<32x128xf32>
      %599 = arith.mulf %597, %597 : vector<32x128xf32>
      %600 = arith.addf %598, %599 : vector<32x128xf32>
      %601 = arith.cmpf olt, %600, %583 : vector<32x128xf32>
      %602 = arith.minimumf %583, %600 : vector<32x128xf32>
      %603 = vector.broadcast %593 : f32 to vector<32x128xf32>
      %604 = arith.select %601, %603, %585 : vector<32x128xi1>, vector<32x128xf32>
      %605 = arith.index_cast %0 : i32 to index
      %c31 = arith.constant 31 : index
      %606 = memref.load %arg1[%605, %c31] : memref<16x128xf32, #tpu.memory_space<smem>>
      %c1_i32_128 = arith.constant 1 : i32
      %607 = arith.addi %0, %c1_i32_128 : i32
      %608 = arith.index_cast %607 : i32 to index
      %c31_129 = arith.constant 31 : index
      %609 = memref.load %arg1[%608, %c31_129] : memref<16x128xf32, #tpu.memory_space<smem>>
      %c2_i32_130 = arith.constant 2 : i32
      %610 = arith.addi %0, %c2_i32_130 : i32
      %611 = arith.index_cast %610 : i32 to index
      %c31_131 = arith.constant 31 : index
      %612 = memref.load %arg1[%611, %c31_131] : memref<16x128xf32, #tpu.memory_space<smem>>
      %613 = vector.broadcast %606 : f32 to vector<32x128xf32>
      %614 = arith.subf %2, %613 : vector<32x128xf32>
      %615 = vector.broadcast %609 : f32 to vector<32x128xf32>
      %616 = arith.subf %13, %615 : vector<32x128xf32>
      %617 = arith.mulf %614, %614 : vector<32x128xf32>
      %618 = arith.mulf %616, %616 : vector<32x128xf32>
      %619 = arith.addf %617, %618 : vector<32x128xf32>
      %620 = arith.cmpf olt, %619, %602 : vector<32x128xf32>
      %621 = arith.minimumf %602, %619 : vector<32x128xf32>
      %622 = vector.broadcast %612 : f32 to vector<32x128xf32>
      %623 = arith.select %620, %622, %604 : vector<32x128xi1>, vector<32x128xf32>
      %624 = arith.index_cast %0 : i32 to index
      %c32 = arith.constant 32 : index
      %625 = memref.load %arg1[%624, %c32] : memref<16x128xf32, #tpu.memory_space<smem>>
      %c1_i32_132 = arith.constant 1 : i32
      %626 = arith.addi %0, %c1_i32_132 : i32
      %627 = arith.index_cast %626 : i32 to index
      %c32_133 = arith.constant 32 : index
      %628 = memref.load %arg1[%627, %c32_133] : memref<16x128xf32, #tpu.memory_space<smem>>
      %c2_i32_134 = arith.constant 2 : i32
      %629 = arith.addi %0, %c2_i32_134 : i32
      %630 = arith.index_cast %629 : i32 to index
      %c32_135 = arith.constant 32 : index
      %631 = memref.load %arg1[%630, %c32_135] : memref<16x128xf32, #tpu.memory_space<smem>>
      %632 = vector.broadcast %625 : f32 to vector<32x128xf32>
      %633 = arith.subf %2, %632 : vector<32x128xf32>
      %634 = vector.broadcast %628 : f32 to vector<32x128xf32>
      %635 = arith.subf %13, %634 : vector<32x128xf32>
      %636 = arith.mulf %633, %633 : vector<32x128xf32>
      %637 = arith.mulf %635, %635 : vector<32x128xf32>
      %638 = arith.addf %636, %637 : vector<32x128xf32>
      %639 = arith.cmpf olt, %638, %621 : vector<32x128xf32>
      %640 = arith.minimumf %621, %638 : vector<32x128xf32>
      %641 = vector.broadcast %631 : f32 to vector<32x128xf32>
      %642 = arith.select %639, %641, %623 : vector<32x128xi1>, vector<32x128xf32>
      %643 = arith.index_cast %0 : i32 to index
      %c33 = arith.constant 33 : index
      %644 = memref.load %arg1[%643, %c33] : memref<16x128xf32, #tpu.memory_space<smem>>
      %c1_i32_136 = arith.constant 1 : i32
      %645 = arith.addi %0, %c1_i32_136 : i32
      %646 = arith.index_cast %645 : i32 to index
      %c33_137 = arith.constant 33 : index
      %647 = memref.load %arg1[%646, %c33_137] : memref<16x128xf32, #tpu.memory_space<smem>>
      %c2_i32_138 = arith.constant 2 : i32
      %648 = arith.addi %0, %c2_i32_138 : i32
      %649 = arith.index_cast %648 : i32 to index
      %c33_139 = arith.constant 33 : index
      %650 = memref.load %arg1[%649, %c33_139] : memref<16x128xf32, #tpu.memory_space<smem>>
      %651 = vector.broadcast %644 : f32 to vector<32x128xf32>
      %652 = arith.subf %2, %651 : vector<32x128xf32>
      %653 = vector.broadcast %647 : f32 to vector<32x128xf32>
      %654 = arith.subf %13, %653 : vector<32x128xf32>
      %655 = arith.mulf %652, %652 : vector<32x128xf32>
      %656 = arith.mulf %654, %654 : vector<32x128xf32>
      %657 = arith.addf %655, %656 : vector<32x128xf32>
      %658 = arith.cmpf olt, %657, %640 : vector<32x128xf32>
      %659 = arith.minimumf %640, %657 : vector<32x128xf32>
      %660 = vector.broadcast %650 : f32 to vector<32x128xf32>
      %661 = arith.select %658, %660, %642 : vector<32x128xi1>, vector<32x128xf32>
      %662 = arith.index_cast %0 : i32 to index
      %c34 = arith.constant 34 : index
      %663 = memref.load %arg1[%662, %c34] : memref<16x128xf32, #tpu.memory_space<smem>>
      %c1_i32_140 = arith.constant 1 : i32
      %664 = arith.addi %0, %c1_i32_140 : i32
      %665 = arith.index_cast %664 : i32 to index
      %c34_141 = arith.constant 34 : index
      %666 = memref.load %arg1[%665, %c34_141] : memref<16x128xf32, #tpu.memory_space<smem>>
      %c2_i32_142 = arith.constant 2 : i32
      %667 = arith.addi %0, %c2_i32_142 : i32
      %668 = arith.index_cast %667 : i32 to index
      %c34_143 = arith.constant 34 : index
      %669 = memref.load %arg1[%668, %c34_143] : memref<16x128xf32, #tpu.memory_space<smem>>
      %670 = vector.broadcast %663 : f32 to vector<32x128xf32>
      %671 = arith.subf %2, %670 : vector<32x128xf32>
      %672 = vector.broadcast %666 : f32 to vector<32x128xf32>
      %673 = arith.subf %13, %672 : vector<32x128xf32>
      %674 = arith.mulf %671, %671 : vector<32x128xf32>
      %675 = arith.mulf %673, %673 : vector<32x128xf32>
      %676 = arith.addf %674, %675 : vector<32x128xf32>
      %677 = arith.cmpf olt, %676, %659 : vector<32x128xf32>
      %678 = arith.minimumf %659, %676 : vector<32x128xf32>
      %679 = vector.broadcast %669 : f32 to vector<32x128xf32>
      %680 = arith.select %677, %679, %661 : vector<32x128xi1>, vector<32x128xf32>
      %681 = arith.index_cast %0 : i32 to index
      %c35 = arith.constant 35 : index
      %682 = memref.load %arg1[%681, %c35] : memref<16x128xf32, #tpu.memory_space<smem>>
      %c1_i32_144 = arith.constant 1 : i32
      %683 = arith.addi %0, %c1_i32_144 : i32
      %684 = arith.index_cast %683 : i32 to index
      %c35_145 = arith.constant 35 : index
      %685 = memref.load %arg1[%684, %c35_145] : memref<16x128xf32, #tpu.memory_space<smem>>
      %c2_i32_146 = arith.constant 2 : i32
      %686 = arith.addi %0, %c2_i32_146 : i32
      %687 = arith.index_cast %686 : i32 to index
      %c35_147 = arith.constant 35 : index
      %688 = memref.load %arg1[%687, %c35_147] : memref<16x128xf32, #tpu.memory_space<smem>>
      %689 = vector.broadcast %682 : f32 to vector<32x128xf32>
      %690 = arith.subf %2, %689 : vector<32x128xf32>
      %691 = vector.broadcast %685 : f32 to vector<32x128xf32>
      %692 = arith.subf %13, %691 : vector<32x128xf32>
      %693 = arith.mulf %690, %690 : vector<32x128xf32>
      %694 = arith.mulf %692, %692 : vector<32x128xf32>
      %695 = arith.addf %693, %694 : vector<32x128xf32>
      %696 = arith.cmpf olt, %695, %678 : vector<32x128xf32>
      %697 = arith.minimumf %678, %695 : vector<32x128xf32>
      %698 = vector.broadcast %688 : f32 to vector<32x128xf32>
      %699 = arith.select %696, %698, %680 : vector<32x128xi1>, vector<32x128xf32>
      %700 = arith.index_cast %0 : i32 to index
      %c36 = arith.constant 36 : index
      %701 = memref.load %arg1[%700, %c36] : memref<16x128xf32, #tpu.memory_space<smem>>
      %c1_i32_148 = arith.constant 1 : i32
      %702 = arith.addi %0, %c1_i32_148 : i32
      %703 = arith.index_cast %702 : i32 to index
      %c36_149 = arith.constant 36 : index
      %704 = memref.load %arg1[%703, %c36_149] : memref<16x128xf32, #tpu.memory_space<smem>>
      %c2_i32_150 = arith.constant 2 : i32
      %705 = arith.addi %0, %c2_i32_150 : i32
      %706 = arith.index_cast %705 : i32 to index
      %c36_151 = arith.constant 36 : index
      %707 = memref.load %arg1[%706, %c36_151] : memref<16x128xf32, #tpu.memory_space<smem>>
      %708 = vector.broadcast %701 : f32 to vector<32x128xf32>
      %709 = arith.subf %2, %708 : vector<32x128xf32>
      %710 = vector.broadcast %704 : f32 to vector<32x128xf32>
      %711 = arith.subf %13, %710 : vector<32x128xf32>
      %712 = arith.mulf %709, %709 : vector<32x128xf32>
      %713 = arith.mulf %711, %711 : vector<32x128xf32>
      %714 = arith.addf %712, %713 : vector<32x128xf32>
      %715 = arith.cmpf olt, %714, %697 : vector<32x128xf32>
      %716 = arith.minimumf %697, %714 : vector<32x128xf32>
      %717 = vector.broadcast %707 : f32 to vector<32x128xf32>
      %718 = arith.select %715, %717, %699 : vector<32x128xi1>, vector<32x128xf32>
      %719 = arith.index_cast %0 : i32 to index
      %c37 = arith.constant 37 : index
      %720 = memref.load %arg1[%719, %c37] : memref<16x128xf32, #tpu.memory_space<smem>>
      %c1_i32_152 = arith.constant 1 : i32
      %721 = arith.addi %0, %c1_i32_152 : i32
      %722 = arith.index_cast %721 : i32 to index
      %c37_153 = arith.constant 37 : index
      %723 = memref.load %arg1[%722, %c37_153] : memref<16x128xf32, #tpu.memory_space<smem>>
      %c2_i32_154 = arith.constant 2 : i32
      %724 = arith.addi %0, %c2_i32_154 : i32
      %725 = arith.index_cast %724 : i32 to index
      %c37_155 = arith.constant 37 : index
      %726 = memref.load %arg1[%725, %c37_155] : memref<16x128xf32, #tpu.memory_space<smem>>
      %727 = vector.broadcast %720 : f32 to vector<32x128xf32>
      %728 = arith.subf %2, %727 : vector<32x128xf32>
      %729 = vector.broadcast %723 : f32 to vector<32x128xf32>
      %730 = arith.subf %13, %729 : vector<32x128xf32>
      %731 = arith.mulf %728, %728 : vector<32x128xf32>
      %732 = arith.mulf %730, %730 : vector<32x128xf32>
      %733 = arith.addf %731, %732 : vector<32x128xf32>
      %734 = arith.cmpf olt, %733, %716 : vector<32x128xf32>
      %735 = arith.minimumf %716, %733 : vector<32x128xf32>
      %736 = vector.broadcast %726 : f32 to vector<32x128xf32>
      %737 = arith.select %734, %736, %718 : vector<32x128xi1>, vector<32x128xf32>
      %738 = arith.index_cast %0 : i32 to index
      %c38 = arith.constant 38 : index
      %739 = memref.load %arg1[%738, %c38] : memref<16x128xf32, #tpu.memory_space<smem>>
      %c1_i32_156 = arith.constant 1 : i32
      %740 = arith.addi %0, %c1_i32_156 : i32
      %741 = arith.index_cast %740 : i32 to index
      %c38_157 = arith.constant 38 : index
      %742 = memref.load %arg1[%741, %c38_157] : memref<16x128xf32, #tpu.memory_space<smem>>
      %c2_i32_158 = arith.constant 2 : i32
      %743 = arith.addi %0, %c2_i32_158 : i32
      %744 = arith.index_cast %743 : i32 to index
      %c38_159 = arith.constant 38 : index
      %745 = memref.load %arg1[%744, %c38_159] : memref<16x128xf32, #tpu.memory_space<smem>>
      %746 = vector.broadcast %739 : f32 to vector<32x128xf32>
      %747 = arith.subf %2, %746 : vector<32x128xf32>
      %748 = vector.broadcast %742 : f32 to vector<32x128xf32>
      %749 = arith.subf %13, %748 : vector<32x128xf32>
      %750 = arith.mulf %747, %747 : vector<32x128xf32>
      %751 = arith.mulf %749, %749 : vector<32x128xf32>
      %752 = arith.addf %750, %751 : vector<32x128xf32>
      %753 = arith.cmpf olt, %752, %735 : vector<32x128xf32>
      %754 = arith.minimumf %735, %752 : vector<32x128xf32>
      %755 = vector.broadcast %745 : f32 to vector<32x128xf32>
      %756 = arith.select %753, %755, %737 : vector<32x128xi1>, vector<32x128xf32>
      %757 = arith.index_cast %0 : i32 to index
      %c39 = arith.constant 39 : index
      %758 = memref.load %arg1[%757, %c39] : memref<16x128xf32, #tpu.memory_space<smem>>
      %c1_i32_160 = arith.constant 1 : i32
      %759 = arith.addi %0, %c1_i32_160 : i32
      %760 = arith.index_cast %759 : i32 to index
      %c39_161 = arith.constant 39 : index
      %761 = memref.load %arg1[%760, %c39_161] : memref<16x128xf32, #tpu.memory_space<smem>>
      %c2_i32_162 = arith.constant 2 : i32
      %762 = arith.addi %0, %c2_i32_162 : i32
      %763 = arith.index_cast %762 : i32 to index
      %c39_163 = arith.constant 39 : index
      %764 = memref.load %arg1[%763, %c39_163] : memref<16x128xf32, #tpu.memory_space<smem>>
      %765 = vector.broadcast %758 : f32 to vector<32x128xf32>
      %766 = arith.subf %2, %765 : vector<32x128xf32>
      %767 = vector.broadcast %761 : f32 to vector<32x128xf32>
      %768 = arith.subf %13, %767 : vector<32x128xf32>
      %769 = arith.mulf %766, %766 : vector<32x128xf32>
      %770 = arith.mulf %768, %768 : vector<32x128xf32>
      %771 = arith.addf %769, %770 : vector<32x128xf32>
      %772 = arith.cmpf olt, %771, %754 : vector<32x128xf32>
      %773 = arith.minimumf %754, %771 : vector<32x128xf32>
      %774 = vector.broadcast %764 : f32 to vector<32x128xf32>
      %775 = arith.select %772, %774, %756 : vector<32x128xi1>, vector<32x128xf32>
      %776 = arith.index_cast %0 : i32 to index
      %c40 = arith.constant 40 : index
      %777 = memref.load %arg1[%776, %c40] : memref<16x128xf32, #tpu.memory_space<smem>>
      %c1_i32_164 = arith.constant 1 : i32
      %778 = arith.addi %0, %c1_i32_164 : i32
      %779 = arith.index_cast %778 : i32 to index
      %c40_165 = arith.constant 40 : index
      %780 = memref.load %arg1[%779, %c40_165] : memref<16x128xf32, #tpu.memory_space<smem>>
      %c2_i32_166 = arith.constant 2 : i32
      %781 = arith.addi %0, %c2_i32_166 : i32
      %782 = arith.index_cast %781 : i32 to index
      %c40_167 = arith.constant 40 : index
      %783 = memref.load %arg1[%782, %c40_167] : memref<16x128xf32, #tpu.memory_space<smem>>
      %784 = vector.broadcast %777 : f32 to vector<32x128xf32>
      %785 = arith.subf %2, %784 : vector<32x128xf32>
      %786 = vector.broadcast %780 : f32 to vector<32x128xf32>
      %787 = arith.subf %13, %786 : vector<32x128xf32>
      %788 = arith.mulf %785, %785 : vector<32x128xf32>
      %789 = arith.mulf %787, %787 : vector<32x128xf32>
      %790 = arith.addf %788, %789 : vector<32x128xf32>
      %791 = arith.cmpf olt, %790, %773 : vector<32x128xf32>
      %792 = arith.minimumf %773, %790 : vector<32x128xf32>
      %793 = vector.broadcast %783 : f32 to vector<32x128xf32>
      %794 = arith.select %791, %793, %775 : vector<32x128xi1>, vector<32x128xf32>
      %795 = arith.index_cast %0 : i32 to index
      %c41 = arith.constant 41 : index
      %796 = memref.load %arg1[%795, %c41] : memref<16x128xf32, #tpu.memory_space<smem>>
      %c1_i32_168 = arith.constant 1 : i32
      %797 = arith.addi %0, %c1_i32_168 : i32
      %798 = arith.index_cast %797 : i32 to index
      %c41_169 = arith.constant 41 : index
      %799 = memref.load %arg1[%798, %c41_169] : memref<16x128xf32, #tpu.memory_space<smem>>
      %c2_i32_170 = arith.constant 2 : i32
      %800 = arith.addi %0, %c2_i32_170 : i32
      %801 = arith.index_cast %800 : i32 to index
      %c41_171 = arith.constant 41 : index
      %802 = memref.load %arg1[%801, %c41_171] : memref<16x128xf32, #tpu.memory_space<smem>>
      %803 = vector.broadcast %796 : f32 to vector<32x128xf32>
      %804 = arith.subf %2, %803 : vector<32x128xf32>
      %805 = vector.broadcast %799 : f32 to vector<32x128xf32>
      %806 = arith.subf %13, %805 : vector<32x128xf32>
      %807 = arith.mulf %804, %804 : vector<32x128xf32>
      %808 = arith.mulf %806, %806 : vector<32x128xf32>
      %809 = arith.addf %807, %808 : vector<32x128xf32>
      %810 = arith.cmpf olt, %809, %792 : vector<32x128xf32>
      %811 = arith.minimumf %792, %809 : vector<32x128xf32>
      %812 = vector.broadcast %802 : f32 to vector<32x128xf32>
      %813 = arith.select %810, %812, %794 : vector<32x128xi1>, vector<32x128xf32>
      %814 = arith.index_cast %0 : i32 to index
      %c42 = arith.constant 42 : index
      %815 = memref.load %arg1[%814, %c42] : memref<16x128xf32, #tpu.memory_space<smem>>
      %c1_i32_172 = arith.constant 1 : i32
      %816 = arith.addi %0, %c1_i32_172 : i32
      %817 = arith.index_cast %816 : i32 to index
      %c42_173 = arith.constant 42 : index
      %818 = memref.load %arg1[%817, %c42_173] : memref<16x128xf32, #tpu.memory_space<smem>>
      %c2_i32_174 = arith.constant 2 : i32
      %819 = arith.addi %0, %c2_i32_174 : i32
      %820 = arith.index_cast %819 : i32 to index
      %c42_175 = arith.constant 42 : index
      %821 = memref.load %arg1[%820, %c42_175] : memref<16x128xf32, #tpu.memory_space<smem>>
      %822 = vector.broadcast %815 : f32 to vector<32x128xf32>
      %823 = arith.subf %2, %822 : vector<32x128xf32>
      %824 = vector.broadcast %818 : f32 to vector<32x128xf32>
      %825 = arith.subf %13, %824 : vector<32x128xf32>
      %826 = arith.mulf %823, %823 : vector<32x128xf32>
      %827 = arith.mulf %825, %825 : vector<32x128xf32>
      %828 = arith.addf %826, %827 : vector<32x128xf32>
      %829 = arith.cmpf olt, %828, %811 : vector<32x128xf32>
      %830 = arith.minimumf %811, %828 : vector<32x128xf32>
      %831 = vector.broadcast %821 : f32 to vector<32x128xf32>
      %832 = arith.select %829, %831, %813 : vector<32x128xi1>, vector<32x128xf32>
      %833 = arith.index_cast %0 : i32 to index
      %c43 = arith.constant 43 : index
      %834 = memref.load %arg1[%833, %c43] : memref<16x128xf32, #tpu.memory_space<smem>>
      %c1_i32_176 = arith.constant 1 : i32
      %835 = arith.addi %0, %c1_i32_176 : i32
      %836 = arith.index_cast %835 : i32 to index
      %c43_177 = arith.constant 43 : index
      %837 = memref.load %arg1[%836, %c43_177] : memref<16x128xf32, #tpu.memory_space<smem>>
      %c2_i32_178 = arith.constant 2 : i32
      %838 = arith.addi %0, %c2_i32_178 : i32
      %839 = arith.index_cast %838 : i32 to index
      %c43_179 = arith.constant 43 : index
      %840 = memref.load %arg1[%839, %c43_179] : memref<16x128xf32, #tpu.memory_space<smem>>
      %841 = vector.broadcast %834 : f32 to vector<32x128xf32>
      %842 = arith.subf %2, %841 : vector<32x128xf32>
      %843 = vector.broadcast %837 : f32 to vector<32x128xf32>
      %844 = arith.subf %13, %843 : vector<32x128xf32>
      %845 = arith.mulf %842, %842 : vector<32x128xf32>
      %846 = arith.mulf %844, %844 : vector<32x128xf32>
      %847 = arith.addf %845, %846 : vector<32x128xf32>
      %848 = arith.cmpf olt, %847, %830 : vector<32x128xf32>
      %849 = arith.minimumf %830, %847 : vector<32x128xf32>
      %850 = vector.broadcast %840 : f32 to vector<32x128xf32>
      %851 = arith.select %848, %850, %832 : vector<32x128xi1>, vector<32x128xf32>
      %852 = arith.index_cast %0 : i32 to index
      %c44 = arith.constant 44 : index
      %853 = memref.load %arg1[%852, %c44] : memref<16x128xf32, #tpu.memory_space<smem>>
      %c1_i32_180 = arith.constant 1 : i32
      %854 = arith.addi %0, %c1_i32_180 : i32
      %855 = arith.index_cast %854 : i32 to index
      %c44_181 = arith.constant 44 : index
      %856 = memref.load %arg1[%855, %c44_181] : memref<16x128xf32, #tpu.memory_space<smem>>
      %c2_i32_182 = arith.constant 2 : i32
      %857 = arith.addi %0, %c2_i32_182 : i32
      %858 = arith.index_cast %857 : i32 to index
      %c44_183 = arith.constant 44 : index
      %859 = memref.load %arg1[%858, %c44_183] : memref<16x128xf32, #tpu.memory_space<smem>>
      %860 = vector.broadcast %853 : f32 to vector<32x128xf32>
      %861 = arith.subf %2, %860 : vector<32x128xf32>
      %862 = vector.broadcast %856 : f32 to vector<32x128xf32>
      %863 = arith.subf %13, %862 : vector<32x128xf32>
      %864 = arith.mulf %861, %861 : vector<32x128xf32>
      %865 = arith.mulf %863, %863 : vector<32x128xf32>
      %866 = arith.addf %864, %865 : vector<32x128xf32>
      %867 = arith.cmpf olt, %866, %849 : vector<32x128xf32>
      %868 = arith.minimumf %849, %866 : vector<32x128xf32>
      %869 = vector.broadcast %859 : f32 to vector<32x128xf32>
      %870 = arith.select %867, %869, %851 : vector<32x128xi1>, vector<32x128xf32>
      %871 = arith.index_cast %0 : i32 to index
      %c45 = arith.constant 45 : index
      %872 = memref.load %arg1[%871, %c45] : memref<16x128xf32, #tpu.memory_space<smem>>
      %c1_i32_184 = arith.constant 1 : i32
      %873 = arith.addi %0, %c1_i32_184 : i32
      %874 = arith.index_cast %873 : i32 to index
      %c45_185 = arith.constant 45 : index
      %875 = memref.load %arg1[%874, %c45_185] : memref<16x128xf32, #tpu.memory_space<smem>>
      %c2_i32_186 = arith.constant 2 : i32
      %876 = arith.addi %0, %c2_i32_186 : i32
      %877 = arith.index_cast %876 : i32 to index
      %c45_187 = arith.constant 45 : index
      %878 = memref.load %arg1[%877, %c45_187] : memref<16x128xf32, #tpu.memory_space<smem>>
      %879 = vector.broadcast %872 : f32 to vector<32x128xf32>
      %880 = arith.subf %2, %879 : vector<32x128xf32>
      %881 = vector.broadcast %875 : f32 to vector<32x128xf32>
      %882 = arith.subf %13, %881 : vector<32x128xf32>
      %883 = arith.mulf %880, %880 : vector<32x128xf32>
      %884 = arith.mulf %882, %882 : vector<32x128xf32>
      %885 = arith.addf %883, %884 : vector<32x128xf32>
      %886 = arith.cmpf olt, %885, %868 : vector<32x128xf32>
      %887 = arith.minimumf %868, %885 : vector<32x128xf32>
      %888 = vector.broadcast %878 : f32 to vector<32x128xf32>
      %889 = arith.select %886, %888, %870 : vector<32x128xi1>, vector<32x128xf32>
      %890 = arith.index_cast %0 : i32 to index
      %c46 = arith.constant 46 : index
      %891 = memref.load %arg1[%890, %c46] : memref<16x128xf32, #tpu.memory_space<smem>>
      %c1_i32_188 = arith.constant 1 : i32
      %892 = arith.addi %0, %c1_i32_188 : i32
      %893 = arith.index_cast %892 : i32 to index
      %c46_189 = arith.constant 46 : index
      %894 = memref.load %arg1[%893, %c46_189] : memref<16x128xf32, #tpu.memory_space<smem>>
      %c2_i32_190 = arith.constant 2 : i32
      %895 = arith.addi %0, %c2_i32_190 : i32
      %896 = arith.index_cast %895 : i32 to index
      %c46_191 = arith.constant 46 : index
      %897 = memref.load %arg1[%896, %c46_191] : memref<16x128xf32, #tpu.memory_space<smem>>
      %898 = vector.broadcast %891 : f32 to vector<32x128xf32>
      %899 = arith.subf %2, %898 : vector<32x128xf32>
      %900 = vector.broadcast %894 : f32 to vector<32x128xf32>
      %901 = arith.subf %13, %900 : vector<32x128xf32>
      %902 = arith.mulf %899, %899 : vector<32x128xf32>
      %903 = arith.mulf %901, %901 : vector<32x128xf32>
      %904 = arith.addf %902, %903 : vector<32x128xf32>
      %905 = arith.cmpf olt, %904, %887 : vector<32x128xf32>
      %906 = arith.minimumf %887, %904 : vector<32x128xf32>
      %907 = vector.broadcast %897 : f32 to vector<32x128xf32>
      %908 = arith.select %905, %907, %889 : vector<32x128xi1>, vector<32x128xf32>
      %909 = arith.index_cast %0 : i32 to index
      %c47 = arith.constant 47 : index
      %910 = memref.load %arg1[%909, %c47] : memref<16x128xf32, #tpu.memory_space<smem>>
      %c1_i32_192 = arith.constant 1 : i32
      %911 = arith.addi %0, %c1_i32_192 : i32
      %912 = arith.index_cast %911 : i32 to index
      %c47_193 = arith.constant 47 : index
      %913 = memref.load %arg1[%912, %c47_193] : memref<16x128xf32, #tpu.memory_space<smem>>
      %c2_i32_194 = arith.constant 2 : i32
      %914 = arith.addi %0, %c2_i32_194 : i32
      %915 = arith.index_cast %914 : i32 to index
      %c47_195 = arith.constant 47 : index
      %916 = memref.load %arg1[%915, %c47_195] : memref<16x128xf32, #tpu.memory_space<smem>>
      %917 = vector.broadcast %910 : f32 to vector<32x128xf32>
      %918 = arith.subf %2, %917 : vector<32x128xf32>
      %919 = vector.broadcast %913 : f32 to vector<32x128xf32>
      %920 = arith.subf %13, %919 : vector<32x128xf32>
      %921 = arith.mulf %918, %918 : vector<32x128xf32>
      %922 = arith.mulf %920, %920 : vector<32x128xf32>
      %923 = arith.addf %921, %922 : vector<32x128xf32>
      %924 = arith.cmpf olt, %923, %906 : vector<32x128xf32>
      %925 = arith.minimumf %906, %923 : vector<32x128xf32>
      %926 = vector.broadcast %916 : f32 to vector<32x128xf32>
      %927 = arith.select %924, %926, %908 : vector<32x128xi1>, vector<32x128xf32>
      %928 = arith.index_cast %0 : i32 to index
      %c48 = arith.constant 48 : index
      %929 = memref.load %arg1[%928, %c48] : memref<16x128xf32, #tpu.memory_space<smem>>
      %c1_i32_196 = arith.constant 1 : i32
      %930 = arith.addi %0, %c1_i32_196 : i32
      %931 = arith.index_cast %930 : i32 to index
      %c48_197 = arith.constant 48 : index
      %932 = memref.load %arg1[%931, %c48_197] : memref<16x128xf32, #tpu.memory_space<smem>>
      %c2_i32_198 = arith.constant 2 : i32
      %933 = arith.addi %0, %c2_i32_198 : i32
      %934 = arith.index_cast %933 : i32 to index
      %c48_199 = arith.constant 48 : index
      %935 = memref.load %arg1[%934, %c48_199] : memref<16x128xf32, #tpu.memory_space<smem>>
      %936 = vector.broadcast %929 : f32 to vector<32x128xf32>
      %937 = arith.subf %2, %936 : vector<32x128xf32>
      %938 = vector.broadcast %932 : f32 to vector<32x128xf32>
      %939 = arith.subf %13, %938 : vector<32x128xf32>
      %940 = arith.mulf %937, %937 : vector<32x128xf32>
      %941 = arith.mulf %939, %939 : vector<32x128xf32>
      %942 = arith.addf %940, %941 : vector<32x128xf32>
      %943 = arith.cmpf olt, %942, %925 : vector<32x128xf32>
      %944 = arith.minimumf %925, %942 : vector<32x128xf32>
      %945 = vector.broadcast %935 : f32 to vector<32x128xf32>
      %946 = arith.select %943, %945, %927 : vector<32x128xi1>, vector<32x128xf32>
      %947 = arith.index_cast %0 : i32 to index
      %c49 = arith.constant 49 : index
      %948 = memref.load %arg1[%947, %c49] : memref<16x128xf32, #tpu.memory_space<smem>>
      %c1_i32_200 = arith.constant 1 : i32
      %949 = arith.addi %0, %c1_i32_200 : i32
      %950 = arith.index_cast %949 : i32 to index
      %c49_201 = arith.constant 49 : index
      %951 = memref.load %arg1[%950, %c49_201] : memref<16x128xf32, #tpu.memory_space<smem>>
      %c2_i32_202 = arith.constant 2 : i32
      %952 = arith.addi %0, %c2_i32_202 : i32
      %953 = arith.index_cast %952 : i32 to index
      %c49_203 = arith.constant 49 : index
      %954 = memref.load %arg1[%953, %c49_203] : memref<16x128xf32, #tpu.memory_space<smem>>
      %955 = vector.broadcast %948 : f32 to vector<32x128xf32>
      %956 = arith.subf %2, %955 : vector<32x128xf32>
      %957 = vector.broadcast %951 : f32 to vector<32x128xf32>
      %958 = arith.subf %13, %957 : vector<32x128xf32>
      %959 = arith.mulf %956, %956 : vector<32x128xf32>
      %960 = arith.mulf %958, %958 : vector<32x128xf32>
      %961 = arith.addf %959, %960 : vector<32x128xf32>
      %962 = arith.cmpf olt, %961, %944 : vector<32x128xf32>
      %963 = arith.minimumf %944, %961 : vector<32x128xf32>
      %964 = vector.broadcast %954 : f32 to vector<32x128xf32>
      %965 = arith.select %962, %964, %946 : vector<32x128xi1>, vector<32x128xf32>
      %966 = arith.index_cast %0 : i32 to index
      %c50 = arith.constant 50 : index
      %967 = memref.load %arg1[%966, %c50] : memref<16x128xf32, #tpu.memory_space<smem>>
      %c1_i32_204 = arith.constant 1 : i32
      %968 = arith.addi %0, %c1_i32_204 : i32
      %969 = arith.index_cast %968 : i32 to index
      %c50_205 = arith.constant 50 : index
      %970 = memref.load %arg1[%969, %c50_205] : memref<16x128xf32, #tpu.memory_space<smem>>
      %c2_i32_206 = arith.constant 2 : i32
      %971 = arith.addi %0, %c2_i32_206 : i32
      %972 = arith.index_cast %971 : i32 to index
      %c50_207 = arith.constant 50 : index
      %973 = memref.load %arg1[%972, %c50_207] : memref<16x128xf32, #tpu.memory_space<smem>>
      %974 = vector.broadcast %967 : f32 to vector<32x128xf32>
      %975 = arith.subf %2, %974 : vector<32x128xf32>
      %976 = vector.broadcast %970 : f32 to vector<32x128xf32>
      %977 = arith.subf %13, %976 : vector<32x128xf32>
      %978 = arith.mulf %975, %975 : vector<32x128xf32>
      %979 = arith.mulf %977, %977 : vector<32x128xf32>
      %980 = arith.addf %978, %979 : vector<32x128xf32>
      %981 = arith.cmpf olt, %980, %963 : vector<32x128xf32>
      %982 = arith.minimumf %963, %980 : vector<32x128xf32>
      %983 = vector.broadcast %973 : f32 to vector<32x128xf32>
      %984 = arith.select %981, %983, %965 : vector<32x128xi1>, vector<32x128xf32>
      %985 = arith.index_cast %0 : i32 to index
      %c51 = arith.constant 51 : index
      %986 = memref.load %arg1[%985, %c51] : memref<16x128xf32, #tpu.memory_space<smem>>
      %c1_i32_208 = arith.constant 1 : i32
      %987 = arith.addi %0, %c1_i32_208 : i32
      %988 = arith.index_cast %987 : i32 to index
      %c51_209 = arith.constant 51 : index
      %989 = memref.load %arg1[%988, %c51_209] : memref<16x128xf32, #tpu.memory_space<smem>>
      %c2_i32_210 = arith.constant 2 : i32
      %990 = arith.addi %0, %c2_i32_210 : i32
      %991 = arith.index_cast %990 : i32 to index
      %c51_211 = arith.constant 51 : index
      %992 = memref.load %arg1[%991, %c51_211] : memref<16x128xf32, #tpu.memory_space<smem>>
      %993 = vector.broadcast %986 : f32 to vector<32x128xf32>
      %994 = arith.subf %2, %993 : vector<32x128xf32>
      %995 = vector.broadcast %989 : f32 to vector<32x128xf32>
      %996 = arith.subf %13, %995 : vector<32x128xf32>
      %997 = arith.mulf %994, %994 : vector<32x128xf32>
      %998 = arith.mulf %996, %996 : vector<32x128xf32>
      %999 = arith.addf %997, %998 : vector<32x128xf32>
      %1000 = arith.cmpf olt, %999, %982 : vector<32x128xf32>
      %1001 = arith.minimumf %982, %999 : vector<32x128xf32>
      %1002 = vector.broadcast %992 : f32 to vector<32x128xf32>
      %1003 = arith.select %1000, %1002, %984 : vector<32x128xi1>, vector<32x128xf32>
      %1004 = arith.index_cast %0 : i32 to index
      %c52 = arith.constant 52 : index
      %1005 = memref.load %arg1[%1004, %c52] : memref<16x128xf32, #tpu.memory_space<smem>>
      %c1_i32_212 = arith.constant 1 : i32
      %1006 = arith.addi %0, %c1_i32_212 : i32
      %1007 = arith.index_cast %1006 : i32 to index
      %c52_213 = arith.constant 52 : index
      %1008 = memref.load %arg1[%1007, %c52_213] : memref<16x128xf32, #tpu.memory_space<smem>>
      %c2_i32_214 = arith.constant 2 : i32
      %1009 = arith.addi %0, %c2_i32_214 : i32
      %1010 = arith.index_cast %1009 : i32 to index
      %c52_215 = arith.constant 52 : index
      %1011 = memref.load %arg1[%1010, %c52_215] : memref<16x128xf32, #tpu.memory_space<smem>>
      %1012 = vector.broadcast %1005 : f32 to vector<32x128xf32>
      %1013 = arith.subf %2, %1012 : vector<32x128xf32>
      %1014 = vector.broadcast %1008 : f32 to vector<32x128xf32>
      %1015 = arith.subf %13, %1014 : vector<32x128xf32>
      %1016 = arith.mulf %1013, %1013 : vector<32x128xf32>
      %1017 = arith.mulf %1015, %1015 : vector<32x128xf32>
      %1018 = arith.addf %1016, %1017 : vector<32x128xf32>
      %1019 = arith.cmpf olt, %1018, %1001 : vector<32x128xf32>
      %1020 = arith.minimumf %1001, %1018 : vector<32x128xf32>
      %1021 = vector.broadcast %1011 : f32 to vector<32x128xf32>
      %1022 = arith.select %1019, %1021, %1003 : vector<32x128xi1>, vector<32x128xf32>
      %1023 = arith.index_cast %0 : i32 to index
      %c53 = arith.constant 53 : index
      %1024 = memref.load %arg1[%1023, %c53] : memref<16x128xf32, #tpu.memory_space<smem>>
      %c1_i32_216 = arith.constant 1 : i32
      %1025 = arith.addi %0, %c1_i32_216 : i32
      %1026 = arith.index_cast %1025 : i32 to index
      %c53_217 = arith.constant 53 : index
      %1027 = memref.load %arg1[%1026, %c53_217] : memref<16x128xf32, #tpu.memory_space<smem>>
      %c2_i32_218 = arith.constant 2 : i32
      %1028 = arith.addi %0, %c2_i32_218 : i32
      %1029 = arith.index_cast %1028 : i32 to index
      %c53_219 = arith.constant 53 : index
      %1030 = memref.load %arg1[%1029, %c53_219] : memref<16x128xf32, #tpu.memory_space<smem>>
      %1031 = vector.broadcast %1024 : f32 to vector<32x128xf32>
      %1032 = arith.subf %2, %1031 : vector<32x128xf32>
      %1033 = vector.broadcast %1027 : f32 to vector<32x128xf32>
      %1034 = arith.subf %13, %1033 : vector<32x128xf32>
      %1035 = arith.mulf %1032, %1032 : vector<32x128xf32>
      %1036 = arith.mulf %1034, %1034 : vector<32x128xf32>
      %1037 = arith.addf %1035, %1036 : vector<32x128xf32>
      %1038 = arith.cmpf olt, %1037, %1020 : vector<32x128xf32>
      %1039 = arith.minimumf %1020, %1037 : vector<32x128xf32>
      %1040 = vector.broadcast %1030 : f32 to vector<32x128xf32>
      %1041 = arith.select %1038, %1040, %1022 : vector<32x128xi1>, vector<32x128xf32>
      %1042 = arith.index_cast %0 : i32 to index
      %c54 = arith.constant 54 : index
      %1043 = memref.load %arg1[%1042, %c54] : memref<16x128xf32, #tpu.memory_space<smem>>
      %c1_i32_220 = arith.constant 1 : i32
      %1044 = arith.addi %0, %c1_i32_220 : i32
      %1045 = arith.index_cast %1044 : i32 to index
      %c54_221 = arith.constant 54 : index
      %1046 = memref.load %arg1[%1045, %c54_221] : memref<16x128xf32, #tpu.memory_space<smem>>
      %c2_i32_222 = arith.constant 2 : i32
      %1047 = arith.addi %0, %c2_i32_222 : i32
      %1048 = arith.index_cast %1047 : i32 to index
      %c54_223 = arith.constant 54 : index
      %1049 = memref.load %arg1[%1048, %c54_223] : memref<16x128xf32, #tpu.memory_space<smem>>
      %1050 = vector.broadcast %1043 : f32 to vector<32x128xf32>
      %1051 = arith.subf %2, %1050 : vector<32x128xf32>
      %1052 = vector.broadcast %1046 : f32 to vector<32x128xf32>
      %1053 = arith.subf %13, %1052 : vector<32x128xf32>
      %1054 = arith.mulf %1051, %1051 : vector<32x128xf32>
      %1055 = arith.mulf %1053, %1053 : vector<32x128xf32>
      %1056 = arith.addf %1054, %1055 : vector<32x128xf32>
      %1057 = arith.cmpf olt, %1056, %1039 : vector<32x128xf32>
      %1058 = arith.minimumf %1039, %1056 : vector<32x128xf32>
      %1059 = vector.broadcast %1049 : f32 to vector<32x128xf32>
      %1060 = arith.select %1057, %1059, %1041 : vector<32x128xi1>, vector<32x128xf32>
      %1061 = arith.index_cast %0 : i32 to index
      %c55 = arith.constant 55 : index
      %1062 = memref.load %arg1[%1061, %c55] : memref<16x128xf32, #tpu.memory_space<smem>>
      %c1_i32_224 = arith.constant 1 : i32
      %1063 = arith.addi %0, %c1_i32_224 : i32
      %1064 = arith.index_cast %1063 : i32 to index
      %c55_225 = arith.constant 55 : index
      %1065 = memref.load %arg1[%1064, %c55_225] : memref<16x128xf32, #tpu.memory_space<smem>>
      %c2_i32_226 = arith.constant 2 : i32
      %1066 = arith.addi %0, %c2_i32_226 : i32
      %1067 = arith.index_cast %1066 : i32 to index
      %c55_227 = arith.constant 55 : index
      %1068 = memref.load %arg1[%1067, %c55_227] : memref<16x128xf32, #tpu.memory_space<smem>>
      %1069 = vector.broadcast %1062 : f32 to vector<32x128xf32>
      %1070 = arith.subf %2, %1069 : vector<32x128xf32>
      %1071 = vector.broadcast %1065 : f32 to vector<32x128xf32>
      %1072 = arith.subf %13, %1071 : vector<32x128xf32>
      %1073 = arith.mulf %1070, %1070 : vector<32x128xf32>
      %1074 = arith.mulf %1072, %1072 : vector<32x128xf32>
      %1075 = arith.addf %1073, %1074 : vector<32x128xf32>
      %1076 = arith.cmpf olt, %1075, %1058 : vector<32x128xf32>
      %1077 = arith.minimumf %1058, %1075 : vector<32x128xf32>
      %1078 = vector.broadcast %1068 : f32 to vector<32x128xf32>
      %1079 = arith.select %1076, %1078, %1060 : vector<32x128xi1>, vector<32x128xf32>
      %1080 = arith.index_cast %0 : i32 to index
      %c56 = arith.constant 56 : index
      %1081 = memref.load %arg1[%1080, %c56] : memref<16x128xf32, #tpu.memory_space<smem>>
      %c1_i32_228 = arith.constant 1 : i32
      %1082 = arith.addi %0, %c1_i32_228 : i32
      %1083 = arith.index_cast %1082 : i32 to index
      %c56_229 = arith.constant 56 : index
      %1084 = memref.load %arg1[%1083, %c56_229] : memref<16x128xf32, #tpu.memory_space<smem>>
      %c2_i32_230 = arith.constant 2 : i32
      %1085 = arith.addi %0, %c2_i32_230 : i32
      %1086 = arith.index_cast %1085 : i32 to index
      %c56_231 = arith.constant 56 : index
      %1087 = memref.load %arg1[%1086, %c56_231] : memref<16x128xf32, #tpu.memory_space<smem>>
      %1088 = vector.broadcast %1081 : f32 to vector<32x128xf32>
      %1089 = arith.subf %2, %1088 : vector<32x128xf32>
      %1090 = vector.broadcast %1084 : f32 to vector<32x128xf32>
      %1091 = arith.subf %13, %1090 : vector<32x128xf32>
      %1092 = arith.mulf %1089, %1089 : vector<32x128xf32>
      %1093 = arith.mulf %1091, %1091 : vector<32x128xf32>
      %1094 = arith.addf %1092, %1093 : vector<32x128xf32>
      %1095 = arith.cmpf olt, %1094, %1077 : vector<32x128xf32>
      %1096 = arith.minimumf %1077, %1094 : vector<32x128xf32>
      %1097 = vector.broadcast %1087 : f32 to vector<32x128xf32>
      %1098 = arith.select %1095, %1097, %1079 : vector<32x128xi1>, vector<32x128xf32>
      %1099 = arith.index_cast %0 : i32 to index
      %c57 = arith.constant 57 : index
      %1100 = memref.load %arg1[%1099, %c57] : memref<16x128xf32, #tpu.memory_space<smem>>
      %c1_i32_232 = arith.constant 1 : i32
      %1101 = arith.addi %0, %c1_i32_232 : i32
      %1102 = arith.index_cast %1101 : i32 to index
      %c57_233 = arith.constant 57 : index
      %1103 = memref.load %arg1[%1102, %c57_233] : memref<16x128xf32, #tpu.memory_space<smem>>
      %c2_i32_234 = arith.constant 2 : i32
      %1104 = arith.addi %0, %c2_i32_234 : i32
      %1105 = arith.index_cast %1104 : i32 to index
      %c57_235 = arith.constant 57 : index
      %1106 = memref.load %arg1[%1105, %c57_235] : memref<16x128xf32, #tpu.memory_space<smem>>
      %1107 = vector.broadcast %1100 : f32 to vector<32x128xf32>
      %1108 = arith.subf %2, %1107 : vector<32x128xf32>
      %1109 = vector.broadcast %1103 : f32 to vector<32x128xf32>
      %1110 = arith.subf %13, %1109 : vector<32x128xf32>
      %1111 = arith.mulf %1108, %1108 : vector<32x128xf32>
      %1112 = arith.mulf %1110, %1110 : vector<32x128xf32>
      %1113 = arith.addf %1111, %1112 : vector<32x128xf32>
      %1114 = arith.cmpf olt, %1113, %1096 : vector<32x128xf32>
      %1115 = arith.minimumf %1096, %1113 : vector<32x128xf32>
      %1116 = vector.broadcast %1106 : f32 to vector<32x128xf32>
      %1117 = arith.select %1114, %1116, %1098 : vector<32x128xi1>, vector<32x128xf32>
      %1118 = arith.index_cast %0 : i32 to index
      %c58 = arith.constant 58 : index
      %1119 = memref.load %arg1[%1118, %c58] : memref<16x128xf32, #tpu.memory_space<smem>>
      %c1_i32_236 = arith.constant 1 : i32
      %1120 = arith.addi %0, %c1_i32_236 : i32
      %1121 = arith.index_cast %1120 : i32 to index
      %c58_237 = arith.constant 58 : index
      %1122 = memref.load %arg1[%1121, %c58_237] : memref<16x128xf32, #tpu.memory_space<smem>>
      %c2_i32_238 = arith.constant 2 : i32
      %1123 = arith.addi %0, %c2_i32_238 : i32
      %1124 = arith.index_cast %1123 : i32 to index
      %c58_239 = arith.constant 58 : index
      %1125 = memref.load %arg1[%1124, %c58_239] : memref<16x128xf32, #tpu.memory_space<smem>>
      %1126 = vector.broadcast %1119 : f32 to vector<32x128xf32>
      %1127 = arith.subf %2, %1126 : vector<32x128xf32>
      %1128 = vector.broadcast %1122 : f32 to vector<32x128xf32>
      %1129 = arith.subf %13, %1128 : vector<32x128xf32>
      %1130 = arith.mulf %1127, %1127 : vector<32x128xf32>
      %1131 = arith.mulf %1129, %1129 : vector<32x128xf32>
      %1132 = arith.addf %1130, %1131 : vector<32x128xf32>
      %1133 = arith.cmpf olt, %1132, %1115 : vector<32x128xf32>
      %1134 = arith.minimumf %1115, %1132 : vector<32x128xf32>
      %1135 = vector.broadcast %1125 : f32 to vector<32x128xf32>
      %1136 = arith.select %1133, %1135, %1117 : vector<32x128xi1>, vector<32x128xf32>
      %1137 = arith.index_cast %0 : i32 to index
      %c59 = arith.constant 59 : index
      %1138 = memref.load %arg1[%1137, %c59] : memref<16x128xf32, #tpu.memory_space<smem>>
      %c1_i32_240 = arith.constant 1 : i32
      %1139 = arith.addi %0, %c1_i32_240 : i32
      %1140 = arith.index_cast %1139 : i32 to index
      %c59_241 = arith.constant 59 : index
      %1141 = memref.load %arg1[%1140, %c59_241] : memref<16x128xf32, #tpu.memory_space<smem>>
      %c2_i32_242 = arith.constant 2 : i32
      %1142 = arith.addi %0, %c2_i32_242 : i32
      %1143 = arith.index_cast %1142 : i32 to index
      %c59_243 = arith.constant 59 : index
      %1144 = memref.load %arg1[%1143, %c59_243] : memref<16x128xf32, #tpu.memory_space<smem>>
      %1145 = vector.broadcast %1138 : f32 to vector<32x128xf32>
      %1146 = arith.subf %2, %1145 : vector<32x128xf32>
      %1147 = vector.broadcast %1141 : f32 to vector<32x128xf32>
      %1148 = arith.subf %13, %1147 : vector<32x128xf32>
      %1149 = arith.mulf %1146, %1146 : vector<32x128xf32>
      %1150 = arith.mulf %1148, %1148 : vector<32x128xf32>
      %1151 = arith.addf %1149, %1150 : vector<32x128xf32>
      %1152 = arith.cmpf olt, %1151, %1134 : vector<32x128xf32>
      %1153 = arith.minimumf %1134, %1151 : vector<32x128xf32>
      %1154 = vector.broadcast %1144 : f32 to vector<32x128xf32>
      %1155 = arith.select %1152, %1154, %1136 : vector<32x128xi1>, vector<32x128xf32>
      %1156 = arith.index_cast %0 : i32 to index
      %c60 = arith.constant 60 : index
      %1157 = memref.load %arg1[%1156, %c60] : memref<16x128xf32, #tpu.memory_space<smem>>
      %c1_i32_244 = arith.constant 1 : i32
      %1158 = arith.addi %0, %c1_i32_244 : i32
      %1159 = arith.index_cast %1158 : i32 to index
      %c60_245 = arith.constant 60 : index
      %1160 = memref.load %arg1[%1159, %c60_245] : memref<16x128xf32, #tpu.memory_space<smem>>
      %c2_i32_246 = arith.constant 2 : i32
      %1161 = arith.addi %0, %c2_i32_246 : i32
      %1162 = arith.index_cast %1161 : i32 to index
      %c60_247 = arith.constant 60 : index
      %1163 = memref.load %arg1[%1162, %c60_247] : memref<16x128xf32, #tpu.memory_space<smem>>
      %1164 = vector.broadcast %1157 : f32 to vector<32x128xf32>
      %1165 = arith.subf %2, %1164 : vector<32x128xf32>
      %1166 = vector.broadcast %1160 : f32 to vector<32x128xf32>
      %1167 = arith.subf %13, %1166 : vector<32x128xf32>
      %1168 = arith.mulf %1165, %1165 : vector<32x128xf32>
      %1169 = arith.mulf %1167, %1167 : vector<32x128xf32>
      %1170 = arith.addf %1168, %1169 : vector<32x128xf32>
      %1171 = arith.cmpf olt, %1170, %1153 : vector<32x128xf32>
      %1172 = arith.minimumf %1153, %1170 : vector<32x128xf32>
      %1173 = vector.broadcast %1163 : f32 to vector<32x128xf32>
      %1174 = arith.select %1171, %1173, %1155 : vector<32x128xi1>, vector<32x128xf32>
      %1175 = arith.index_cast %0 : i32 to index
      %c61 = arith.constant 61 : index
      %1176 = memref.load %arg1[%1175, %c61] : memref<16x128xf32, #tpu.memory_space<smem>>
      %c1_i32_248 = arith.constant 1 : i32
      %1177 = arith.addi %0, %c1_i32_248 : i32
      %1178 = arith.index_cast %1177 : i32 to index
      %c61_249 = arith.constant 61 : index
      %1179 = memref.load %arg1[%1178, %c61_249] : memref<16x128xf32, #tpu.memory_space<smem>>
      %c2_i32_250 = arith.constant 2 : i32
      %1180 = arith.addi %0, %c2_i32_250 : i32
      %1181 = arith.index_cast %1180 : i32 to index
      %c61_251 = arith.constant 61 : index
      %1182 = memref.load %arg1[%1181, %c61_251] : memref<16x128xf32, #tpu.memory_space<smem>>
      %1183 = vector.broadcast %1176 : f32 to vector<32x128xf32>
      %1184 = arith.subf %2, %1183 : vector<32x128xf32>
      %1185 = vector.broadcast %1179 : f32 to vector<32x128xf32>
      %1186 = arith.subf %13, %1185 : vector<32x128xf32>
      %1187 = arith.mulf %1184, %1184 : vector<32x128xf32>
      %1188 = arith.mulf %1186, %1186 : vector<32x128xf32>
      %1189 = arith.addf %1187, %1188 : vector<32x128xf32>
      %1190 = arith.cmpf olt, %1189, %1172 : vector<32x128xf32>
      %1191 = arith.minimumf %1172, %1189 : vector<32x128xf32>
      %1192 = vector.broadcast %1182 : f32 to vector<32x128xf32>
      %1193 = arith.select %1190, %1192, %1174 : vector<32x128xi1>, vector<32x128xf32>
      %1194 = arith.index_cast %0 : i32 to index
      %c62 = arith.constant 62 : index
      %1195 = memref.load %arg1[%1194, %c62] : memref<16x128xf32, #tpu.memory_space<smem>>
      %c1_i32_252 = arith.constant 1 : i32
      %1196 = arith.addi %0, %c1_i32_252 : i32
      %1197 = arith.index_cast %1196 : i32 to index
      %c62_253 = arith.constant 62 : index
      %1198 = memref.load %arg1[%1197, %c62_253] : memref<16x128xf32, #tpu.memory_space<smem>>
      %c2_i32_254 = arith.constant 2 : i32
      %1199 = arith.addi %0, %c2_i32_254 : i32
      %1200 = arith.index_cast %1199 : i32 to index
      %c62_255 = arith.constant 62 : index
      %1201 = memref.load %arg1[%1200, %c62_255] : memref<16x128xf32, #tpu.memory_space<smem>>
      %1202 = vector.broadcast %1195 : f32 to vector<32x128xf32>
      %1203 = arith.subf %2, %1202 : vector<32x128xf32>
      %1204 = vector.broadcast %1198 : f32 to vector<32x128xf32>
      %1205 = arith.subf %13, %1204 : vector<32x128xf32>
      %1206 = arith.mulf %1203, %1203 : vector<32x128xf32>
      %1207 = arith.mulf %1205, %1205 : vector<32x128xf32>
      %1208 = arith.addf %1206, %1207 : vector<32x128xf32>
      %1209 = arith.cmpf olt, %1208, %1191 : vector<32x128xf32>
      %1210 = arith.minimumf %1191, %1208 : vector<32x128xf32>
      %1211 = vector.broadcast %1201 : f32 to vector<32x128xf32>
      %1212 = arith.select %1209, %1211, %1193 : vector<32x128xi1>, vector<32x128xf32>
      %1213 = arith.index_cast %0 : i32 to index
      %c63 = arith.constant 63 : index
      %1214 = memref.load %arg1[%1213, %c63] : memref<16x128xf32, #tpu.memory_space<smem>>
      %c1_i32_256 = arith.constant 1 : i32
      %1215 = arith.addi %0, %c1_i32_256 : i32
      %1216 = arith.index_cast %1215 : i32 to index
      %c63_257 = arith.constant 63 : index
      %1217 = memref.load %arg1[%1216, %c63_257] : memref<16x128xf32, #tpu.memory_space<smem>>
      %c2_i32_258 = arith.constant 2 : i32
      %1218 = arith.addi %0, %c2_i32_258 : i32
      %1219 = arith.index_cast %1218 : i32 to index
      %c63_259 = arith.constant 63 : index
      %1220 = memref.load %arg1[%1219, %c63_259] : memref<16x128xf32, #tpu.memory_space<smem>>
      %1221 = vector.broadcast %1214 : f32 to vector<32x128xf32>
      %1222 = arith.subf %2, %1221 : vector<32x128xf32>
      %1223 = vector.broadcast %1217 : f32 to vector<32x128xf32>
      %1224 = arith.subf %13, %1223 : vector<32x128xf32>
      %1225 = arith.mulf %1222, %1222 : vector<32x128xf32>
      %1226 = arith.mulf %1224, %1224 : vector<32x128xf32>
      %1227 = arith.addf %1225, %1226 : vector<32x128xf32>
      %1228 = arith.cmpf olt, %1227, %1210 : vector<32x128xf32>
      %1229 = arith.minimumf %1210, %1227 : vector<32x128xf32>
      %1230 = vector.broadcast %1220 : f32 to vector<32x128xf32>
      %1231 = arith.select %1228, %1230, %1212 : vector<32x128xi1>, vector<32x128xf32>
      %cst_260 = arith.constant 1.52587891E-5 : f32
      %1232 = vector.broadcast %cst_260 : f32 to vector<32x128xf32>
      %1233 = arith.mulf %1231, %1232 : vector<32x128xf32>
      %1234 = math.floor %1233 : vector<32x128xf32>
      %cst_261 = arith.constant 6.553600e+04 : f32
      %1235 = vector.broadcast %cst_261 : f32 to vector<32x128xf32>
      %1236 = arith.mulf %1234, %1235 : vector<32x128xf32>
      %1237 = arith.subf %1231, %1236 : vector<32x128xf32>
      %cst_262 = arith.constant 3.906250e-03 : f32
      %1238 = vector.broadcast %cst_262 : f32 to vector<32x128xf32>
      %1239 = arith.mulf %1237, %1238 : vector<32x128xf32>
      %1240 = math.floor %1239 : vector<32x128xf32>
      %cst_263 = arith.constant 2.560000e+02 : f32
      %1241 = vector.broadcast %cst_263 : f32 to vector<32x128xf32>
      %1242 = arith.mulf %1240, %1241 : vector<32x128xf32>
      %1243 = arith.subf %1237, %1242 : vector<32x128xf32>
      %cst_264 = arith.constant 3.600000e+01 : f32
      %1244 = vector.broadcast %cst_264 : f32 to vector<32x128xf32>
      %1245 = arith.cmpf olt, %1229, %1244 : vector<32x128xf32>
      %c0_265 = arith.constant 0 : index
      %c0_266 = arith.constant 0 : index
      %1246 = arith.index_cast %7 : i32 to index
      %c0_267 = arith.constant 0 : index
      %1247 = vector.load %arg2[%c0_265, %c0_266, %1246, %c0_267] : memref<1x3x128x128xf32, #tpu.memory_space<vmem>>, vector<1x1x32x128xf32>
      %1248 = vector.shape_cast %1247 : vector<1x1x32x128xf32> to vector<32x128xf32>
      %1249 = arith.select %1245, %1243, %1248 : vector<32x128xi1>, vector<32x128xf32>
      %c0_268 = arith.constant 0 : index
      %c0_269 = arith.constant 0 : index
      %1250 = arith.index_cast %7 : i32 to index
      %c0_270 = arith.constant 0 : index
      %1251 = vector.load %arg3[%c0_268, %c0_269, %1250, %c0_270] : memref<1x3x128x128xf32, #tpu.memory_space<vmem>>, vector<1x1x32x128xf32>
      %1252 = vector.shape_cast %1251 : vector<1x1x32x128xf32> to vector<32x128xf32>
      %1253 = vector.shape_cast %1249 : vector<32x128xf32> to vector<1x1x32x128xf32>
      tpu.vector_store %arg3[%c0_268, %c0_269, %1250, %c0_270], %1253 {strides = array<i32>} : memref<1x3x128x128xf32, #tpu.memory_space<vmem>>, vector<1x1x32x128xf32>,
      %c0_271 = arith.constant 0 : index
      %c1_272 = arith.constant 1 : index
      %1254 = arith.index_cast %7 : i32 to index
      %c0_273 = arith.constant 0 : index
      %1255 = vector.load %arg2[%c0_271, %c1_272, %1254, %c0_273] : memref<1x3x128x128xf32, #tpu.memory_space<vmem>>, vector<1x1x32x128xf32>
      %1256 = vector.shape_cast %1255 : vector<1x1x32x128xf32> to vector<32x128xf32>
      %1257 = arith.select %1245, %1240, %1256 : vector<32x128xi1>, vector<32x128xf32>
      %c0_274 = arith.constant 0 : index
      %c1_275 = arith.constant 1 : index
      %1258 = arith.index_cast %7 : i32 to index
      %c0_276 = arith.constant 0 : index
      %1259 = vector.load %arg3[%c0_274, %c1_275, %1258, %c0_276] : memref<1x3x128x128xf32, #tpu.memory_space<vmem>>, vector<1x1x32x128xf32>
      %1260 = vector.shape_cast %1259 : vector<1x1x32x128xf32> to vector<32x128xf32>
      %1261 = vector.shape_cast %1257 : vector<32x128xf32> to vector<1x1x32x128xf32>
      tpu.vector_store %arg3[%c0_274, %c1_275, %1258, %c0_276], %1261 {strides = array<i32>} : memref<1x3x128x128xf32, #tpu.memory_space<vmem>>, vector<1x1x32x128xf32>,
      %c0_277 = arith.constant 0 : index
      %c2_278 = arith.constant 2 : index
      %1262 = arith.index_cast %7 : i32 to index
      %c0_279 = arith.constant 0 : index
      %1263 = vector.load %arg2[%c0_277, %c2_278, %1262, %c0_279] : memref<1x3x128x128xf32, #tpu.memory_space<vmem>>, vector<1x1x32x128xf32>
      %1264 = vector.shape_cast %1263 : vector<1x1x32x128xf32> to vector<32x128xf32>
      %1265 = arith.select %1245, %1234, %1264 : vector<32x128xi1>, vector<32x128xf32>
      %c0_280 = arith.constant 0 : index
      %c2_281 = arith.constant 2 : index
      %1266 = arith.index_cast %7 : i32 to index
      %c0_282 = arith.constant 0 : index
      %1267 = vector.load %arg3[%c0_280, %c2_281, %1266, %c0_282] : memref<1x3x128x128xf32, #tpu.memory_space<vmem>>, vector<1x1x32x128xf32>
      %1268 = vector.shape_cast %1267 : vector<1x1x32x128xf32> to vector<32x128xf32>
      %1269 = vector.shape_cast %1265 : vector<32x128xf32> to vector<1x1x32x128xf32>
      tpu.vector_store %arg3[%c0_280, %c2_281, %1266, %c0_282], %1269 {strides = array<i32>} : memref<1x3x128x128xf32, #tpu.memory_space<vmem>>, vector<1x1x32x128xf32>,
    }
    %c4_i32_0 = arith.constant 4 : i32
    return
  }
  func.func @transform_0(%arg0: i32) -> (i32, i32) {
    %c0_i32 = arith.constant 0 : i32
    %c0_i32_0 = arith.constant 0 : i32
    %c0_i32_1 = arith.constant 0 : i32
    return %c0_i32, %c0_i32_0 : i32, i32
  }
  func.func @transform_1(%arg0: i32) -> (i32, i32, i32, i32) {
    %c0_i32 = arith.constant 0 : i32
    %c0_i32_0 = arith.constant 0 : i32
    %c0_i32_1 = arith.constant 0 : i32
    %c0_i32_2 = arith.constant 0 : i32
    return %arg0, %c0_i32, %c0_i32_0, %c0_i32_1 : i32, i32, i32, i32
  }
  func.func @transform_2(%arg0: i32) -> (i32, i32, i32, i32) {
    %c0_i32 = arith.constant 0 : i32
    %c0_i32_0 = arith.constant 0 : i32
    %c0_i32_1 = arith.constant 0 : i32
    %c0_i32_2 = arith.constant 0 : i32
    return %arg0, %c0_i32, %c0_i32_0, %c0_i32_1 : i32, i32, i32, i32
  }
}

</mosaic_0001>

<llo_original>
// kernel: tpu_custom_call.1
$region0: #{tpu_custom_call.1}
  #allocation0 [shape = 'u32[]', space=smem, size = 0x4, offset = 0x4, fixed_abs, tag = 'smem constant byte address 0x4 - core index']
  #allocation1 [shape = 'u32[144,128]{1,0:T(1,128)}', space=vmem, size = 0x12000, scoped, tag = 'internal scratch']
  %s0 = inlined_call_operand.hbm [shape: f32[16,128], index: 0, kind: input, shape index: {}]
  %s1 = inlined_call_operand.hbm [shape: f32[2,3,128,128], index: 1, kind: input, shape index: {}]
  %s2 = inlined_call_operand.hbm [shape: f32[2,3,128,128], index: 2, kind: output, shape index: {}]
  %s3 = sld [smem:[#allocation0]]
  $region56: #{tpu_custom_call.1} parent=0
    _
  %s5 = ssub.s32 1, %s3
  %s6 = scalar_select 0, %s5, %s3
  $region1: #{tpu_custom_call.1} parent=0
    #allocation2 [shape = 'u8[8192]{0}', space=smem, size = 0x2000, scoped, tag = 'input window, operand 0, single buffered']
    #allocation3 [shape = 's32[2]{0}', space=sflag, size = 0x8, scoped, tag = 'scoped memory for tpu_custom_call.1']
    #allocation4 [shape = 's32[2]{0}', space=sflag, size = 0x8, scoped, tag = 'scoped memory for tpu_custom_call.1']
    #allocation5 [shape = 's32[2]{0}', space=sflag, size = 0x8, scoped, tag = 'scoped memory for tpu_custom_call.1']
    #allocation6 [shape = 'u8[393216]{0}', space=vmem, size = 0x60000, scoped, tag = 'input window, operand 1']
    #allocation7 [shape = 'u8[393216]{0}', space=vmem, size = 0x60000, scoped, tag = 'output window, operand 0']
    %7 = vsyncpa [#allocation5], 0
    %8 = vsyncpa [#allocation3], 0
    %s9 = scalar_lea.sflag [#allocation3], 1
    %10 = vsyncpa %s9, 0
    %11 = vsyncpa [#allocation4], 0
    %s12 = scalar_lea.sflag [#allocation4], 1
    %13 = vsyncpa %s12, 0
    loop: start=0, step=1, limit=4
    $region2: #{tpu_custom_call.1} parent=1 // loop_pre_header
      _
    $region3: #{tpu_custom_call.1} parent=1 // loop_header
      %s15 = sphi 0, %s19
      %p16 = scmp.ge.s32.totalorder %s15, 4
      %s23 = sphi 0, %s23
      %s25 = sphi 0, %s23
      %s26 = sphi 0, %s25
      %s40 = sphi 0, %s26
      %s46 = sphi 0, %s48
      %s49 = sphi 0, %s46
      %s50 = sphi 0, %s49
      %s66 = sphi 0, %s50
      %s72 = sphi 0, %s74
      %s75 = sphi 0, %s72
      %s76 = sphi 0, %s75
      %s92 = sphi 0, %s76
    $region4: #{tpu_custom_call.1} parent=1 // loop_header_branch
      %18 = sbr.rel (%p16) target = $region8
    $region5: #{tpu_custom_call.1} parent=1 // loop_body
      %s20 = ssub.s32 %s15, 1
      %s21 = ssub.s32 %s15, 2
      %s22 = sadd.s32 %s15, 1
      %s24 = sadd.s32 %s23, 1
      %p27 = scmp.eq.s32.totalorder %s15, 1
      %p28 = scmp.ne.s32.totalorder %s23, %s25
      %p29 = scmp.eq.s32.totalorder %s15, 0
      %p30 = por %p28, %p29
      %p31 = scmp.ne.s32.totalorder %s23, %s25
      %p32 = scmp.eq.s32.totalorder %s20, 1
      %p33 = por %p31, %p32
      %p34 = scmp.ne.s32.totalorder %s25, %s26
      %p35 = scmp.eq.s32.totalorder %s20, 0
      %p36 = por %p34, %p35
      %p37 = scmp.ne.s32.totalorder %s25, %s26
      %p38 = scmp.eq.s32.totalorder %s21, 1
      %p39 = por %p37, %p38
      %p41 = scmp.ne.s32.totalorder %s26, %s40
      %p42 = scmp.eq.s32.totalorder %s21, 0
      %p43 = por %p41, %p42
      %s44 = ssub.s32 %s15, %s22
      %p45 = scmp.eq.s32.totalorder %s44, 0
      %s47 = sadd.s32 %s46, 1
      %s48 = scalar_select %p45, %s46, %s47
      %p51 = pneg %p45
      %p52 = scmp.eq.s32.totalorder %s15, 1
      %p53 = por %p51, %p52
      %p54 = scmp.ne.s32.totalorder %s46, %s49
      %p55 = scmp.eq.s32.totalorder %s15, 0
      %p56 = por %p54, %p55
      %p57 = scmp.ne.s32.totalorder %s46, %s49
      %p58 = scmp.eq.s32.totalorder %s20, 1
      %p59 = por %p57, %p58
      %p60 = scmp.ne.s32.totalorder %s49, %s50
      %p61 = scmp.eq.s32.totalorder %s20, 0
      %p62 = por %p60, %p61
      %p63 = scmp.ne.s32.totalorder %s49, %s50
      %p64 = scmp.eq.s32.totalorder %s21, 1
      %p65 = por %p63, %p64
      %p67 = scmp.ne.s32.totalorder %s50, %s66
      %p68 = scmp.eq.s32.totalorder %s21, 0
      %p69 = por %p67, %p68
      %s70 = ssub.s32 %s15, %s22
      %p71 = scmp.eq.s32.totalorder %s70, 0
      %s73 = sadd.s32 %s72, 1
      %s74 = scalar_select %p71, %s72, %s73
      %p77 = pneg %p71
      %p78 = scmp.eq.s32.totalorder %s15, 1
      %p79 = por %p77, %p78
      %p80 = scmp.ne.s32.totalorder %s72, %s75
      %p81 = scmp.eq.s32.totalorder %s15, 0
      %p82 = por %p80, %p81
      %p83 = scmp.ne.s32.totalorder %s72, %s75
      %p84 = scmp.eq.s32.totalorder %s20, 1
      %p85 = por %p83, %p84
      %p86 = scmp.ne.s32.totalorder %s75, %s76
      %p87 = scmp.eq.s32.totalorder %s20, 0
      %p88 = por %p86, %p87
      %p89 = scmp.ne.s32.totalorder %s75, %s76
      %p90 = scmp.eq.s32.totalorder %s21, 1
      %p91 = por %p89, %p90
      %p93 = scmp.ne.s32.totalorder %s76, %s92
      %p94 = scmp.eq.s32.totalorder %s21, 0
      %p95 = por %p93, %p94
      %p96 = scmp.le.s32.totalorder 1, %s15
      %p97 = scmp.lt.s32.totalorder %s15, 3
      %p98 = pnand %p96, %p97
      %p99 = pneg %p98
      // Predicated region
      $region9: #{tpu_custom_call.1} parent=5 // pred_check
        _
      $region10: #{tpu_custom_call.1} parent=5 // pred_check_branch
        %101 = sbr.rel (%p98) target = $region12
      $region11: #{tpu_custom_call.1} parent=5 // pred_region
        %s102 = ssub.s32 %s15, 1
        // Predicated region
        $region13: #{tpu_custom_call.1} parent=11 // pred_check
          %p103 = pneg %p36
        $region14: #{tpu_custom_call.1} parent=11 // pred_check_branch
          %105 = sbr.rel (%p103) target = $region16
        $region15: #{tpu_custom_call.1} parent=11 // pred_region
          %s107 = ssub.s32 256, 256
          %108 = vsyncadd [#allocation5], %s107
          %113 = dma.hbm_to_smem %s0, 256, [#allocation2], [#allocation5], 128, 128, 8
        $region16: #{tpu_custom_call.1} parent=11 // pred_fallthru
          _
      $region12: #{tpu_custom_call.1} parent=5 // pred_fallthru
        _
      %p114 = scmp.lt.s32.totalorder %s15, 2
      // Predicated region
      $region17: #{tpu_custom_call.1} parent=5 // pred_check
        %p115 = pneg %p114
      $region18: #{tpu_custom_call.1} parent=5 // pred_check_branch
        %117 = sbr.rel (%p115) target = $region20
      $region19: #{tpu_custom_call.1} parent=5 // pred_region
        // Predicated region
        $region21: #{tpu_custom_call.1} parent=19 // pred_check
          %p118 = pneg %p56
        $region22: #{tpu_custom_call.1} parent=19 // pred_check_branch
          %120 = sbr.rel (%p118) target = $region24
        $region23: #{tpu_custom_call.1} parent=19 // pred_region
          %s121 = sand.u32 %s46, 1
          %s122 = scalar_lea.sflag [#allocation3], %s121
          %s123 = sand.u32 %s46, 1
          %s124 = smul.addr %s123, 384
          %s125 = scalar_lea.vmem [#allocation6], %s124
          %s127 = ssub.s32 6144, 6144
          %128 = vsyncadd %s122, %s127
          %s129 = smul.addr %s15, 48
          %s130 = smul.addr %s129, 128
          %s131 = scalar_lea.hbm %s1, %s130
          %s132 = sshll.u32 %s125, 4
          %s133 = int_to_ptr.vmem [resolvable:$true] %s132
          %138 = dma.hbm_to_vmem [thread:$0]  %s131, 6144, %s133, %s122, 128, 128, 8
        $region24: #{tpu_custom_call.1} parent=19 // pred_fallthru
          _
      $region20: #{tpu_custom_call.1} parent=5 // pred_fallthru
        _
      %p139 = scmp.le.s32.totalorder 1, %s15
      %p140 = scmp.lt.s32.totalorder %s15, 3
      %p141 = pnand %p139, %p140
      %p142 = pneg %p141
      // Predicated region
      $region25: #{tpu_custom_call.1} parent=5 // pred_check
        _
      $region26: #{tpu_custom_call.1} parent=5 // pred_check_branch
        %144 = sbr.rel (%p141) target = $region28
      $region27: #{tpu_custom_call.1} parent=5 // pred_region
        %s145 = ssub.s32 %s15, 1
        // Predicated region
        $region29: #{tpu_custom_call.1} parent=27 // pred_check
          %p146 = pneg %p36
        $region30: #{tpu_custom_call.1} parent=27 // pred_check_branch
          %148 = sbr.rel (%p146) target = $region32
        $region31: #{tpu_custom_call.1} parent=27 // pred_region
          %149 = dma.done [#allocation5], 256
        $region32: #{tpu_custom_call.1} parent=27 // pred_fallthru
          _
        %s150 = sand.u32 %s49, 1
        %s151 = scalar_lea.sflag [#allocation3], %s150
        %s152 = sand.u32 %s49, 1
        %s153 = smul.addr %s152, 384
        %s154 = scalar_lea.vmem [#allocation6], %s153
        // Predicated region
        $region33: #{tpu_custom_call.1} parent=27 // pred_check
          %p155 = pneg %p62
        $region34: #{tpu_custom_call.1} parent=27 // pred_check_branch
          %157 = sbr.rel (%p155) target = $region36
        $region35: #{tpu_custom_call.1} parent=27 // pred_region
          %158 = dma.done %s151, 6144
        $region36: #{tpu_custom_call.1} parent=27 // pred_fallthru
          _
        %159 = sfence
        %p160 = pneg %p36
        %p161 = pneg %p33
        %s162 = sand.u32 %s49, 1
        %s163 = scalar_lea.sflag [#allocation3], %s162
        %s164 = sand.u32 %s49, 1
        %s165 = smul.addr %s164, 384
        %s166 = scalar_lea.vmem [#allocation6], %s165
        %p167 = pneg %p62
        %p168 = pneg %p59
        %p169 = pneg %p88
        %p170 = pneg %p85
        %s171 = sand.u32 %s75, 1
        %s172 = scalar_lea.sflag [#allocation4], %s171
        %s173 = sand.u32 %s75, 1
        %s174 = smul.addr %s173, 384
        %s175 = scalar_lea.vmem [#allocation7], %s174
        %s176 = smul.u32 %s20, 8
        %v177 = vlaneseq
        %v178 = vand.u32 %v177, 127
        %v179 = vcvt.s32.f32 %v178
        loop: start=0, step=1, limit=4
        $region37: #{tpu_custom_call.1} parent=27 // loop_pre_header
          _
        $region38: #{tpu_custom_call.1} parent=27 // loop_header
          %s181 = sphi 0, %s185
          %p182 = scmp.ge.s32.totalorder %s181, 4
        $region39: #{tpu_custom_call.1} parent=27 // loop_header_branch
          %184 = sbr.rel (%p182) target = $region43
        $region40: #{tpu_custom_call.1} parent=27 // loop_body
          %s186 = smul.u32 %s181, 32
          %s187 = scvt.s32.f32 %s186
          %v188 = vlaneseq
          %v189 = vshrl.u32 %v188, 7
          %v190 = vadd.s32 %v189, 8
          %v191 = vadd.s32 %v189, 16
          %v192 = vadd.s32 %v189, 24
          %v193 = vcvt.s32.f32 %v189
          %v194 = vcvt.s32.f32 %v190
          %v195 = vcvt.s32.f32 %v191
          %v196 = vcvt.s32.f32 %v192
          %v197 = vstv %s187
          %v198 = vadd.f32 %v197, %v193
          %v199 = vadd.f32 %v197, %v194
          %v200 = vadd.f32 %v197, %v195
          %v201 = vadd.f32 %v197, %v196
          %s202 = smul.u32 %s176, 128
          %s203 = sld [smem:[#allocation2 + %s202]]
          %s204 = sadd.s32 %s176, 1
          %s205 = smul.u32 %s204, 128
          %s206 = sld [smem:[#allocation2 + %s205]]
          %s207 = sadd.s32 %s176, 2
          %s208 = smul.u32 %s207, 128
          %s209 = sld [smem:[#allocation2 + %s208]]
          %v210 = vstv %s203
          %v211 = vsub.f32 %v179, %v210
          %v212 = vstv %s206
          %v213 = vsub.f32 %v198, %v212
          %v214 = vsub.f32 %v199, %v212
          %v215 = vsub.f32 %v200, %v212
          %v216 = vsub.f32 %v201, %v212
          %v217 = vmul.f32 %v211, %v211
          %v218 = vmul.f32 %v213, %v213
          %v219 = vmul.f32 %v214, %v214
          %v220 = vmul.f32 %v215, %v215
          %v221 = vmul.f32 %v216, %v216
          %v222 = vadd.f32 %v217, %v218
          %v223 = vadd.f32 %v217, %v219
          %v224 = vadd.f32 %v217, %v220
          %v225 = vadd.f32 %v217, %v221
          %vm226 = vcmp.lt.f32.partialorder %v222, 1e+30
          %vm227 = vcmp.lt.f32.partialorder %v223, 1e+30
          %vm228 = vcmp.lt.f32.partialorder %v224, 1e+30
          %vm229 = vcmp.lt.f32.partialorder %v225, 1e+30
          %v230 = vmin.f32 %v222, 1e+30
          %v231 = vmin.f32 %v223, 1e+30
          %v232 = vmin.f32 %v224, 1e+30
          %v233 = vmin.f32 %v225, 1e+30
          %v234 = vstv %s209
          %v235 = vsel %vm226, %v234, 0.0
          %v236 = vsel %vm227, %v234, 0.0
          %v237 = vsel %vm228, %v234, 0.0
          %v238 = vsel %vm229, %v234, 0.0
          %s239 = sadd.s32 %s202, 1
          %s240 = sld [smem:[#allocation2 + %s239]]
          %s241 = sadd.s32 %s205, 1
          %s242 = sld [smem:[#allocation2 + %s241]]
          %s243 = sadd.s32 %s208, 1
          %s244 = sld [smem:[#allocation2 + %s243]]
          %v245 = vstv %s240
          %v246 = vsub.f32 %v179, %v245
          %v247 = vstv %s242
          %v248 = vsub.f32 %v198, %v247
          %v249 = vsub.f32 %v199, %v247
          %v250 = vsub.f32 %v200, %v247
          %v251 = vsub.f32 %v201, %v247
          %v252 = vmul.f32 %v246, %v246
          %v253 = vmul.f32 %v248, %v248
          %v254 = vmul.f32 %v249, %v249
          %v255 = vmul.f32 %v250, %v250
          %v256 = vmul.f32 %v251, %v251
          %v257 = vadd.f32 %v252, %v253
          %v258 = vadd.f32 %v252, %v254
          %v259 = vadd.f32 %v252, %v255
          %v260 = vadd.f32 %v252, %v256
          %vm261 = vcmp.lt.f32.partialorder %v257, %v230
          %vm262 = vcmp.lt.f32.partialorder %v258, %v231
          %vm263 = vcmp.lt.f32.partialorder %v259, %v232
          %vm264 = vcmp.lt.f32.partialorder %v260, %v233
          %v265 = vmin.f32 %v230, %v257
          %v266 = vmin.f32 %v231, %v258
          %v267 = vmin.f32 %v232, %v259
          %v268 = vmin.f32 %v233, %v260
          %v269 = vstv %s244
          %v270 = vsel %vm261, %v269, %v235
          %v271 = vsel %vm262, %v269, %v236
          %v272 = vsel %vm263, %v269, %v237
          %v273 = vsel %vm264, %v269, %v238
          %s274 = sadd.s32 %s202, 2
          %s275 = sld [smem:[#allocation2 + %s274]]
          %s276 = sadd.s32 %s205, 2
          %s277 = sld [smem:[#allocation2 + %s276]]
          %s278 = sadd.s32 %s208, 2
          %s279 = sld [smem:[#allocation2 + %s278]]
          %v280 = vstv %s275
          %v281 = vsub.f32 %v179, %v280
          %v282 = vstv %s277
          %v283 = vsub.f32 %v198, %v282
          %v284 = vsub.f32 %v199, %v282
          %v285 = vsub.f32 %v200, %v282
          %v286 = vsub.f32 %v201, %v282
          %v287 = vmul.f32 %v281, %v281
          %v288 = vmul.f32 %v283, %v283
          %v289 = vmul.f32 %v284, %v284
          %v290 = vmul.f32 %v285, %v285
          %v291 = vmul.f32 %v286, %v286
          %v292 = vadd.f32 %v287, %v288
          %v293 = vadd.f32 %v287, %v289
          %v294 = vadd.f32 %v287, %v290
          %v295 = vadd.f32 %v287, %v291
          %vm296 = vcmp.lt.f32.partialorder %v292, %v265
          %vm297 = vcmp.lt.f32.partialorder %v293, %v266
          %vm298 = vcmp.lt.f32.partialorder %v294, %v267
          %vm299 = vcmp.lt.f32.partialorder %v295, %v268
          %v300 = vmin.f32 %v265, %v292
          %v301 = vmin.f32 %v266, %v293
          %v302 = vmin.f32 %v267, %v294
          %v303 = vmin.f32 %v268, %v295
          %v304 = vstv %s279
          %v305 = vsel %vm296, %v304, %v270
          %v306 = vsel %vm297, %v304, %v271
          %v307 = vsel %vm298, %v304, %v272
          %v308 = vsel %vm299, %v304, %v273
          %s309 = sadd.s32 %s202, 3
          %s310 = sld [smem:[#allocation2 + %s309]]
          %s311 = sadd.s32 %s205, 3
          %s312 = sld [smem:[#allocation2 + %s311]]
          %s313 = sadd.s32 %s208, 3
          %s314 = sld [smem:[#allocation2 + %s313]]
          %v315 = vstv %s310
          %v316 = vsub.f32 %v179, %v315
          %v317 = vstv %s312
          %v318 = vsub.f32 %v198, %v317
          %v319 = vsub.f32 %v199, %v317
          %v320 = vsub.f32 %v200, %v317
          %v321 = vsub.f32 %v201, %v317
          %v322 = vmul.f32 %v316, %v316
          %v323 = vmul.f32 %v318, %v318
          %v324 = vmul.f32 %v319, %v319
          %v325 = vmul.f32 %v320, %v320
          %v326 = vmul.f32 %v321, %v321
          %v327 = vadd.f32 %v322, %v323
          %v328 = vadd.f32 %v322, %v324
          %v329 = vadd.f32 %v322, %v325
          %v330 = vadd.f32 %v322, %v326
          %vm331 = vcmp.lt.f32.partialorder %v327, %v300
          %vm332 = vcmp.lt.f32.partialorder %v328, %v301
          %vm333 = vcmp.lt.f32.partialorder %v329, %v302
          %vm334 = vcmp.lt.f32.partialorder %v330, %v303
          %v335 = vmin.f32 %v300, %v327
          %v336 = vmin.f32 %v301, %v328
          %v337 = vmin.f32 %v302, %v329
          %v338 = vmin.f32 %v303, %v330
          %v339 = vstv %s314
          %v340 = vsel %vm331, %v339, %v305
          %v341 = vsel %vm332, %v339, %v306
          %v342 = vsel %vm333, %v339, %v307
          %v343 = vsel %vm334, %v339, %v308
          %s344 = sadd.s32 %s202, 4
          %s345 = sld [smem:[#allocation2 + %s344]]
          %s346 = sadd.s32 %s205, 4
          %s347 = sld [smem:[#allocation2 + %s346]]
          %s348 = sadd.s32 %s208, 4
          %s349 = sld [smem:[#allocation2 + %s348]]
          %v350 = vstv %s345
          %v351 = vsub.f32 %v179, %v350
          %v352 = vstv %s347
          %v353 = vsub.f32 %v198, %v352
          %v354 = vsub.f32 %v199, %v352
          %v355 = vsub.f32 %v200, %v352
          %v356 = vsub.f32 %v201, %v352
          %v357 = vmul.f32 %v351, %v351
          %v358 = vmul.f32 %v353, %v353
          %v359 = vmul.f32 %v354, %v354
          %v360 = vmul.f32 %v355, %v355
          %v361 = vmul.f32 %v356, %v356
          %v362 = vadd.f32 %v357, %v358
          %v363 = vadd.f32 %v357, %v359
          %v364 = vadd.f32 %v357, %v360
          %v365 = vadd.f32 %v357, %v361
          %vm366 = vcmp.lt.f32.partialorder %v362, %v335
          %vm367 = vcmp.lt.f32.partialorder %v363, %v336
          %vm368 = vcmp.lt.f32.partialorder %v364, %v337
          %vm369 = vcmp.lt.f32.partialorder %v365, %v338
          %v370 = vmin.f32 %v335, %v362
          %v371 = vmin.f32 %v336, %v363
          %v372 = vmin.f32 %v337, %v364
          %v373 = vmin.f32 %v338, %v365
          %v374 = vstv %s349
          %v375 = vsel %vm366, %v374, %v340
          %v376 = vsel %vm367, %v374, %v341
          %v377 = vsel %vm368, %v374, %v342
          %v378 = vsel %vm369, %v374, %v343
          %s379 = sadd.s32 %s202, 5
          %s380 = sld [smem:[#allocation2 + %s379]]
          %s381 = sadd.s32 %s205, 5
          %s382 = sld [smem:[#allocation2 + %s381]]
          %s383 = sadd.s32 %s208, 5
          %s384 = sld [smem:[#allocation2 + %s383]]
          %v385 = vstv %s380
          %v386 = vsub.f32 %v179, %v385
          %v387 = vstv %s382
          %v388 = vsub.f32 %v198, %v387
          %v389 = vsub.f32 %v199, %v387
          %v390 = vsub.f32 %v200, %v387
          %v391 = vsub.f32 %v201, %v387
          %v392 = vmul.f32 %v386, %v386
          %v393 = vmul.f32 %v388, %v388
          %v394 = vmul.f32 %v389, %v389
          %v395 = vmul.f32 %v390, %v390
          %v396 = vmul.f32 %v391, %v391
          %v397 = vadd.f32 %v392, %v393
          %v398 = vadd.f32 %v392, %v394
          %v399 = vadd.f32 %v392, %v395
          %v400 = vadd.f32 %v392, %v396
          %vm401 = vcmp.lt.f32.partialorder %v397, %v370
          %vm402 = vcmp.lt.f32.partialorder %v398, %v371
          %vm403 = vcmp.lt.f32.partialorder %v399, %v372
          %vm404 = vcmp.lt.f32.partialorder %v400, %v373
          %v405 = vmin.f32 %v370, %v397
          %v406 = vmin.f32 %v371, %v398
          %v407 = vmin.f32 %v372, %v399
          %v408 = vmin.f32 %v373, %v400
          %v409 = vstv %s384
          %v410 = vsel %vm401, %v409, %v375
          %v411 = vsel %vm402, %v409, %v376
          %v412 = vsel %vm403, %v409, %v377
          %v413 = vsel %vm404, %v409, %v378
          %s414 = sadd.s32 %s202, 6
          %s415 = sld [smem:[#allocation2 + %s414]]
          %s416 = sadd.s32 %s205, 6
          %s417 = sld [smem:[#allocation2 + %s416]]
          %s418 = sadd.s32 %s208, 6
          %s419 = sld [smem:[#allocation2 + %s418]]
          %v420 = vstv %s415
          %v421 = vsub.f32 %v179, %v420
          %v422 = vstv %s417
          %v423 = vsub.f32 %v198, %v422
          %v424 = vsub.f32 %v199, %v422
          %v425 = vsub.f32 %v200, %v422
          %v426 = vsub.f32 %v201, %v422
          %v427 = vmul.f32 %v421, %v421
          %v428 = vmul.f32 %v423, %v423
          %v429 = vmul.f32 %v424, %v424
          %v430 = vmul.f32 %v425, %v425
          %v431 = vmul.f32 %v426, %v426
          %v432 = vadd.f32 %v427, %v428
          %v433 = vadd.f32 %v427, %v429
          %v434 = vadd.f32 %v427, %v430
          %v435 = vadd.f32 %v427, %v431
          %vm436 = vcmp.lt.f32.partialorder %v432, %v405
          %vm437 = vcmp.lt.f32.partialorder %v433, %v406
          %vm438 = vcmp.lt.f32.partialorder %v434, %v407
          %vm439 = vcmp.lt.f32.partialorder %v435, %v408
          %v440 = vmin.f32 %v405, %v432
          %v441 = vmin.f32 %v406, %v433
          %v442 = vmin.f32 %v407, %v434
          %v443 = vmin.f32 %v408, %v435
          %v444 = vstv %s419
          %v445 = vsel %vm436, %v444, %v410
          %v446 = vsel %vm437, %v444, %v411
          %v447 = vsel %vm438, %v444, %v412
          %v448 = vsel %vm439, %v444, %v413
          %s449 = sadd.s32 %s202, 7
          %s450 = sld [smem:[#allocation2 + %s449]]
          %s451 = sadd.s32 %s205, 7
          %s452 = sld [smem:[#allocation2 + %s451]]
          %s453 = sadd.s32 %s208, 7
          %s454 = sld [smem:[#allocation2 + %s453]]
          %v455 = vstv %s450
          %v456 = vsub.f32 %v179, %v455
          %v457 = vstv %s452
          %v458 = vsub.f32 %v198, %v457
          %v459 = vsub.f32 %v199, %v457
          %v460 = vsub.f32 %v200, %v457
          %v461 = vsub.f32 %v201, %v457
          %v462 = vmul.f32 %v456, %v456
          %v463 = vmul.f32 %v458, %v458
          %v464 = vmul.f32 %v459, %v459
          %v465 = vmul.f32 %v460, %v460
          %v466 = vmul.f32 %v461, %v461
          %v467 = vadd.f32 %v462, %v463
          %v468 = vadd.f32 %v462, %v464
          %v469 = vadd.f32 %v462, %v465
          %v470 = vadd.f32 %v462, %v466
          %vm471 = vcmp.lt.f32.partialorder %v467, %v440
          %vm472 = vcmp.lt.f32.partialorder %v468, %v441
          %vm473 = vcmp.lt.f32.partialorder %v469, %v442
          %vm474 = vcmp.lt.f32.partialorder %v470, %v443
          %v475 = vmin.f32 %v440, %v467
          %v476 = vmin.f32 %v441, %v468
          %v477 = vmin.f32 %v442, %v469
          %v478 = vmin.f32 %v443, %v470
          %v479 = vstv %s454
          %v480 = vsel %vm471, %v479, %v445
          %v481 = vsel %vm472, %v479, %v446
          %v482 = vsel %vm473, %v479, %v447
          %v483 = vsel %vm474, %v479, %v448
          %s484 = sadd.s32 %s202, 8
          %s485 = sld [smem:[#allocation2 + %s484]]
          %s486 = sadd.s32 %s205, 8
          %s487 = sld [smem:[#allocation2 + %s486]]
          %s488 = sadd.s32 %s208, 8
          %s489 = sld [smem:[#allocation2 + %s488]]
          %v490 = vstv %s485
          %v491 = vsub.f32 %v179, %v490
          %v492 = vstv %s487
          %v493 = vsub.f32 %v198, %v492
          %v494 = vsub.f32 %v199, %v492
          %v495 = vsub.f32 %v200, %v492
          %v496 = vsub.f32 %v201, %v492
          %v497 = vmul.f32 %v491, %v491
          %v498 = vmul.f32 %v493, %v493
          %v499 = vmul.f32 %v494, %v494
          %v500 = vmul.f32 %v495, %v495
          %v501 = vmul.f32 %v496, %v496
          %v502 = vadd.f32 %v497, %v498
          %v503 = vadd.f32 %v497, %v499
          %v504 = vadd.f32 %v497, %v500
          %v505 = vadd.f32 %v497, %v501
          %vm506 = vcmp.lt.f32.partialorder %v502, %v475
          %vm507 = vcmp.lt.f32.partialorder %v503, %v476
          %vm508 = vcmp.lt.f32.partialorder %v504, %v477
          %vm509 = vcmp.lt.f32.partialorder %v505, %v478
          %v510 = vmin.f32 %v475, %v502
          %v511 = vmin.f32 %v476, %v503
          %v512 = vmin.f32 %v477, %v504
          %v513 = vmin.f32 %v478, %v505
          %v514 = vstv %s489
          %v515 = vsel %vm506, %v514, %v480
          %v516 = vsel %vm507, %v514, %v481
          %v517 = vsel %vm508, %v514, %v482
          %v518 = vsel %vm509, %v514, %v483
          %s519 = sadd.s32 %s202, 9
          %s520 = sld [smem:[#allocation2 + %s519]]
          %s521 = sadd.s32 %s205, 9
          %s522 = sld [smem:[#allocation2 + %s521]]
          %s523 = sadd.s32 %s208, 9
          %s524 = sld [smem:[#allocation2 + %s523]]
          %v525 = vstv %s520
          %v526 = vsub.f32 %v179, %v525
          %v527 = vstv %s522
          %v528 = vsub.f32 %v198, %v527
          %v529 = vsub.f32 %v199, %v527
          %v530 = vsub.f32 %v200, %v527
          %v531 = vsub.f32 %v201, %v527
          %v532 = vmul.f32 %v526, %v526
          %v533 = vmul.f32 %v528, %v528
          %v534 = vmul.f32 %v529, %v529
          %v535 = vmul.f32 %v530, %v530
          %v536 = vmul.f32 %v531, %v531
          %v537 = vadd.f32 %v532, %v533
          %v538 = vadd.f32 %v532, %v534
          %v539 = vadd.f32 %v532, %v535
          %v540 = vadd.f32 %v532, %v536
          %vm541 = vcmp.lt.f32.partialorder %v537, %v510
          %vm542 = vcmp.lt.f32.partialorder %v538, %v511
          %vm543 = vcmp.lt.f32.partialorder %v539, %v512
          %vm544 = vcmp.lt.f32.partialorder %v540, %v513
          %v545 = vmin.f32 %v510, %v537
          %v546 = vmin.f32 %v511, %v538
          %v547 = vmin.f32 %v512, %v539
          %v548 = vmin.f32 %v513, %v540
          %v549 = vstv %s524
          %v550 = vsel %vm541, %v549, %v515
          %v551 = vsel %vm542, %v549, %v516
          %v552 = vsel %vm543, %v549, %v517
          %v553 = vsel %vm544, %v549, %v518
          %s554 = sadd.s32 %s202, 10
          %s555 = sld [smem:[#allocation2 + %s554]]
          %s556 = sadd.s32 %s205, 10
          %s557 = sld [smem:[#allocation2 + %s556]]
          %s558 = sadd.s32 %s208, 10
          %s559 = sld [smem:[#allocation2 + %s558]]
          %v560 = vstv %s555
          %v561 = vsub.f32 %v179, %v560
          %v562 = vstv %s557
          %v563 = vsub.f32 %v198, %v562
          %v564 = vsub.f32 %v199, %v562
          %v565 = vsub.f32 %v200, %v562
          %v566 = vsub.f32 %v201, %v562
          %v567 = vmul.f32 %v561, %v561
          %v568 = vmul.f32 %v563, %v563
          %v569 = vmul.f32 %v564, %v564
          %v570 = vmul.f32 %v565, %v565
          %v571 = vmul.f32 %v566, %v566
          %v572 = vadd.f32 %v567, %v568
          %v573 = vadd.f32 %v567, %v569
          %v574 = vadd.f32 %v567, %v570
          %v575 = vadd.f32 %v567, %v571
          %vm576 = vcmp.lt.f32.partialorder %v572, %v545
          %vm577 = vcmp.lt.f32.partialorder %v573, %v546
          %vm578 = vcmp.lt.f32.partialorder %v574, %v547
          %vm579 = vcmp.lt.f32.partialorder %v575, %v548
          %v580 = vmin.f32 %v545, %v572
          %v581 = vmin.f32 %v546, %v573
          %v582 = vmin.f32 %v547, %v574
          %v583 = vmin.f32 %v548, %v575
          %v584 = vstv %s559
          %v585 = vsel %vm576, %v584, %v550
          %v586 = vsel %vm577, %v584, %v551
          %v587 = vsel %vm578, %v584, %v552
          %v588 = vsel %vm579, %v584, %v553
          %s589 = sadd.s32 %s202, 11
          %s590 = sld [smem:[#allocation2 + %s589]]
          %s591 = sadd.s32 %s205, 11
          %s592 = sld [smem:[#allocation2 + %s591]]
          %s593 = sadd.s32 %s208, 11
          %s594 = sld [smem:[#allocation2 + %s593]]
          %v595 = vstv %s590
          %v596 = vsub.f32 %v179, %v595
          %v597 = vstv %s592
          %v598 = vsub.f32 %v198, %v597
          %v599 = vsub.f32 %v199, %v597
          %v600 = vsub.f32 %v200, %v597
          %v601 = vsub.f32 %v201, %v597
          %v602 = vmul.f32 %v596, %v596
          %v603 = vmul.f32 %v598, %v598
          %v604 = vmul.f32 %v599, %v599
          %v605 = vmul.f32 %v600, %v600
          %v606 = vmul.f32 %v601, %v601
          %v607 = vadd.f32 %v602, %v603
          %v608 = vadd.f32 %v602, %v604
          %v609 = vadd.f32 %v602, %v605
          %v610 = vadd.f32 %v602, %v606
          %vm611 = vcmp.lt.f32.partialorder %v607, %v580
          %vm612 = vcmp.lt.f32.partialorder %v608, %v581
          %vm613 = vcmp.lt.f32.partialorder %v609, %v582
          %vm614 = vcmp.lt.f32.partialorder %v610, %v583
          %v615 = vmin.f32 %v580, %v607
          %v616 = vmin.f32 %v581, %v608
          %v617 = vmin.f32 %v582, %v609
          %v618 = vmin.f32 %v583, %v610
          %v619 = vstv %s594
          %v620 = vsel %vm611, %v619, %v585
          %v621 = vsel %vm612, %v619, %v586
          %v622 = vsel %vm613, %v619, %v587
          %v623 = vsel %vm614, %v619, %v588
          %s624 = sadd.s32 %s202, 12
          %s625 = sld [smem:[#allocation2 + %s624]]
          %s626 = sadd.s32 %s205, 12
          %s627 = sld [smem:[#allocation2 + %s626]]
          %s628 = sadd.s32 %s208, 12
          %s629 = sld [smem:[#allocation2 + %s628]]
          %v630 = vstv %s625
          %v631 = vsub.f32 %v179, %v630
          %v632 = vstv %s627
          %v633 = vsub.f32 %v198, %v632
          %v634 = vsub.f32 %v199, %v632
          %v635 = vsub.f32 %v200, %v632
          %v636 = vsub.f32 %v201, %v632
          %v637 = vmul.f32 %v631, %v631
          %v638 = vmul.f32 %v633, %v633
          %v639 = vmul.f32 %v634, %v634
          %v640 = vmul.f32 %v635, %v635
          %v641 = vmul.f32 %v636, %v636
          %v642 = vadd.f32 %v637, %v638
          %v643 = vadd.f32 %v637, %v639
          %v644 = vadd.f32 %v637, %v640
          %v645 = vadd.f32 %v637, %v641
          %vm646 = vcmp.lt.f32.partialorder %v642, %v615
          %vm647 = vcmp.lt.f32.partialorder %v643, %v616
          %vm648 = vcmp.lt.f32.partialorder %v644, %v617
          %vm649 = vcmp.lt.f32.partialorder %v645, %v618
          %v650 = vmin.f32 %v615, %v642
          %v651 = vmin.f32 %v616, %v643
          %v652 = vmin.f32 %v617, %v644
          %v653 = vmin.f32 %v618, %v645
          %v654 = vstv %s629
          %v655 = vsel %vm646, %v654, %v620
          %v656 = vsel %vm647, %v654, %v621
          %v657 = vsel %vm648, %v654, %v622
          %v658 = vsel %vm649, %v654, %v623
          %s659 = sadd.s32 %s202, 13
          %s660 = sld [smem:[#allocation2 + %s659]]
          %s661 = sadd.s32 %s205, 13
          %s662 = sld [smem:[#allocation2 + %s661]]
          %s663 = sadd.s32 %s208, 13
          %s664 = sld [smem:[#allocation2 + %s663]]
          %v665 = vstv %s660
          %v666 = vsub.f32 %v179, %v665
          %v667 = vstv %s662
          %v668 = vsub.f32 %v198, %v667
          %v669 = vsub.f32 %v199, %v667
          %v670 = vsub.f32 %v200, %v667
          %v671 = vsub.f32 %v201, %v667
          %v672 = vmul.f32 %v666, %v666
          %v673 = vmul.f32 %v668, %v668
          %v674 = vmul.f32 %v669, %v669
          %v675 = vmul.f32 %v670, %v670
          %v676 = vmul.f32 %v671, %v671
          %v677 = vadd.f32 %v672, %v673
          %v678 = vadd.f32 %v672, %v674
          %v679 = vadd.f32 %v672, %v675
          %v680 = vadd.f32 %v672, %v676
          %vm681 = vcmp.lt.f32.partialorder %v677, %v650
          %vm682 = vcmp.lt.f32.partialorder %v678, %v651
          %vm683 = vcmp.lt.f32.partialorder %v679, %v652
          %vm684 = vcmp.lt.f32.partialorder %v680, %v653
          %v685 = vmin.f32 %v650, %v677
          %v686 = vmin.f32 %v651, %v678
          %v687 = vmin.f32 %v652, %v679
          %v688 = vmin.f32 %v653, %v680
          %v689 = vstv %s664
          %v690 = vsel %vm681, %v689, %v655
          %v691 = vsel %vm682, %v689, %v656
          %v692 = vsel %vm683, %v689, %v657
          %v693 = vsel %vm684, %v689, %v658
          %s694 = sadd.s32 %s202, 14
          %s695 = sld [smem:[#allocation2 + %s694]]
          %s696 = sadd.s32 %s205, 14
          %s697 = sld [smem:[#allocation2 + %s696]]
          %s698 = sadd.s32 %s208, 14
          %s699 = sld [smem:[#allocation2 + %s698]]
          %v700 = vstv %s695
          %v701 = vsub.f32 %v179, %v700
          %v702 = vstv %s697
          %v703 = vsub.f32 %v198, %v702
          %v704 = vsub.f32 %v199, %v702
          %v705 = vsub.f32 %v200, %v702
          %v706 = vsub.f32 %v201, %v702
          %v707 = vmul.f32 %v701, %v701
          %v708 = vmul.f32 %v703, %v703
          %v709 = vmul.f32 %v704, %v704
          %v710 = vmul.f32 %v705, %v705
          %v711 = vmul.f32 %v706, %v706
          %v712 = vadd.f32 %v707, %v708
          %v713 = vadd.f32 %v707, %v709
          %v714 = vadd.f32 %v707, %v710
          %v715 = vadd.f32 %v707, %v711
          %vm716 = vcmp.lt.f32.partialorder %v712, %v685
          %vm717 = vcmp.lt.f32.partialorder %v713, %v686
          %vm718 = vcmp.lt.f32.partialorder %v714, %v687
          %vm719 = vcmp.lt.f32.partialorder %v715, %v688
          %v720 = vmin.f32 %v685, %v712
          %v721 = vmin.f32 %v686, %v713
          %v722 = vmin.f32 %v687, %v714
          %v723 = vmin.f32 %v688, %v715
          %v724 = vstv %s699
          %v725 = vsel %vm716, %v724, %v690
          %v726 = vsel %vm717, %v724, %v691
          %v727 = vsel %vm718, %v724, %v692
          %v728 = vsel %vm719, %v724, %v693
          %s729 = sadd.s32 %s202, 15
          %s730 = sld [smem:[#allocation2 + %s729]]
          %s731 = sadd.s32 %s205, 15
          %s732 = sld [smem:[#allocation2 + %s731]]
          %s733 = sadd.s32 %s208, 15
          %s734 = sld [smem:[#allocation2 + %s733]]
          %v735 = vstv %s730
          %v736 = vsub.f32 %v179, %v735
          %v737 = vstv %s732
          %v738 = vsub.f32 %v198, %v737
          %v739 = vsub.f32 %v199, %v737
          %v740 = vsub.f32 %v200, %v737
          %v741 = vsub.f32 %v201, %v737
          %v742 = vmul.f32 %v736, %v736
          %v743 = vmul.f32 %v738, %v738
          %v744 = vmul.f32 %v739, %v739
          %v745 = vmul.f32 %v740, %v740
          %v746 = vmul.f32 %v741, %v741
          %v747 = vadd.f32 %v742, %v743
          %v748 = vadd.f32 %v742, %v744
          %v749 = vadd.f32 %v742, %v745
          %v750 = vadd.f32 %v742, %v746
          %vm751 = vcmp.lt.f32.partialorder %v747, %v720
          %vm752 = vcmp.lt.f32.partialorder %v748, %v721
          %vm753 = vcmp.lt.f32.partialorder %v749, %v722
          %vm754 = vcmp.lt.f32.partialorder %v750, %v723
          %v755 = vmin.f32 %v720, %v747
          %v756 = vmin.f32 %v721, %v748
          %v757 = vmin.f32 %v722, %v749
          %v758 = vmin.f32 %v723, %v750
          %v759 = vstv %s734
          %v760 = vsel %vm751, %v759, %v725
          %v761 = vsel %vm752, %v759, %v726
          %v762 = vsel %vm753, %v759, %v727
          %v763 = vsel %vm754, %v759, %v728
          %s764 = sadd.s32 %s202, 16
          %s765 = sld [smem:[#allocation2 + %s764]]
          %s766 = sadd.s32 %s205, 16
          %s767 = sld [smem:[#allocation2 + %s766]]
          %s768 = sadd.s32 %s208, 16
          %s769 = sld [smem:[#allocation2 + %s768]]
          %v770 = vstv %s765
          %v771 = vsub.f32 %v179, %v770
          %v772 = vstv %s767
          %v773 = vsub.f32 %v198, %v772
          %v774 = vsub.f32 %v199, %v772
          %v775 = vsub.f32 %v200, %v772
          %v776 = vsub.f32 %v201, %v772
          %v777 = vmul.f32 %v771, %v771
          %v778 = vmul.f32 %v773, %v773
          %v779 = vmul.f32 %v774, %v774
          %v780 = vmul.f32 %v775, %v775
          %v781 = vmul.f32 %v776, %v776
          %v782 = vadd.f32 %v777, %v778
          %v783 = vadd.f32 %v777, %v779
          %v784 = vadd.f32 %v777, %v780
          %v785 = vadd.f32 %v777, %v781
          %vm786 = vcmp.lt.f32.partialorder %v782, %v755
          %vm787 = vcmp.lt.f32.partialorder %v783, %v756
          %vm788 = vcmp.lt.f32.partialorder %v784, %v757
          %vm789 = vcmp.lt.f32.partialorder %v785, %v758
          %v790 = vmin.f32 %v755, %v782
          %v791 = vmin.f32 %v756, %v783
          %v792 = vmin.f32 %v757, %v784
          %v793 = vmin.f32 %v758, %v785
          %v794 = vstv %s769
          %v795 = vsel %vm786, %v794, %v760
          %v796 = vsel %vm787, %v794, %v761
          %v797 = vsel %vm788, %v794, %v762
          %v798 = vsel %vm789, %v794, %v763
          %s799 = sadd.s32 %s202, 17
          %s800 = sld [smem:[#allocation2 + %s799]]
          %s801 = sadd.s32 %s205, 17
          %s802 = sld [smem:[#allocation2 + %s801]]
          %s803 = sadd.s32 %s208, 17
          %s804 = sld [smem:[#allocation2 + %s803]]
          %v805 = vstv %s800
          %v806 = vsub.f32 %v179, %v805
          %v807 = vstv %s802
          %v808 = vsub.f32 %v198, %v807
          %v809 = vsub.f32 %v199, %v807
          %v810 = vsub.f32 %v200, %v807
          %v811 = vsub.f32 %v201, %v807
          %v812 = vmul.f32 %v806, %v806
          %v813 = vmul.f32 %v808, %v808
          %v814 = vmul.f32 %v809, %v809
          %v815 = vmul.f32 %v810, %v810
          %v816 = vmul.f32 %v811, %v811
          %v817 = vadd.f32 %v812, %v813
          %v818 = vadd.f32 %v812, %v814
          %v819 = vadd.f32 %v812, %v815
          %v820 = vadd.f32 %v812, %v816
          %vm821 = vcmp.lt.f32.partialorder %v817, %v790
          %vm822 = vcmp.lt.f32.partialorder %v818, %v791
          %vm823 = vcmp.lt.f32.partialorder %v819, %v792
          %vm824 = vcmp.lt.f32.partialorder %v820, %v793
          %v825 = vmin.f32 %v790, %v817
          %v826 = vmin.f32 %v791, %v818
          %v827 = vmin.f32 %v792, %v819
          %v828 = vmin.f32 %v793, %v820
          %v829 = vstv %s804
          %v830 = vsel %vm821, %v829, %v795
          %v831 = vsel %vm822, %v829, %v796
          %v832 = vsel %vm823, %v829, %v797
          %v833 = vsel %vm824, %v829, %v798
          %s834 = sadd.s32 %s202, 18
          %s835 = sld [smem:[#allocation2 + %s834]]
          %s836 = sadd.s32 %s205, 18
          %s837 = sld [smem:[#allocation2 + %s836]]
          %s838 = sadd.s32 %s208, 18
          %s839 = sld [smem:[#allocation2 + %s838]]
          %v840 = vstv %s835
          %v841 = vsub.f32 %v179, %v840
          %v842 = vstv %s837
          %v843 = vsub.f32 %v198, %v842
          %v844 = vsub.f32 %v199, %v842
          %v845 = vsub.f32 %v200, %v842
          %v846 = vsub.f32 %v201, %v842
          %v847 = vmul.f32 %v841, %v841
          %v848 = vmul.f32 %v843, %v843
          %v849 = vmul.f32 %v844, %v844
          %v850 = vmul.f32 %v845, %v845
          %v851 = vmul.f32 %v846, %v846
          %v852 = vadd.f32 %v847, %v848
          %v853 = vadd.f32 %v847, %v849
          %v854 = vadd.f32 %v847, %v850
          %v855 = vadd.f32 %v847, %v851
          %vm856 = vcmp.lt.f32.partialorder %v852, %v825
          %vm857 = vcmp.lt.f32.partialorder %v853, %v826
          %vm858 = vcmp.lt.f32.partialorder %v854, %v827
          %vm859 = vcmp.lt.f32.partialorder %v855, %v828
          %v860 = vmin.f32 %v825, %v852
          %v861 = vmin.f32 %v826, %v853
          %v862 = vmin.f32 %v827, %v854
          %v863 = vmin.f32 %v828, %v855
          %v864 = vstv %s839
          %v865 = vsel %vm856, %v864, %v830
          %v866 = vsel %vm857, %v864, %v831
          %v867 = vsel %vm858, %v864, %v832
          %v868 = vsel %vm859, %v864, %v833
          %s869 = sadd.s32 %s202, 19
          %s870 = sld [smem:[#allocation2 + %s869]]
          %s871 = sadd.s32 %s205, 19
          %s872 = sld [smem:[#allocation2 + %s871]]
          %s873 = sadd.s32 %s208, 19
          %s874 = sld [smem:[#allocation2 + %s873]]
          %v875 = vstv %s870
          %v876 = vsub.f32 %v179, %v875
          %v877 = vstv %s872
          %v878 = vsub.f32 %v198, %v877
          %v879 = vsub.f32 %v199, %v877
          %v880 = vsub.f32 %v200, %v877
          %v881 = vsub.f32 %v201, %v877
          %v882 = vmul.f32 %v876, %v876
          %v883 = vmul.f32 %v878, %v878
          %v884 = vmul.f32 %v879, %v879
          %v885 = vmul.f32 %v880, %v880
          %v886 = vmul.f32 %v881, %v881
          %v887 = vadd.f32 %v882, %v883
          %v888 = vadd.f32 %v882, %v884
          %v889 = vadd.f32 %v882, %v885
          %v890 = vadd.f32 %v882, %v886
          %vm891 = vcmp.lt.f32.partialorder %v887, %v860
          %vm892 = vcmp.lt.f32.partialorder %v888, %v861
          %vm893 = vcmp.lt.f32.partialorder %v889, %v862
          %vm894 = vcmp.lt.f32.partialorder %v890, %v863
          %v895 = vmin.f32 %v860, %v887
          %v896 = vmin.f32 %v861, %v888
          %v897 = vmin.f32 %v862, %v889
          %v898 = vmin.f32 %v863, %v890
          %v899 = vstv %s874
          %v900 = vsel %vm891, %v899, %v865
          %v901 = vsel %vm892, %v899, %v866
          %v902 = vsel %vm893, %v899, %v867
          %v903 = vsel %vm894, %v899, %v868
          %s904 = sadd.s32 %s202, 20
          %s905 = sld [smem:[#allocation2 + %s904]]
          %s906 = sadd.s32 %s205, 20
          %s907 = sld [smem:[#allocation2 + %s906]]
          %s908 = sadd.s32 %s208, 20
          %s909 = sld [smem:[#allocation2 + %s908]]
          %v910 = vstv %s905
          %v911 = vsub.f32 %v179, %v910
          %v912 = vstv %s907
          %v913 = vsub.f32 %v198, %v912
          %v914 = vsub.f32 %v199, %v912
          %v915 = vsub.f32 %v200, %v912
          %v916 = vsub.f32 %v201, %v912
          %v917 = vmul.f32 %v911, %v911
          %v918 = vmul.f32 %v913, %v913
          %v919 = vmul.f32 %v914, %v914
          %v920 = vmul.f32 %v915, %v915
          %v921 = vmul.f32 %v916, %v916
          %v922 = vadd.f32 %v917, %v918
          %v923 = vadd.f32 %v917, %v919
          %v924 = vadd.f32 %v917, %v920
          %v925 = vadd.f32 %v917, %v921
          %vm926 = vcmp.lt.f32.partialorder %v922, %v895
          %vm927 = vcmp.lt.f32.partialorder %v923, %v896
          %vm928 = vcmp.lt.f32.partialorder %v924, %v897
          %vm929 = vcmp.lt.f32.partialorder %v925, %v898
          %v930 = vmin.f32 %v895, %v922
          %v931 = vmin.f32 %v896, %v923
          %v932 = vmin.f32 %v897, %v924
          %v933 = vmin.f32 %v898, %v925
          %v934 = vstv %s909
          %v935 = vsel %vm926, %v934, %v900
          %v936 = vsel %vm927, %v934, %v901
          %v937 = vsel %vm928, %v934, %v902
          %v938 = vsel %vm929, %v934, %v903
          %s939 = sadd.s32 %s202, 21
          %s940 = sld [smem:[#allocation2 + %s939]]
          %s941 = sadd.s32 %s205, 21
          %s942 = sld [smem:[#allocation2 + %s941]]
          %s943 = sadd.s32 %s208, 21
          %s944 = sld [smem:[#allocation2 + %s943]]
          %v945 = vstv %s940
          %v946 = vsub.f32 %v179, %v945
          %v947 = vstv %s942
          %v948 = vsub.f32 %v198, %v947
          %v949 = vsub.f32 %v199, %v947
          %v950 = vsub.f32 %v200, %v947
          %v951 = vsub.f32 %v201, %v947
          %v952 = vmul.f32 %v946, %v946
          %v953 = vmul.f32 %v948, %v948
          %v954 = vmul.f32 %v949, %v949
          %v955 = vmul.f32 %v950, %v950
          %v956 = vmul.f32 %v951, %v951
          %v957 = vadd.f32 %v952, %v953
          %v958 = vadd.f32 %v952, %v954
          %v959 = vadd.f32 %v952, %v955
          %v960 = vadd.f32 %v952, %v956
          %vm961 = vcmp.lt.f32.partialorder %v957, %v930
          %vm962 = vcmp.lt.f32.partialorder %v958, %v931
          %vm963 = vcmp.lt.f32.partialorder %v959, %v932
          %vm964 = vcmp.lt.f32.partialorder %v960, %v933
          %v965 = vmin.f32 %v930, %v957
          %v966 = vmin.f32 %v931, %v958
          %v967 = vmin.f32 %v932, %v959
          %v968 = vmin.f32 %v933, %v960
          %v969 = vstv %s944
          %v970 = vsel %vm961, %v969, %v935
          %v971 = vsel %vm962, %v969, %v936
          %v972 = vsel %vm963, %v969, %v937
          %v973 = vsel %vm964, %v969, %v938
          %s974 = sadd.s32 %s202, 22
          %s975 = sld [smem:[#allocation2 + %s974]]
          %s976 = sadd.s32 %s205, 22
          %s977 = sld [smem:[#allocation2 + %s976]]
          %s978 = sadd.s32 %s208, 22
          %s979 = sld [smem:[#allocation2 + %s978]]
          %v980 = vstv %s975
          %v981 = vsub.f32 %v179, %v980
          %v982 = vstv %s977
          %v983 = vsub.f32 %v198, %v982
          %v984 = vsub.f32 %v199, %v982
          %v985 = vsub.f32 %v200, %v982
          %v986 = vsub.f32 %v201, %v982
          %v987 = vmul.f32 %v981, %v981
          %v988 = vmul.f32 %v983, %v983
          %v989 = vmul.f32 %v984, %v984
          %v990 = vmul.f32 %v985, %v985
          %v991 = vmul.f32 %v986, %v986
          %v992 = vadd.f32 %v987, %v988
          %v993 = vadd.f32 %v987, %v989
          %v994 = vadd.f32 %v987, %v990
          %v995 = vadd.f32 %v987, %v991
          %vm996 = vcmp.lt.f32.partialorder %v992, %v965
          %vm997 = vcmp.lt.f32.partialorder %v993, %v966
          %vm998 = vcmp.lt.f32.partialorder %v994, %v967
          %vm999 = vcmp.lt.f32.partialorder %v995, %v968
          %v1000 = vmin.f32 %v965, %v992
          %v1001 = vmin.f32 %v966, %v993
          %v1002 = vmin.f32 %v967, %v994
          %v1003 = vmin.f32 %v968, %v995
          %v1004 = vstv %s979
          %v1005 = vsel %vm996, %v1004, %v970
          %v1006 = vsel %vm997, %v1004, %v971
          %v1007 = vsel %vm998, %v1004, %v972
          %v1008 = vsel %vm999, %v1004, %v973
          %s1009 = sadd.s32 %s202, 23
          %s1010 = sld [smem:[#allocation2 + %s1009]]
          %s1011 = sadd.s32 %s205, 23
          %s1012 = sld [smem:[#allocation2 + %s1011]]
          %s1013 = sadd.s32 %s208, 23
          %s1014 = sld [smem:[#allocation2 + %s1013]]
          %v1015 = vstv %s1010
          %v1016 = vsub.f32 %v179, %v1015
          %v1017 = vstv %s1012
          %v1018 = vsub.f32 %v198, %v1017
          %v1019 = vsub.f32 %v199, %v1017
          %v1020 = vsub.f32 %v200, %v1017
          %v1021 = vsub.f32 %v201, %v1017
          %v1022 = vmul.f32 %v1016, %v1016
          %v1023 = vmul.f32 %v1018, %v1018
          %v1024 = vmul.f32 %v1019, %v1019
          %v1025 = vmul.f32 %v1020, %v1020
          %v1026 = vmul.f32 %v1021, %v1021
          %v1027 = vadd.f32 %v1022, %v1023
          %v1028 = vadd.f32 %v1022, %v1024
          %v1029 = vadd.f32 %v1022, %v1025
          %v1030 = vadd.f32 %v1022, %v1026
          %vm1031 = vcmp.lt.f32.partialorder %v1027, %v1000
          %vm1032 = vcmp.lt.f32.partialorder %v1028, %v1001
          %vm1033 = vcmp.lt.f32.partialorder %v1029, %v1002
          %vm1034 = vcmp.lt.f32.partialorder %v1030, %v1003
          %v1035 = vmin.f32 %v1000, %v1027
          %v1036 = vmin.f32 %v1001, %v1028
          %v1037 = vmin.f32 %v1002, %v1029
          %v1038 = vmin.f32 %v1003, %v1030
          %v1039 = vstv %s1014
          %v1040 = vsel %vm1031, %v1039, %v1005
          %v1041 = vsel %vm1032, %v1039, %v1006
          %v1042 = vsel %vm1033, %v1039, %v1007
          %v1043 = vsel %vm1034, %v1039, %v1008
          %s1044 = sadd.s32 %s202, 24
          %s1045 = sld [smem:[#allocation2 + %s1044]]
          %s1046 = sadd.s32 %s205, 24
          %s1047 = sld [smem:[#allocation2 + %s1046]]
          %s1048 = sadd.s32 %s208, 24
          %s1049 = sld [smem:[#allocation2 + %s1048]]
          %v1050 = vstv %s1045
          %v1051 = vsub.f32 %v179, %v1050
          %v1052 = vstv %s1047
          %v1053 = vsub.f32 %v198, %v1052
          %v1054 = vsub.f32 %v199, %v1052
          %v1055 = vsub.f32 %v200, %v1052
          %v1056 = vsub.f32 %v201, %v1052
          %v1057 = vmul.f32 %v1051, %v1051
          %v1058 = vmul.f32 %v1053, %v1053
          %v1059 = vmul.f32 %v1054, %v1054
          %v1060 = vmul.f32 %v1055, %v1055
          %v1061 = vmul.f32 %v1056, %v1056
          %v1062 = vadd.f32 %v1057, %v1058
          %v1063 = vadd.f32 %v1057, %v1059
          %v1064 = vadd.f32 %v1057, %v1060
          %v1065 = vadd.f32 %v1057, %v1061
          %vm1066 = vcmp.lt.f32.partialorder %v1062, %v1035
          %vm1067 = vcmp.lt.f32.partialorder %v1063, %v1036
          %vm1068 = vcmp.lt.f32.partialorder %v1064, %v1037
          %vm1069 = vcmp.lt.f32.partialorder %v1065, %v1038
          %v1070 = vmin.f32 %v1035, %v1062
          %v1071 = vmin.f32 %v1036, %v1063
          %v1072 = vmin.f32 %v1037, %v1064
          %v1073 = vmin.f32 %v1038, %v1065
          %v1074 = vstv %s1049
          %v1075 = vsel %vm1066, %v1074, %v1040
          %v1076 = vsel %vm1067, %v1074, %v1041
          %v1077 = vsel %vm1068, %v1074, %v1042
          %v1078 = vsel %vm1069, %v1074, %v1043
          %s1079 = sadd.s32 %s202, 25
          %s1080 = sld [smem:[#allocation2 + %s1079]]
          %s1081 = sadd.s32 %s205, 25
          %s1082 = sld [smem:[#allocation2 + %s1081]]
          %s1083 = sadd.s32 %s208, 25
          %s1084 = sld [smem:[#allocation2 + %s1083]]
          %v1085 = vstv %s1080
          %v1086 = vsub.f32 %v179, %v1085
          %v1087 = vstv %s1082
          %v1088 = vsub.f32 %v198, %v1087
          %v1089 = vsub.f32 %v199, %v1087
          %v1090 = vsub.f32 %v200, %v1087
          %v1091 = vsub.f32 %v201, %v1087
          %v1092 = vmul.f32 %v1086, %v1086
          %v1093 = vmul.f32 %v1088, %v1088
          %v1094 = vmul.f32 %v1089, %v1089
          %v1095 = vmul.f32 %v1090, %v1090
          %v1096 = vmul.f32 %v1091, %v1091
          %v1097 = vadd.f32 %v1092, %v1093
          %v1098 = vadd.f32 %v1092, %v1094
          %v1099 = vadd.f32 %v1092, %v1095
          %v1100 = vadd.f32 %v1092, %v1096
          %vm1101 = vcmp.lt.f32.partialorder %v1097, %v1070
          %vm1102 = vcmp.lt.f32.partialorder %v1098, %v1071
          %vm1103 = vcmp.lt.f32.partialorder %v1099, %v1072
          %vm1104 = vcmp.lt.f32.partialorder %v1100, %v1073
          %v1105 = vmin.f32 %v1070, %v1097
          %v1106 = vmin.f32 %v1071, %v1098
          %v1107 = vmin.f32 %v1072, %v1099
          %v1108 = vmin.f32 %v1073, %v1100
          %v1109 = vstv %s1084
          %v1110 = vsel %vm1101, %v1109, %v1075
          %v1111 = vsel %vm1102, %v1109, %v1076
          %v1112 = vsel %vm1103, %v1109, %v1077
          %v1113 = vsel %vm1104, %v1109, %v1078
          %s1114 = sadd.s32 %s202, 26
          %s1115 = sld [smem:[#allocation2 + %s1114]]
          %s1116 = sadd.s32 %s205, 26
          %s1117 = sld [smem:[#allocation2 + %s1116]]
          %s1118 = sadd.s32 %s208, 26
          %s1119 = sld [smem:[#allocation2 + %s1118]]
          %v1120 = vstv %s1115
          %v1121 = vsub.f32 %v179, %v1120
          %v1122 = vstv %s1117
          %v1123 = vsub.f32 %v198, %v1122
          %v1124 = vsub.f32 %v199, %v1122
          %v1125 = vsub.f32 %v200, %v1122
          %v1126 = vsub.f32 %v201, %v1122
          %v1127 = vmul.f32 %v1121, %v1121
          %v1128 = vmul.f32 %v1123, %v1123
          %v1129 = vmul.f32 %v1124, %v1124
          %v1130 = vmul.f32 %v1125, %v1125
          %v1131 = vmul.f32 %v1126, %v1126
          %v1132 = vadd.f32 %v1127, %v1128
          %v1133 = vadd.f32 %v1127, %v1129
          %v1134 = vadd.f32 %v1127, %v1130
          %v1135 = vadd.f32 %v1127, %v1131
          %vm1136 = vcmp.lt.f32.partialorder %v1132, %v1105
          %vm1137 = vcmp.lt.f32.partialorder %v1133, %v1106
          %vm1138 = vcmp.lt.f32.partialorder %v1134, %v1107
          %vm1139 = vcmp.lt.f32.partialorder %v1135, %v1108
          %v1140 = vmin.f32 %v1105, %v1132
          %v1141 = vmin.f32 %v1106, %v1133
          %v1142 = vmin.f32 %v1107, %v1134
          %v1143 = vmin.f32 %v1108, %v1135
          %v1144 = vstv %s1119
          %v1145 = vsel %vm1136, %v1144, %v1110
          %v1146 = vsel %vm1137, %v1144, %v1111
          %v1147 = vsel %vm1138, %v1144, %v1112
          %v1148 = vsel %vm1139, %v1144, %v1113
          %s1149 = sadd.s32 %s202, 27
          %s1150 = sld [smem:[#allocation2 + %s1149]]
          %s1151 = sadd.s32 %s205, 27
          %s1152 = sld [smem:[#allocation2 + %s1151]]
          %s1153 = sadd.s32 %s208, 27
          %s1154 = sld [smem:[#allocation2 + %s1153]]
          %v1155 = vstv %s1150
          %v1156 = vsub.f32 %v179, %v1155
          %v1157 = vstv %s1152
          %v1158 = vsub.f32 %v198, %v1157
          %v1159 = vsub.f32 %v199, %v1157
          %v1160 = vsub.f32 %v200, %v1157
          %v1161 = vsub.f32 %v201, %v1157
          %v1162 = vmul.f32 %v1156, %v1156
          %v1163 = vmul.f32 %v1158, %v1158
          %v1164 = vmul.f32 %v1159, %v1159
          %v1165 = vmul.f32 %v1160, %v1160
          %v1166 = vmul.f32 %v1161, %v1161
          %v1167 = vadd.f32 %v1162, %v1163
          %v1168 = vadd.f32 %v1162, %v1164
          %v1169 = vadd.f32 %v1162, %v1165
          %v1170 = vadd.f32 %v1162, %v1166
          %vm1171 = vcmp.lt.f32.partialorder %v1167, %v1140
          %vm1172 = vcmp.lt.f32.partialorder %v1168, %v1141
          %vm1173 = vcmp.lt.f32.partialorder %v1169, %v1142
          %vm1174 = vcmp.lt.f32.partialorder %v1170, %v1143
          %v1175 = vmin.f32 %v1140, %v1167
          %v1176 = vmin.f32 %v1141, %v1168
          %v1177 = vmin.f32 %v1142, %v1169
          %v1178 = vmin.f32 %v1143, %v1170
          %v1179 = vstv %s1154
          %v1180 = vsel %vm1171, %v1179, %v1145
          %v1181 = vsel %vm1172, %v1179, %v1146
          %v1182 = vsel %vm1173, %v1179, %v1147
          %v1183 = vsel %vm1174, %v1179, %v1148
          %s1184 = sadd.s32 %s202, 28
          %s1185 = sld [smem:[#allocation2 + %s1184]]
          %s1186 = sadd.s32 %s205, 28
          %s1187 = sld [smem:[#allocation2 + %s1186]]
          %s1188 = sadd.s32 %s208, 28
          %s1189 = sld [smem:[#allocation2 + %s1188]]
          %v1190 = vstv %s1185
          %v1191 = vsub.f32 %v179, %v1190
          %v1192 = vstv %s1187
          %v1193 = vsub.f32 %v198, %v1192
          %v1194 = vsub.f32 %v199, %v1192
          %v1195 = vsub.f32 %v200, %v1192
          %v1196 = vsub.f32 %v201, %v1192
          %v1197 = vmul.f32 %v1191, %v1191
          %v1198 = vmul.f32 %v1193, %v1193
          %v1199 = vmul.f32 %v1194, %v1194
          %v1200 = vmul.f32 %v1195, %v1195
          %v1201 = vmul.f32 %v1196, %v1196
          %v1202 = vadd.f32 %v1197, %v1198
          %v1203 = vadd.f32 %v1197, %v1199
          %v1204 = vadd.f32 %v1197, %v1200
          %v1205 = vadd.f32 %v1197, %v1201
          %vm1206 = vcmp.lt.f32.partialorder %v1202, %v1175
          %vm1207 = vcmp.lt.f32.partialorder %v1203, %v1176
          %vm1208 = vcmp.lt.f32.partialorder %v1204, %v1177
          %vm1209 = vcmp.lt.f32.partialorder %v1205, %v1178
          %v1210 = vmin.f32 %v1175, %v1202
          %v1211 = vmin.f32 %v1176, %v1203
          %v1212 = vmin.f32 %v1177, %v1204
          %v1213 = vmin.f32 %v1178, %v1205
          %v1214 = vstv %s1189
          %v1215 = vsel %vm1206, %v1214, %v1180
          %v1216 = vsel %vm1207, %v1214, %v1181
          %v1217 = vsel %vm1208, %v1214, %v1182
          %v1218 = vsel %vm1209, %v1214, %v1183
          %s1219 = sadd.s32 %s202, 29
          %s1220 = sld [smem:[#allocation2 + %s1219]]
          %s1221 = sadd.s32 %s205, 29
          %s1222 = sld [smem:[#allocation2 + %s1221]]
          %s1223 = sadd.s32 %s208, 29
          %s1224 = sld [smem:[#allocation2 + %s1223]]
          %v1225 = vstv %s1220
          %v1226 = vsub.f32 %v179, %v1225
          %v1227 = vstv %s1222
          %v1228 = vsub.f32 %v198, %v1227
          %v1229 = vsub.f32 %v199, %v1227
          %v1230 = vsub.f32 %v200, %v1227
          %v1231 = vsub.f32 %v201, %v1227
          %v1232 = vmul.f32 %v1226, %v1226
          %v1233 = vmul.f32 %v1228, %v1228
          %v1234 = vmul.f32 %v1229, %v1229
          %v1235 = vmul.f32 %v1230, %v1230
          %v1236 = vmul.f32 %v1231, %v1231
          %v1237 = vadd.f32 %v1232, %v1233
          %v1238 = vadd.f32 %v1232, %v1234
          %v1239 = vadd.f32 %v1232, %v1235
          %v1240 = vadd.f32 %v1232, %v1236
          %vm1241 = vcmp.lt.f32.partialorder %v1237, %v1210
          %vm1242 = vcmp.lt.f32.partialorder %v1238, %v1211
          %vm1243 = vcmp.lt.f32.partialorder %v1239, %v1212
          %vm1244 = vcmp.lt.f32.partialorder %v1240, %v1213
          %v1245 = vmin.f32 %v1210, %v1237
          %v1246 = vmin.f32 %v1211, %v1238
          %v1247 = vmin.f32 %v1212, %v1239
          %v1248 = vmin.f32 %v1213, %v1240
          %v1249 = vstv %s1224
          %v1250 = vsel %vm1241, %v1249, %v1215
          %v1251 = vsel %vm1242, %v1249, %v1216
          %v1252 = vsel %vm1243, %v1249, %v1217
          %v1253 = vsel %vm1244, %v1249, %v1218
          %s1254 = sadd.s32 %s202, 30
          %s1255 = sld [smem:[#allocation2 + %s1254]]
          %s1256 = sadd.s32 %s205, 30
          %s1257 = sld [smem:[#allocation2 + %s1256]]
          %s1258 = sadd.s32 %s208, 30
          %s1259 = sld [smem:[#allocation2 + %s1258]]
          %v1260 = vstv %s1255
          %v1261 = vsub.f32 %v179, %v1260
          %v1262 = vstv %s1257
          %v1263 = vsub.f32 %v198, %v1262
          %v1264 = vsub.f32 %v199, %v1262
          %v1265 = vsub.f32 %v200, %v1262
          %v1266 = vsub.f32 %v201, %v1262
          %v1267 = vmul.f32 %v1261, %v1261
          %v1268 = vmul.f32 %v1263, %v1263
          %v1269 = vmul.f32 %v1264, %v1264
          %v1270 = vmul.f32 %v1265, %v1265
          %v1271 = vmul.f32 %v1266, %v1266
          %v1272 = vadd.f32 %v1267, %v1268
          %v1273 = vadd.f32 %v1267, %v1269
          %v1274 = vadd.f32 %v1267, %v1270
          %v1275 = vadd.f32 %v1267, %v1271
          %vm1276 = vcmp.lt.f32.partialorder %v1272, %v1245
          %vm1277 = vcmp.lt.f32.partialorder %v1273, %v1246
          %vm1278 = vcmp.lt.f32.partialorder %v1274, %v1247
          %vm1279 = vcmp.lt.f32.partialorder %v1275, %v1248
          %v1280 = vmin.f32 %v1245, %v1272
          %v1281 = vmin.f32 %v1246, %v1273
          %v1282 = vmin.f32 %v1247, %v1274
          %v1283 = vmin.f32 %v1248, %v1275
          %v1284 = vstv %s1259
          %v1285 = vsel %vm1276, %v1284, %v1250
          %v1286 = vsel %vm1277, %v1284, %v1251
          %v1287 = vsel %vm1278, %v1284, %v1252
          %v1288 = vsel %vm1279, %v1284, %v1253
          %s1289 = sadd.s32 %s202, 31
          %s1290 = sld [smem:[#allocation2 + %s1289]]
          %s1291 = sadd.s32 %s205, 31
          %s1292 = sld [smem:[#allocation2 + %s1291]]
          %s1293 = sadd.s32 %s208, 31
          %s1294 = sld [smem:[#allocation2 + %s1293]]
          %v1295 = vstv %s1290
          %v1296 = vsub.f32 %v179, %v1295
          %v1297 = vstv %s1292
          %v1298 = vsub.f32 %v198, %v1297
          %v1299 = vsub.f32 %v199, %v1297
          %v1300 = vsub.f32 %v200, %v1297
          %v1301 = vsub.f32 %v201, %v1297
          %v1302 = vmul.f32 %v1296, %v1296
          %v1303 = vmul.f32 %v1298, %v1298
          %v1304 = vmul.f32 %v1299, %v1299
          %v1305 = vmul.f32 %v1300, %v1300
          %v1306 = vmul.f32 %v1301, %v1301
          %v1307 = vadd.f32 %v1302, %v1303
          %v1308 = vadd.f32 %v1302, %v1304
          %v1309 = vadd.f32 %v1302, %v1305
          %v1310 = vadd.f32 %v1302, %v1306
          %vm1311 = vcmp.lt.f32.partialorder %v1307, %v1280
          %vm1312 = vcmp.lt.f32.partialorder %v1308, %v1281
          %vm1313 = vcmp.lt.f32.partialorder %v1309, %v1282
          %vm1314 = vcmp.lt.f32.partialorder %v1310, %v1283
          %v1315 = vmin.f32 %v1280, %v1307
          %v1316 = vmin.f32 %v1281, %v1308
          %v1317 = vmin.f32 %v1282, %v1309
          %v1318 = vmin.f32 %v1283, %v1310
          %v1319 = vstv %s1294
          %v1320 = vsel %vm1311, %v1319, %v1285
          %v1321 = vsel %vm1312, %v1319, %v1286
          %v1322 = vsel %vm1313, %v1319, %v1287
          %v1323 = vsel %vm1314, %v1319, %v1288
          %s1324 = sadd.s32 %s202, 32
          %s1325 = sld [smem:[#allocation2 + %s1324]]
          %s1326 = sadd.s32 %s205, 32
          %s1327 = sld [smem:[#allocation2 + %s1326]]
          %s1328 = sadd.s32 %s208, 32
          %s1329 = sld [smem:[#allocation2 + %s1328]]
          %v1330 = vstv %s1325
          %v1331 = vsub.f32 %v179, %v1330
          %v1332 = vstv %s1327
          %v1333 = vsub.f32 %v198, %v1332
          %v1334 = vsub.f32 %v199, %v1332
          %v1335 = vsub.f32 %v200, %v1332
          %v1336 = vsub.f32 %v201, %v1332
          %v1337 = vmul.f32 %v1331, %v1331
          %v1338 = vmul.f32 %v1333, %v1333
          %v1339 = vmul.f32 %v1334, %v1334
          %v1340 = vmul.f32 %v1335, %v1335
          %v1341 = vmul.f32 %v1336, %v1336
          %v1342 = vadd.f32 %v1337, %v1338
          %v1343 = vadd.f32 %v1337, %v1339
          %v1344 = vadd.f32 %v1337, %v1340
          %v1345 = vadd.f32 %v1337, %v1341
          %vm1346 = vcmp.lt.f32.partialorder %v1342, %v1315
          %vm1347 = vcmp.lt.f32.partialorder %v1343, %v1316
          %vm1348 = vcmp.lt.f32.partialorder %v1344, %v1317
          %vm1349 = vcmp.lt.f32.partialorder %v1345, %v1318
          %v1350 = vmin.f32 %v1315, %v1342
          %v1351 = vmin.f32 %v1316, %v1343
          %v1352 = vmin.f32 %v1317, %v1344
          %v1353 = vmin.f32 %v1318, %v1345
          %v1354 = vstv %s1329
          %v1355 = vsel %vm1346, %v1354, %v1320
          %v1356 = vsel %vm1347, %v1354, %v1321
          %v1357 = vsel %vm1348, %v1354, %v1322
          %v1358 = vsel %vm1349, %v1354, %v1323
          %s1359 = sadd.s32 %s202, 33
          %s1360 = sld [smem:[#allocation2 + %s1359]]
          %s1361 = sadd.s32 %s205, 33
          %s1362 = sld [smem:[#allocation2 + %s1361]]
          %s1363 = sadd.s32 %s208, 33
          %s1364 = sld [smem:[#allocation2 + %s1363]]
          %v1365 = vstv %s1360
          %v1366 = vsub.f32 %v179, %v1365
          %v1367 = vstv %s1362
          %v1368 = vsub.f32 %v198, %v1367
          %v1369 = vsub.f32 %v199, %v1367
          %v1370 = vsub.f32 %v200, %v1367
          %v1371 = vsub.f32 %v201, %v1367
          %v1372 = vmul.f32 %v1366, %v1366
          %v1373 = vmul.f32 %v1368, %v1368
          %v1374 = vmul.f32 %v1369, %v1369
          %v1375 = vmul.f32 %v1370, %v1370
          %v1376 = vmul.f32 %v1371, %v1371
          %v1377 = vadd.f32 %v1372, %v1373
          %v1378 = vadd.f32 %v1372, %v1374
          %v1379 = vadd.f32 %v1372, %v1375
          %v1380 = vadd.f32 %v1372, %v1376
          %vm1381 = vcmp.lt.f32.partialorder %v1377, %v1350
          %vm1382 = vcmp.lt.f32.partialorder %v1378, %v1351
          %vm1383 = vcmp.lt.f32.partialorder %v1379, %v1352
          %vm1384 = vcmp.lt.f32.partialorder %v1380, %v1353
          %v1385 = vmin.f32 %v1350, %v1377
          %v1386 = vmin.f32 %v1351, %v1378
          %v1387 = vmin.f32 %v1352, %v1379
          %v1388 = vmin.f32 %v1353, %v1380
          %v1389 = vstv %s1364
          %v1390 = vsel %vm1381, %v1389, %v1355
          %v1391 = vsel %vm1382, %v1389, %v1356
          %v1392 = vsel %vm1383, %v1389, %v1357
          %v1393 = vsel %vm1384, %v1389, %v1358
          %s1394 = sadd.s32 %s202, 34
          %s1395 = sld [smem:[#allocation2 + %s1394]]
          %s1396 = sadd.s32 %s205, 34
          %s1397 = sld [smem:[#allocation2 + %s1396]]
          %s1398 = sadd.s32 %s208, 34
          %s1399 = sld [smem:[#allocation2 + %s1398]]
          %v1400 = vstv %s1395
          %v1401 = vsub.f32 %v179, %v1400
          %v1402 = vstv %s1397
          %v1403 = vsub.f32 %v198, %v1402
          %v1404 = vsub.f32 %v199, %v1402
          %v1405 = vsub.f32 %v200, %v1402
          %v1406 = vsub.f32 %v201, %v1402
          %v1407 = vmul.f32 %v1401, %v1401
          %v1408 = vmul.f32 %v1403, %v1403
          %v1409 = vmul.f32 %v1404, %v1404
          %v1410 = vmul.f32 %v1405, %v1405
          %v1411 = vmul.f32 %v1406, %v1406
          %v1412 = vadd.f32 %v1407, %v1408
          %v1413 = vadd.f32 %v1407, %v1409
          %v1414 = vadd.f32 %v1407, %v1410
          %v1415 = vadd.f32 %v1407, %v1411
          %vm1416 = vcmp.lt.f32.partialorder %v1412, %v1385
          %vm1417 = vcmp.lt.f32.partialorder %v1413, %v1386
          %vm1418 = vcmp.lt.f32.partialorder %v1414, %v1387
          %vm1419 = vcmp.lt.f32.partialorder %v1415, %v1388
          %v1420 = vmin.f32 %v1385, %v1412
          %v1421 = vmin.f32 %v1386, %v1413
          %v1422 = vmin.f32 %v1387, %v1414
          %v1423 = vmin.f32 %v1388, %v1415
          %v1424 = vstv %s1399
          %v1425 = vsel %vm1416, %v1424, %v1390
          %v1426 = vsel %vm1417, %v1424, %v1391
          %v1427 = vsel %vm1418, %v1424, %v1392
          %v1428 = vsel %vm1419, %v1424, %v1393
          %s1429 = sadd.s32 %s202, 35
          %s1430 = sld [smem:[#allocation2 + %s1429]]
          %s1431 = sadd.s32 %s205, 35
          %s1432 = sld [smem:[#allocation2 + %s1431]]
          %s1433 = sadd.s32 %s208, 35
          %s1434 = sld [smem:[#allocation2 + %s1433]]
          %v1435 = vstv %s1430
          %v1436 = vsub.f32 %v179, %v1435
          %v1437 = vstv %s1432
          %v1438 = vsub.f32 %v198, %v1437
          %v1439 = vsub.f32 %v199, %v1437
          %v1440 = vsub.f32 %v200, %v1437
          %v1441 = vsub.f32 %v201, %v1437
          %v1442 = vmul.f32 %v1436, %v1436
          %v1443 = vmul.f32 %v1438, %v1438
          %v1444 = vmul.f32 %v1439, %v1439
          %v1445 = vmul.f32 %v1440, %v1440
          %v1446 = vmul.f32 %v1441, %v1441
          %v1447 = vadd.f32 %v1442, %v1443
          %v1448 = vadd.f32 %v1442, %v1444
          %v1449 = vadd.f32 %v1442, %v1445
          %v1450 = vadd.f32 %v1442, %v1446
          %vm1451 = vcmp.lt.f32.partialorder %v1447, %v1420
          %vm1452 = vcmp.lt.f32.partialorder %v1448, %v1421
          %vm1453 = vcmp.lt.f32.partialorder %v1449, %v1422
          %vm1454 = vcmp.lt.f32.partialorder %v1450, %v1423
          %v1455 = vmin.f32 %v1420, %v1447
          %v1456 = vmin.f32 %v1421, %v1448
          %v1457 = vmin.f32 %v1422, %v1449
          %v1458 = vmin.f32 %v1423, %v1450
          %v1459 = vstv %s1434
          %v1460 = vsel %vm1451, %v1459, %v1425
          %v1461 = vsel %vm1452, %v1459, %v1426
          %v1462 = vsel %vm1453, %v1459, %v1427
          %v1463 = vsel %vm1454, %v1459, %v1428
          %s1464 = sadd.s32 %s202, 36
          %s1465 = sld [smem:[#allocation2 + %s1464]]
          %s1466 = sadd.s32 %s205, 36
          %s1467 = sld [smem:[#allocation2 + %s1466]]
          %s1468 = sadd.s32 %s208, 36
          %s1469 = sld [smem:[#allocation2 + %s1468]]
          %v1470 = vstv %s1465
          %v1471 = vsub.f32 %v179, %v1470
          %v1472 = vstv %s1467
          %v1473 = vsub.f32 %v198, %v1472
          %v1474 = vsub.f32 %v199, %v1472
          %v1475 = vsub.f32 %v200, %v1472
          %v1476 = vsub.f32 %v201, %v1472
          %v1477 = vmul.f32 %v1471, %v1471
          %v1478 = vmul.f32 %v1473, %v1473
          %v1479 = vmul.f32 %v1474, %v1474
          %v1480 = vmul.f32 %v1475, %v1475
          %v1481 = vmul.f32 %v1476, %v1476
          %v1482 = vadd.f32 %v1477, %v1478
          %v1483 = vadd.f32 %v1477, %v1479
          %v1484 = vadd.f32 %v1477, %v1480
          %v1485 = vadd.f32 %v1477, %v1481
          %vm1486 = vcmp.lt.f32.partialorder %v1482, %v1455
          %vm1487 = vcmp.lt.f32.partialorder %v1483, %v1456
          %vm1488 = vcmp.lt.f32.partialorder %v1484, %v1457
          %vm1489 = vcmp.lt.f32.partialorder %v1485, %v1458
          %v1490 = vmin.f32 %v1455, %v1482
          %v1491 = vmin.f32 %v1456, %v1483
          %v1492 = vmin.f32 %v1457, %v1484
          %v1493 = vmin.f32 %v1458, %v1485
          %v1494 = vstv %s1469
          %v1495 = vsel %vm1486, %v1494, %v1460
          %v1496 = vsel %vm1487, %v1494, %v1461
          %v1497 = vsel %vm1488, %v1494, %v1462
          %v1498 = vsel %vm1489, %v1494, %v1463
          %s1499 = sadd.s32 %s202, 37
          %s1500 = sld [smem:[#allocation2 + %s1499]]
          %s1501 = sadd.s32 %s205, 37
          %s1502 = sld [smem:[#allocation2 + %s1501]]
          %s1503 = sadd.s32 %s208, 37
          %s1504 = sld [smem:[#allocation2 + %s1503]]
          %v1505 = vstv %s1500
          %v1506 = vsub.f32 %v179, %v1505
          %v1507 = vstv %s1502
          %v1508 = vsub.f32 %v198, %v1507
          %v1509 = vsub.f32 %v199, %v1507
          %v1510 = vsub.f32 %v200, %v1507
          %v1511 = vsub.f32 %v201, %v1507
          %v1512 = vmul.f32 %v1506, %v1506
          %v1513 = vmul.f32 %v1508, %v1508
          %v1514 = vmul.f32 %v1509, %v1509
          %v1515 = vmul.f32 %v1510, %v1510
          %v1516 = vmul.f32 %v1511, %v1511
          %v1517 = vadd.f32 %v1512, %v1513
          %v1518 = vadd.f32 %v1512, %v1514
          %v1519 = vadd.f32 %v1512, %v1515
          %v1520 = vadd.f32 %v1512, %v1516
          %vm1521 = vcmp.lt.f32.partialorder %v1517, %v1490
          %vm1522 = vcmp.lt.f32.partialorder %v1518, %v1491
          %vm1523 = vcmp.lt.f32.partialorder %v1519, %v1492
          %vm1524 = vcmp.lt.f32.partialorder %v1520, %v1493
          %v1525 = vmin.f32 %v1490, %v1517
          %v1526 = vmin.f32 %v1491, %v1518
          %v1527 = vmin.f32 %v1492, %v1519
          %v1528 = vmin.f32 %v1493, %v1520
          %v1529 = vstv %s1504
          %v1530 = vsel %vm1521, %v1529, %v1495
          %v1531 = vsel %vm1522, %v1529, %v1496
          %v1532 = vsel %vm1523, %v1529, %v1497
          %v1533 = vsel %vm1524, %v1529, %v1498
          %s1534 = sadd.s32 %s202, 38
          %s1535 = sld [smem:[#allocation2 + %s1534]]
          %s1536 = sadd.s32 %s205, 38
          %s1537 = sld [smem:[#allocation2 + %s1536]]
          %s1538 = sadd.s32 %s208, 38
          %s1539 = sld [smem:[#allocation2 + %s1538]]
          %v1540 = vstv %s1535
          %v1541 = vsub.f32 %v179, %v1540
          %v1542 = vstv %s1537
          %v1543 = vsub.f32 %v198, %v1542
          %v1544 = vsub.f32 %v199, %v1542
          %v1545 = vsub.f32 %v200, %v1542
          %v1546 = vsub.f32 %v201, %v1542
          %v1547 = vmul.f32 %v1541, %v1541
          %v1548 = vmul.f32 %v1543, %v1543
          %v1549 = vmul.f32 %v1544, %v1544
          %v1550 = vmul.f32 %v1545, %v1545
          %v1551 = vmul.f32 %v1546, %v1546
          %v1552 = vadd.f32 %v1547, %v1548
          %v1553 = vadd.f32 %v1547, %v1549
          %v1554 = vadd.f32 %v1547, %v1550
          %v1555 = vadd.f32 %v1547, %v1551
          %vm1556 = vcmp.lt.f32.partialorder %v1552, %v1525
          %vm1557 = vcmp.lt.f32.partialorder %v1553, %v1526
          %vm1558 = vcmp.lt.f32.partialorder %v1554, %v1527
          %vm1559 = vcmp.lt.f32.partialorder %v1555, %v1528
          %v1560 = vmin.f32 %v1525, %v1552
          %v1561 = vmin.f32 %v1526, %v1553
          %v1562 = vmin.f32 %v1527, %v1554
          %v1563 = vmin.f32 %v1528, %v1555
          %v1564 = vstv %s1539
          %v1565 = vsel %vm1556, %v1564, %v1530
          %v1566 = vsel %vm1557, %v1564, %v1531
          %v1567 = vsel %vm1558, %v1564, %v1532
          %v1568 = vsel %vm1559, %v1564, %v1533
          %s1569 = sadd.s32 %s202, 39
          %s1570 = sld [smem:[#allocation2 + %s1569]]
          %s1571 = sadd.s32 %s205, 39
          %s1572 = sld [smem:[#allocation2 + %s1571]]
          %s1573 = sadd.s32 %s208, 39
          %s1574 = sld [smem:[#allocation2 + %s1573]]
          %v1575 = vstv %s1570
          %v1576 = vsub.f32 %v179, %v1575
          %v1577 = vstv %s1572
          %v1578 = vsub.f32 %v198, %v1577
          %v1579 = vsub.f32 %v199, %v1577
          %v1580 = vsub.f32 %v200, %v1577
          %v1581 = vsub.f32 %v201, %v1577
          %v1582 = vmul.f32 %v1576, %v1576
          %v1583 = vmul.f32 %v1578, %v1578
          %v1584 = vmul.f32 %v1579, %v1579
          %v1585 = vmul.f32 %v1580, %v1580
          %v1586 = vmul.f32 %v1581, %v1581
          %v1587 = vadd.f32 %v1582, %v1583
          %v1588 = vadd.f32 %v1582, %v1584
          %v1589 = vadd.f32 %v1582, %v1585
          %v1590 = vadd.f32 %v1582, %v1586
          %vm1591 = vcmp.lt.f32.partialorder %v1587, %v1560
          %vm1592 = vcmp.lt.f32.partialorder %v1588, %v1561
          %vm1593 = vcmp.lt.f32.partialorder %v1589, %v1562
          %vm1594 = vcmp.lt.f32.partialorder %v1590, %v1563
          %v1595 = vmin.f32 %v1560, %v1587
          %v1596 = vmin.f32 %v1561, %v1588
          %v1597 = vmin.f32 %v1562, %v1589
          %v1598 = vmin.f32 %v1563, %v1590
          %v1599 = vstv %s1574
          %v1600 = vsel %vm1591, %v1599, %v1565
          %v1601 = vsel %vm1592, %v1599, %v1566
          %v1602 = vsel %vm1593, %v1599, %v1567
          %v1603 = vsel %vm1594, %v1599, %v1568
          %s1604 = sadd.s32 %s202, 40
          %s1605 = sld [smem:[#allocation2 + %s1604]]
          %s1606 = sadd.s32 %s205, 40
          %s1607 = sld [smem:[#allocation2 + %s1606]]
          %s1608 = sadd.s32 %s208, 40
          %s1609 = sld [smem:[#allocation2 + %s1608]]
          %v1610 = vstv %s1605
          %v1611 = vsub.f32 %v179, %v1610
          %v1612 = vstv %s1607
          %v1613 = vsub.f32 %v198, %v1612
          %v1614 = vsub.f32 %v199, %v1612
          %v1615 = vsub.f32 %v200, %v1612
          %v1616 = vsub.f32 %v201, %v1612
          %v1617 = vmul.f32 %v1611, %v1611
          %v1618 = vmul.f32 %v1613, %v1613
          %v1619 = vmul.f32 %v1614, %v1614
          %v1620 = vmul.f32 %v1615, %v1615
          %v1621 = vmul.f32 %v1616, %v1616
          %v1622 = vadd.f32 %v1617, %v1618
          %v1623 = vadd.f32 %v1617, %v1619
          %v1624 = vadd.f32 %v1617, %v1620
          %v1625 = vadd.f32 %v1617, %v1621
          %vm1626 = vcmp.lt.f32.partialorder %v1622, %v1595
          %vm1627 = vcmp.lt.f32.partialorder %v1623, %v1596
          %vm1628 = vcmp.lt.f32.partialorder %v1624, %v1597
          %vm1629 = vcmp.lt.f32.partialorder %v1625, %v1598
          %v1630 = vmin.f32 %v1595, %v1622
          %v1631 = vmin.f32 %v1596, %v1623
          %v1632 = vmin.f32 %v1597, %v1624
          %v1633 = vmin.f32 %v1598, %v1625
          %v1634 = vstv %s1609
          %v1635 = vsel %vm1626, %v1634, %v1600
          %v1636 = vsel %vm1627, %v1634, %v1601
          %v1637 = vsel %vm1628, %v1634, %v1602
          %v1638 = vsel %vm1629, %v1634, %v1603
          %s1639 = sadd.s32 %s202, 41
          %s1640 = sld [smem:[#allocation2 + %s1639]]
          %s1641 = sadd.s32 %s205, 41
          %s1642 = sld [smem:[#allocation2 + %s1641]]
          %s1643 = sadd.s32 %s208, 41
          %s1644 = sld [smem:[#allocation2 + %s1643]]
          %v1645 = vstv %s1640
          %v1646 = vsub.f32 %v179, %v1645
          %v1647 = vstv %s1642
          %v1648 = vsub.f32 %v198, %v1647
          %v1649 = vsub.f32 %v199, %v1647
          %v1650 = vsub.f32 %v200, %v1647
          %v1651 = vsub.f32 %v201, %v1647
          %v1652 = vmul.f32 %v1646, %v1646
          %v1653 = vmul.f32 %v1648, %v1648
          %v1654 = vmul.f32 %v1649, %v1649
          %v1655 = vmul.f32 %v1650, %v1650
          %v1656 = vmul.f32 %v1651, %v1651
          %v1657 = vadd.f32 %v1652, %v1653
          %v1658 = vadd.f32 %v1652, %v1654
          %v1659 = vadd.f32 %v1652, %v1655
          %v1660 = vadd.f32 %v1652, %v1656
          %vm1661 = vcmp.lt.f32.partialorder %v1657, %v1630
          %vm1662 = vcmp.lt.f32.partialorder %v1658, %v1631
          %vm1663 = vcmp.lt.f32.partialorder %v1659, %v1632
          %vm1664 = vcmp.lt.f32.partialorder %v1660, %v1633
          %v1665 = vmin.f32 %v1630, %v1657
          %v1666 = vmin.f32 %v1631, %v1658
          %v1667 = vmin.f32 %v1632, %v1659
          %v1668 = vmin.f32 %v1633, %v1660
          %v1669 = vstv %s1644
          %v1670 = vsel %vm1661, %v1669, %v1635
          %v1671 = vsel %vm1662, %v1669, %v1636
          %v1672 = vsel %vm1663, %v1669, %v1637
          %v1673 = vsel %vm1664, %v1669, %v1638
          %s1674 = sadd.s32 %s202, 42
          %s1675 = sld [smem:[#allocation2 + %s1674]]
          %s1676 = sadd.s32 %s205, 42
          %s1677 = sld [smem:[#allocation2 + %s1676]]
          %s1678 = sadd.s32 %s208, 42
          %s1679 = sld [smem:[#allocation2 + %s1678]]
          %v1680 = vstv %s1675
          %v1681 = vsub.f32 %v179, %v1680
          %v1682 = vstv %s1677
          %v1683 = vsub.f32 %v198, %v1682
          %v1684 = vsub.f32 %v199, %v1682
          %v1685 = vsub.f32 %v200, %v1682
          %v1686 = vsub.f32 %v201, %v1682
          %v1687 = vmul.f32 %v1681, %v1681
          %v1688 = vmul.f32 %v1683, %v1683
          %v1689 = vmul.f32 %v1684, %v1684
          %v1690 = vmul.f32 %v1685, %v1685
          %v1691 = vmul.f32 %v1686, %v1686
          %v1692 = vadd.f32 %v1687, %v1688
          %v1693 = vadd.f32 %v1687, %v1689
          %v1694 = vadd.f32 %v1687, %v1690
          %v1695 = vadd.f32 %v1687, %v1691
          %vm1696 = vcmp.lt.f32.partialorder %v1692, %v1665
          %vm1697 = vcmp.lt.f32.partialorder %v1693, %v1666
          %vm1698 = vcmp.lt.f32.partialorder %v1694, %v1667
          %vm1699 = vcmp.lt.f32.partialorder %v1695, %v1668
          %v1700 = vmin.f32 %v1665, %v1692
          %v1701 = vmin.f32 %v1666, %v1693
          %v1702 = vmin.f32 %v1667, %v1694
          %v1703 = vmin.f32 %v1668, %v1695
          %v1704 = vstv %s1679
          %v1705 = vsel %vm1696, %v1704, %v1670
          %v1706 = vsel %vm1697, %v1704, %v1671
          %v1707 = vsel %vm1698, %v1704, %v1672
          %v1708 = vsel %vm1699, %v1704, %v1673
          %s1709 = sadd.s32 %s202, 43
          %s1710 = sld [smem:[#allocation2 + %s1709]]
          %s1711 = sadd.s32 %s205, 43
          %s1712 = sld [smem:[#allocation2 + %s1711]]
          %s1713 = sadd.s32 %s208, 43
          %s1714 = sld [smem:[#allocation2 + %s1713]]
          %v1715 = vstv %s1710
          %v1716 = vsub.f32 %v179, %v1715
          %v1717 = vstv %s1712
          %v1718 = vsub.f32 %v198, %v1717
          %v1719 = vsub.f32 %v199, %v1717
          %v1720 = vsub.f32 %v200, %v1717
          %v1721 = vsub.f32 %v201, %v1717
          %v1722 = vmul.f32 %v1716, %v1716
          %v1723 = vmul.f32 %v1718, %v1718
          %v1724 = vmul.f32 %v1719, %v1719
          %v1725 = vmul.f32 %v1720, %v1720
          %v1726 = vmul.f32 %v1721, %v1721
          %v1727 = vadd.f32 %v1722, %v1723
          %v1728 = vadd.f32 %v1722, %v1724
          %v1729 = vadd.f32 %v1722, %v1725
          %v1730 = vadd.f32 %v1722, %v1726
          %vm1731 = vcmp.lt.f32.partialorder %v1727, %v1700
          %vm1732 = vcmp.lt.f32.partialorder %v1728, %v1701
          %vm1733 = vcmp.lt.f32.partialorder %v1729, %v1702
          %vm1734 = vcmp.lt.f32.partialorder %v1730, %v1703
          %v1735 = vmin.f32 %v1700, %v1727
          %v1736 = vmin.f32 %v1701, %v1728
          %v1737 = vmin.f32 %v1702, %v1729
          %v1738 = vmin.f32 %v1703, %v1730
          %v1739 = vstv %s1714
          %v1740 = vsel %vm1731, %v1739, %v1705
          %v1741 = vsel %vm1732, %v1739, %v1706
          %v1742 = vsel %vm1733, %v1739, %v1707
          %v1743 = vsel %vm1734, %v1739, %v1708
          %s1744 = sadd.s32 %s202, 44
          %s1745 = sld [smem:[#allocation2 + %s1744]]
          %s1746 = sadd.s32 %s205, 44
          %s1747 = sld [smem:[#allocation2 + %s1746]]
          %s1748 = sadd.s32 %s208, 44
          %s1749 = sld [smem:[#allocation2 + %s1748]]
          %v1750 = vstv %s1745
          %v1751 = vsub.f32 %v179, %v1750
          %v1752 = vstv %s1747
          %v1753 = vsub.f32 %v198, %v1752
          %v1754 = vsub.f32 %v199, %v1752
          %v1755 = vsub.f32 %v200, %v1752
          %v1756 = vsub.f32 %v201, %v1752
          %v1757 = vmul.f32 %v1751, %v1751
          %v1758 = vmul.f32 %v1753, %v1753
          %v1759 = vmul.f32 %v1754, %v1754
          %v1760 = vmul.f32 %v1755, %v1755
          %v1761 = vmul.f32 %v1756, %v1756
          %v1762 = vadd.f32 %v1757, %v1758
          %v1763 = vadd.f32 %v1757, %v1759
          %v1764 = vadd.f32 %v1757, %v1760
          %v1765 = vadd.f32 %v1757, %v1761
          %vm1766 = vcmp.lt.f32.partialorder %v1762, %v1735
          %vm1767 = vcmp.lt.f32.partialorder %v1763, %v1736
          %vm1768 = vcmp.lt.f32.partialorder %v1764, %v1737
          %vm1769 = vcmp.lt.f32.partialorder %v1765, %v1738
          %v1770 = vmin.f32 %v1735, %v1762
          %v1771 = vmin.f32 %v1736, %v1763
          %v1772 = vmin.f32 %v1737, %v1764
          %v1773 = vmin.f32 %v1738, %v1765
          %v1774 = vstv %s1749
          %v1775 = vsel %vm1766, %v1774, %v1740
          %v1776 = vsel %vm1767, %v1774, %v1741
          %v1777 = vsel %vm1768, %v1774, %v1742
          %v1778 = vsel %vm1769, %v1774, %v1743
          %s1779 = sadd.s32 %s202, 45
          %s1780 = sld [smem:[#allocation2 + %s1779]]
          %s1781 = sadd.s32 %s205, 45
          %s1782 = sld [smem:[#allocation2 + %s1781]]
          %s1783 = sadd.s32 %s208, 45
          %s1784 = sld [smem:[#allocation2 + %s1783]]
          %v1785 = vstv %s1780
          %v1786 = vsub.f32 %v179, %v1785
          %v1787 = vstv %s1782
          %v1788 = vsub.f32 %v198, %v1787
          %v1789 = vsub.f32 %v199, %v1787
          %v1790 = vsub.f32 %v200, %v1787
          %v1791 = vsub.f32 %v201, %v1787
          %v1792 = vmul.f32 %v1786, %v1786
          %v1793 = vmul.f32 %v1788, %v1788
          %v1794 = vmul.f32 %v1789, %v1789
          %v1795 = vmul.f32 %v1790, %v1790
          %v1796 = vmul.f32 %v1791, %v1791
          %v1797 = vadd.f32 %v1792, %v1793
          %v1798 = vadd.f32 %v1792, %v1794
          %v1799 = vadd.f32 %v1792, %v1795
          %v1800 = vadd.f32 %v1792, %v1796
          %vm1801 = vcmp.lt.f32.partialorder %v1797, %v1770
          %vm1802 = vcmp.lt.f32.partialorder %v1798, %v1771
          %vm1803 = vcmp.lt.f32.partialorder %v1799, %v1772
          %vm1804 = vcmp.lt.f32.partialorder %v1800, %v1773
          %v1805 = vmin.f32 %v1770, %v1797
          %v1806 = vmin.f32 %v1771, %v1798
          %v1807 = vmin.f32 %v1772, %v1799
          %v1808 = vmin.f32 %v1773, %v1800
          %v1809 = vstv %s1784
          %v1810 = vsel %vm1801, %v1809, %v1775
          %v1811 = vsel %vm1802, %v1809, %v1776
          %v1812 = vsel %vm1803, %v1809, %v1777
          %v1813 = vsel %vm1804, %v1809, %v1778
          %s1814 = sadd.s32 %s202, 46
          %s1815 = sld [smem:[#allocation2 + %s1814]]
          %s1816 = sadd.s32 %s205, 46
          %s1817 = sld [smem:[#allocation2 + %s1816]]
          %s1818 = sadd.s32 %s208, 46
          %s1819 = sld [smem:[#allocation2 + %s1818]]
          %v1820 = vstv %s1815
          %v1821 = vsub.f32 %v179, %v1820
          %v1822 = vstv %s1817
          %v1823 = vsub.f32 %v198, %v1822
          %v1824 = vsub.f32 %v199, %v1822
          %v1825 = vsub.f32 %v200, %v1822
          %v1826 = vsub.f32 %v201, %v1822
          %v1827 = vmul.f32 %v1821, %v1821
          %v1828 = vmul.f32 %v1823, %v1823
          %v1829 = vmul.f32 %v1824, %v1824
          %v1830 = vmul.f32 %v1825, %v1825
          %v1831 = vmul.f32 %v1826, %v1826
          %v1832 = vadd.f32 %v1827, %v1828
          %v1833 = vadd.f32 %v1827, %v1829
          %v1834 = vadd.f32 %v1827, %v1830
          %v1835 = vadd.f32 %v1827, %v1831
          %vm1836 = vcmp.lt.f32.partialorder %v1832, %v1805
          %vm1837 = vcmp.lt.f32.partialorder %v1833, %v1806
          %vm1838 = vcmp.lt.f32.partialorder %v1834, %v1807
          %vm1839 = vcmp.lt.f32.partialorder %v1835, %v1808
          %v1840 = vmin.f32 %v1805, %v1832
          %v1841 = vmin.f32 %v1806, %v1833
          %v1842 = vmin.f32 %v1807, %v1834
          %v1843 = vmin.f32 %v1808, %v1835
          %v1844 = vstv %s1819
          %v1845 = vsel %vm1836, %v1844, %v1810
          %v1846 = vsel %vm1837, %v1844, %v1811
          %v1847 = vsel %vm1838, %v1844, %v1812
          %v1848 = vsel %vm1839, %v1844, %v1813
          %s1849 = sadd.s32 %s202, 47
          %s1850 = sld [smem:[#allocation2 + %s1849]]
          %s1851 = sadd.s32 %s205, 47
          %s1852 = sld [smem:[#allocation2 + %s1851]]
          %s1853 = sadd.s32 %s208, 47
          %s1854 = sld [smem:[#allocation2 + %s1853]]
          %v1855 = vstv %s1850
          %v1856 = vsub.f32 %v179, %v1855
          %v1857 = vstv %s1852
          %v1858 = vsub.f32 %v198, %v1857
          %v1859 = vsub.f32 %v199, %v1857
          %v1860 = vsub.f32 %v200, %v1857
          %v1861 = vsub.f32 %v201, %v1857
          %v1862 = vmul.f32 %v1856, %v1856
          %v1863 = vmul.f32 %v1858, %v1858
          %v1864 = vmul.f32 %v1859, %v1859
          %v1865 = vmul.f32 %v1860, %v1860
          %v1866 = vmul.f32 %v1861, %v1861
          %v1867 = vadd.f32 %v1862, %v1863
          %v1868 = vadd.f32 %v1862, %v1864
          %v1869 = vadd.f32 %v1862, %v1865
          %v1870 = vadd.f32 %v1862, %v1866
          %vm1871 = vcmp.lt.f32.partialorder %v1867, %v1840
          %vm1872 = vcmp.lt.f32.partialorder %v1868, %v1841
          %vm1873 = vcmp.lt.f32.partialorder %v1869, %v1842
          %vm1874 = vcmp.lt.f32.partialorder %v1870, %v1843
          %v1875 = vmin.f32 %v1840, %v1867
          %v1876 = vmin.f32 %v1841, %v1868
          %v1877 = vmin.f32 %v1842, %v1869
          %v1878 = vmin.f32 %v1843, %v1870
          %v1879 = vstv %s1854
          %v1880 = vsel %vm1871, %v1879, %v1845
          %v1881 = vsel %vm1872, %v1879, %v1846
          %v1882 = vsel %vm1873, %v1879, %v1847
          %v1883 = vsel %vm1874, %v1879, %v1848
          %s1884 = sadd.s32 %s202, 48
          %s1885 = sld [smem:[#allocation2 + %s1884]]
          %s1886 = sadd.s32 %s205, 48
          %s1887 = sld [smem:[#allocation2 + %s1886]]
          %s1888 = sadd.s32 %s208, 48
          %s1889 = sld [smem:[#allocation2 + %s1888]]
          %v1890 = vstv %s1885
          %v1891 = vsub.f32 %v179, %v1890
          %v1892 = vstv %s1887
          %v1893 = vsub.f32 %v198, %v1892
          %v1894 = vsub.f32 %v199, %v1892
          %v1895 = vsub.f32 %v200, %v1892
          %v1896 = vsub.f32 %v201, %v1892
          %v1897 = vmul.f32 %v1891, %v1891
          %v1898 = vmul.f32 %v1893, %v1893
          %v1899 = vmul.f32 %v1894, %v1894
          %v1900 = vmul.f32 %v1895, %v1895
          %v1901 = vmul.f32 %v1896, %v1896
          %v1902 = vadd.f32 %v1897, %v1898
          %v1903 = vadd.f32 %v1897, %v1899
          %v1904 = vadd.f32 %v1897, %v1900
          %v1905 = vadd.f32 %v1897, %v1901
          %vm1906 = vcmp.lt.f32.partialorder %v1902, %v1875
          %vm1907 = vcmp.lt.f32.partialorder %v1903, %v1876
          %vm1908 = vcmp.lt.f32.partialorder %v1904, %v1877
          %vm1909 = vcmp.lt.f32.partialorder %v1905, %v1878
          %v1910 = vmin.f32 %v1875, %v1902
          %v1911 = vmin.f32 %v1876, %v1903
          %v1912 = vmin.f32 %v1877, %v1904
          %v1913 = vmin.f32 %v1878, %v1905
          %v1914 = vstv %s1889
          %v1915 = vsel %vm1906, %v1914, %v1880
          %v1916 = vsel %vm1907, %v1914, %v1881
          %v1917 = vsel %vm1908, %v1914, %v1882
          %v1918 = vsel %vm1909, %v1914, %v1883
          %s1919 = sadd.s32 %s202, 49
          %s1920 = sld [smem:[#allocation2 + %s1919]]
          %s1921 = sadd.s32 %s205, 49
          %s1922 = sld [smem:[#allocation2 + %s1921]]
          %s1923 = sadd.s32 %s208, 49
          %s1924 = sld [smem:[#allocation2 + %s1923]]
          %v1925 = vstv %s1920
          %v1926 = vsub.f32 %v179, %v1925
          %v1927 = vstv %s1922
          %v1928 = vsub.f32 %v198, %v1927
          %v1929 = vsub.f32 %v199, %v1927
          %v1930 = vsub.f32 %v200, %v1927
          %v1931 = vsub.f32 %v201, %v1927
          %v1932 = vmul.f32 %v1926, %v1926
          %v1933 = vmul.f32 %v1928, %v1928
          %v1934 = vmul.f32 %v1929, %v1929
          %v1935 = vmul.f32 %v1930, %v1930
          %v1936 = vmul.f32 %v1931, %v1931
          %v1937 = vadd.f32 %v1932, %v1933
          %v1938 = vadd.f32 %v1932, %v1934
          %v1939 = vadd.f32 %v1932, %v1935
          %v1940 = vadd.f32 %v1932, %v1936
          %vm1941 = vcmp.lt.f32.partialorder %v1937, %v1910
          %vm1942 = vcmp.lt.f32.partialorder %v1938, %v1911
          %vm1943 = vcmp.lt.f32.partialorder %v1939, %v1912
          %vm1944 = vcmp.lt.f32.partialorder %v1940, %v1913
          %v1945 = vmin.f32 %v1910, %v1937
          %v1946 = vmin.f32 %v1911, %v1938
          %v1947 = vmin.f32 %v1912, %v1939
          %v1948 = vmin.f32 %v1913, %v1940
          %v1949 = vstv %s1924
          %v1950 = vsel %vm1941, %v1949, %v1915
          %v1951 = vsel %vm1942, %v1949, %v1916
          %v1952 = vsel %vm1943, %v1949, %v1917
          %v1953 = vsel %vm1944, %v1949, %v1918
          %s1954 = sadd.s32 %s202, 50
          %s1955 = sld [smem:[#allocation2 + %s1954]]
          %s1956 = sadd.s32 %s205, 50
          %s1957 = sld [smem:[#allocation2 + %s1956]]
          %s1958 = sadd.s32 %s208, 50
          %s1959 = sld [smem:[#allocation2 + %s1958]]
          %v1960 = vstv %s1955
          %v1961 = vsub.f32 %v179, %v1960
          %v1962 = vstv %s1957
          %v1963 = vsub.f32 %v198, %v1962
          %v1964 = vsub.f32 %v199, %v1962
          %v1965 = vsub.f32 %v200, %v1962
          %v1966 = vsub.f32 %v201, %v1962
          %v1967 = vmul.f32 %v1961, %v1961
          %v1968 = vmul.f32 %v1963, %v1963
          %v1969 = vmul.f32 %v1964, %v1964
          %v1970 = vmul.f32 %v1965, %v1965
          %v1971 = vmul.f32 %v1966, %v1966
          %v1972 = vadd.f32 %v1967, %v1968
          %v1973 = vadd.f32 %v1967, %v1969
          %v1974 = vadd.f32 %v1967, %v1970
          %v1975 = vadd.f32 %v1967, %v1971
          %vm1976 = vcmp.lt.f32.partialorder %v1972, %v1945
          %vm1977 = vcmp.lt.f32.partialorder %v1973, %v1946
          %vm1978 = vcmp.lt.f32.partialorder %v1974, %v1947
          %vm1979 = vcmp.lt.f32.partialorder %v1975, %v1948
          %v1980 = vmin.f32 %v1945, %v1972
          %v1981 = vmin.f32 %v1946, %v1973
          %v1982 = vmin.f32 %v1947, %v1974
          %v1983 = vmin.f32 %v1948, %v1975
          %v1984 = vstv %s1959
          %v1985 = vsel %vm1976, %v1984, %v1950
          %v1986 = vsel %vm1977, %v1984, %v1951
          %v1987 = vsel %vm1978, %v1984, %v1952
          %v1988 = vsel %vm1979, %v1984, %v1953
          %s1989 = sadd.s32 %s202, 51
          %s1990 = sld [smem:[#allocation2 + %s1989]]
          %s1991 = sadd.s32 %s205, 51
          %s1992 = sld [smem:[#allocation2 + %s1991]]
          %s1993 = sadd.s32 %s208, 51
          %s1994 = sld [smem:[#allocation2 + %s1993]]
          %v1995 = vstv %s1990
          %v1996 = vsub.f32 %v179, %v1995
          %v1997 = vstv %s1992
          %v1998 = vsub.f32 %v198, %v1997
          %v1999 = vsub.f32 %v199, %v1997
          %v2000 = vsub.f32 %v200, %v1997
          %v2001 = vsub.f32 %v201, %v1997
          %v2002 = vmul.f32 %v1996, %v1996
          %v2003 = vmul.f32 %v1998, %v1998
          %v2004 = vmul.f32 %v1999, %v1999
          %v2005 = vmul.f32 %v2000, %v2000
          %v2006 = vmul.f32 %v2001, %v2001
          %v2007 = vadd.f32 %v2002, %v2003
          %v2008 = vadd.f32 %v2002, %v2004
          %v2009 = vadd.f32 %v2002, %v2005
          %v2010 = vadd.f32 %v2002, %v2006
          %vm2011 = vcmp.lt.f32.partialorder %v2007, %v1980
          %vm2012 = vcmp.lt.f32.partialorder %v2008, %v1981
          %vm2013 = vcmp.lt.f32.partialorder %v2009, %v1982
          %vm2014 = vcmp.lt.f32.partialorder %v2010, %v1983
          %v2015 = vmin.f32 %v1980, %v2007
          %v2016 = vmin.f32 %v1981, %v2008
          %v2017 = vmin.f32 %v1982, %v2009
          %v2018 = vmin.f32 %v1983, %v2010
          %v2019 = vstv %s1994
          %v2020 = vsel %vm2011, %v2019, %v1985
          %v2021 = vsel %vm2012, %v2019, %v1986
          %v2022 = vsel %vm2013, %v2019, %v1987
          %v2023 = vsel %vm2014, %v2019, %v1988
          %s2024 = sadd.s32 %s202, 52
          %s2025 = sld [smem:[#allocation2 + %s2024]]
          %s2026 = sadd.s32 %s205, 52
          %s2027 = sld [smem:[#allocation2 + %s2026]]
          %s2028 = sadd.s32 %s208, 52
          %s2029 = sld [smem:[#allocation2 + %s2028]]
          %v2030 = vstv %s2025
          %v2031 = vsub.f32 %v179, %v2030
          %v2032 = vstv %s2027
          %v2033 = vsub.f32 %v198, %v2032
          %v2034 = vsub.f32 %v199, %v2032
          %v2035 = vsub.f32 %v200, %v2032
          %v2036 = vsub.f32 %v201, %v2032
          %v2037 = vmul.f32 %v2031, %v2031
          %v2038 = vmul.f32 %v2033, %v2033
          %v2039 = vmul.f32 %v2034, %v2034
          %v2040 = vmul.f32 %v2035, %v2035
          %v2041 = vmul.f32 %v2036, %v2036
          %v2042 = vadd.f32 %v2037, %v2038
          %v2043 = vadd.f32 %v2037, %v2039
          %v2044 = vadd.f32 %v2037, %v2040
          %v2045 = vadd.f32 %v2037, %v2041
          %vm2046 = vcmp.lt.f32.partialorder %v2042, %v2015
          %vm2047 = vcmp.lt.f32.partialorder %v2043, %v2016
          %vm2048 = vcmp.lt.f32.partialorder %v2044, %v2017
          %vm2049 = vcmp.lt.f32.partialorder %v2045, %v2018
          %v2050 = vmin.f32 %v2015, %v2042
          %v2051 = vmin.f32 %v2016, %v2043
          %v2052 = vmin.f32 %v2017, %v2044
          %v2053 = vmin.f32 %v2018, %v2045
          %v2054 = vstv %s2029
          %v2055 = vsel %vm2046, %v2054, %v2020
          %v2056 = vsel %vm2047, %v2054, %v2021
          %v2057 = vsel %vm2048, %v2054, %v2022
          %v2058 = vsel %vm2049, %v2054, %v2023
          %s2059 = sadd.s32 %s202, 53
          %s2060 = sld [smem:[#allocation2 + %s2059]]
          %s2061 = sadd.s32 %s205, 53
          %s2062 = sld [smem:[#allocation2 + %s2061]]
          %s2063 = sadd.s32 %s208, 53
          %s2064 = sld [smem:[#allocation2 + %s2063]]
          %v2065 = vstv %s2060
          %v2066 = vsub.f32 %v179, %v2065
          %v2067 = vstv %s2062
          %v2068 = vsub.f32 %v198, %v2067
          %v2069 = vsub.f32 %v199, %v2067
          %v2070 = vsub.f32 %v200, %v2067
          %v2071 = vsub.f32 %v201, %v2067
          %v2072 = vmul.f32 %v2066, %v2066
          %v2073 = vmul.f32 %v2068, %v2068
          %v2074 = vmul.f32 %v2069, %v2069
          %v2075 = vmul.f32 %v2070, %v2070
          %v2076 = vmul.f32 %v2071, %v2071
          %v2077 = vadd.f32 %v2072, %v2073
          %v2078 = vadd.f32 %v2072, %v2074
          %v2079 = vadd.f32 %v2072, %v2075
          %v2080 = vadd.f32 %v2072, %v2076
          %vm2081 = vcmp.lt.f32.partialorder %v2077, %v2050
          %vm2082 = vcmp.lt.f32.partialorder %v2078, %v2051
          %vm2083 = vcmp.lt.f32.partialorder %v2079, %v2052
          %vm2084 = vcmp.lt.f32.partialorder %v2080, %v2053
          %v2085 = vmin.f32 %v2050, %v2077
          %v2086 = vmin.f32 %v2051, %v2078
          %v2087 = vmin.f32 %v2052, %v2079
          %v2088 = vmin.f32 %v2053, %v2080
          %v2089 = vstv %s2064
          %v2090 = vsel %vm2081, %v2089, %v2055
          %v2091 = vsel %vm2082, %v2089, %v2056
          %v2092 = vsel %vm2083, %v2089, %v2057
          %v2093 = vsel %vm2084, %v2089, %v2058
          %s2094 = sadd.s32 %s202, 54
          %s2095 = sld [smem:[#allocation2 + %s2094]]
          %s2096 = sadd.s32 %s205, 54
          %s2097 = sld [smem:[#allocation2 + %s2096]]
          %s2098 = sadd.s32 %s208, 54
          %s2099 = sld [smem:[#allocation2 + %s2098]]
          %v2100 = vstv %s2095
          %v2101 = vsub.f32 %v179, %v2100
          %v2102 = vstv %s2097
          %v2103 = vsub.f32 %v198, %v2102
          %v2104 = vsub.f32 %v199, %v2102
          %v2105 = vsub.f32 %v200, %v2102
          %v2106 = vsub.f32 %v201, %v2102
          %v2107 = vmul.f32 %v2101, %v2101
          %v2108 = vmul.f32 %v2103, %v2103
          %v2109 = vmul.f32 %v2104, %v2104
          %v2110 = vmul.f32 %v2105, %v2105
          %v2111 = vmul.f32 %v2106, %v2106
          %v2112 = vadd.f32 %v2107, %v2108
          %v2113 = vadd.f32 %v2107, %v2109
          %v2114 = vadd.f32 %v2107, %v2110
          %v2115 = vadd.f32 %v2107, %v2111
          %vm2116 = vcmp.lt.f32.partialorder %v2112, %v2085
          %vm2117 = vcmp.lt.f32.partialorder %v2113, %v2086
          %vm2118 = vcmp.lt.f32.partialorder %v2114, %v2087
          %vm2119 = vcmp.lt.f32.partialorder %v2115, %v2088
          %v2120 = vmin.f32 %v2085, %v2112
          %v2121 = vmin.f32 %v2086, %v2113
          %v2122 = vmin.f32 %v2087, %v2114
          %v2123 = vmin.f32 %v2088, %v2115
          %v2124 = vstv %s2099
          %v2125 = vsel %vm2116, %v2124, %v2090
          %v2126 = vsel %vm2117, %v2124, %v2091
          %v2127 = vsel %vm2118, %v2124, %v2092
          %v2128 = vsel %vm2119, %v2124, %v2093
          %s2129 = sadd.s32 %s202, 55
          %s2130 = sld [smem:[#allocation2 + %s2129]]
          %s2131 = sadd.s32 %s205, 55
          %s2132 = sld [smem:[#allocation2 + %s2131]]
          %s2133 = sadd.s32 %s208, 55
          %s2134 = sld [smem:[#allocation2 + %s2133]]
          %v2135 = vstv %s2130
          %v2136 = vsub.f32 %v179, %v2135
          %v2137 = vstv %s2132
          %v2138 = vsub.f32 %v198, %v2137
          %v2139 = vsub.f32 %v199, %v2137
          %v2140 = vsub.f32 %v200, %v2137
          %v2141 = vsub.f32 %v201, %v2137
          %v2142 = vmul.f32 %v2136, %v2136
          %v2143 = vmul.f32 %v2138, %v2138
          %v2144 = vmul.f32 %v2139, %v2139
          %v2145 = vmul.f32 %v2140, %v2140
          %v2146 = vmul.f32 %v2141, %v2141
          %v2147 = vadd.f32 %v2142, %v2143
          %v2148 = vadd.f32 %v2142, %v2144
          %v2149 = vadd.f32 %v2142, %v2145
          %v2150 = vadd.f32 %v2142, %v2146
          %vm2151 = vcmp.lt.f32.partialorder %v2147, %v2120
          %vm2152 = vcmp.lt.f32.partialorder %v2148, %v2121
          %vm2153 = vcmp.lt.f32.partialorder %v2149, %v2122
          %vm2154 = vcmp.lt.f32.partialorder %v2150, %v2123
          %v2155 = vmin.f32 %v2120, %v2147
          %v2156 = vmin.f32 %v2121, %v2148
          %v2157 = vmin.f32 %v2122, %v2149
          %v2158 = vmin.f32 %v2123, %v2150
          %v2159 = vstv %s2134
          %v2160 = vsel %vm2151, %v2159, %v2125
          %v2161 = vsel %vm2152, %v2159, %v2126
          %v2162 = vsel %vm2153, %v2159, %v2127
          %v2163 = vsel %vm2154, %v2159, %v2128
          %s2164 = sadd.s32 %s202, 56
          %s2165 = sld [smem:[#allocation2 + %s2164]]
          %s2166 = sadd.s32 %s205, 56
          %s2167 = sld [smem:[#allocation2 + %s2166]]
          %s2168 = sadd.s32 %s208, 56
          %s2169 = sld [smem:[#allocation2 + %s2168]]
          %v2170 = vstv %s2165
          %v2171 = vsub.f32 %v179, %v2170
          %v2172 = vstv %s2167
          %v2173 = vsub.f32 %v198, %v2172
          %v2174 = vsub.f32 %v199, %v2172
          %v2175 = vsub.f32 %v200, %v2172
          %v2176 = vsub.f32 %v201, %v2172
          %v2177 = vmul.f32 %v2171, %v2171
          %v2178 = vmul.f32 %v2173, %v2173
          %v2179 = vmul.f32 %v2174, %v2174
          %v2180 = vmul.f32 %v2175, %v2175
          %v2181 = vmul.f32 %v2176, %v2176
          %v2182 = vadd.f32 %v2177, %v2178
          %v2183 = vadd.f32 %v2177, %v2179
          %v2184 = vadd.f32 %v2177, %v2180
          %v2185 = vadd.f32 %v2177, %v2181
          %vm2186 = vcmp.lt.f32.partialorder %v2182, %v2155
          %vm2187 = vcmp.lt.f32.partialorder %v2183, %v2156
          %vm2188 = vcmp.lt.f32.partialorder %v2184, %v2157
          %vm2189 = vcmp.lt.f32.partialorder %v2185, %v2158
          %v2190 = vmin.f32 %v2155, %v2182
          %v2191 = vmin.f32 %v2156, %v2183
          %v2192 = vmin.f32 %v2157, %v2184
          %v2193 = vmin.f32 %v2158, %v2185
          %v2194 = vstv %s2169
          %v2195 = vsel %vm2186, %v2194, %v2160
          %v2196 = vsel %vm2187, %v2194, %v2161
          %v2197 = vsel %vm2188, %v2194, %v2162
          %v2198 = vsel %vm2189, %v2194, %v2163
          %s2199 = sadd.s32 %s202, 57
          %s2200 = sld [smem:[#allocation2 + %s2199]]
          %s2201 = sadd.s32 %s205, 57
          %s2202 = sld [smem:[#allocation2 + %s2201]]
          %s2203 = sadd.s32 %s208, 57
          %s2204 = sld [smem:[#allocation2 + %s2203]]
          %v2205 = vstv %s2200
          %v2206 = vsub.f32 %v179, %v2205
          %v2207 = vstv %s2202
          %v2208 = vsub.f32 %v198, %v2207
          %v2209 = vsub.f32 %v199, %v2207
          %v2210 = vsub.f32 %v200, %v2207
          %v2211 = vsub.f32 %v201, %v2207
          %v2212 = vmul.f32 %v2206, %v2206
          %v2213 = vmul.f32 %v2208, %v2208
          %v2214 = vmul.f32 %v2209, %v2209
          %v2215 = vmul.f32 %v2210, %v2210
          %v2216 = vmul.f32 %v2211, %v2211
          %v2217 = vadd.f32 %v2212, %v2213
          %v2218 = vadd.f32 %v2212, %v2214
          %v2219 = vadd.f32 %v2212, %v2215
          %v2220 = vadd.f32 %v2212, %v2216
          %vm2221 = vcmp.lt.f32.partialorder %v2217, %v2190
          %vm2222 = vcmp.lt.f32.partialorder %v2218, %v2191
          %vm2223 = vcmp.lt.f32.partialorder %v2219, %v2192
          %vm2224 = vcmp.lt.f32.partialorder %v2220, %v2193
          %v2225 = vmin.f32 %v2190, %v2217
          %v2226 = vmin.f32 %v2191, %v2218
          %v2227 = vmin.f32 %v2192, %v2219
          %v2228 = vmin.f32 %v2193, %v2220
          %v2229 = vstv %s2204
          %v2230 = vsel %vm2221, %v2229, %v2195
          %v2231 = vsel %vm2222, %v2229, %v2196
          %v2232 = vsel %vm2223, %v2229, %v2197
          %v2233 = vsel %vm2224, %v2229, %v2198
          %s2234 = sadd.s32 %s202, 58
          %s2235 = sld [smem:[#allocation2 + %s2234]]
          %s2236 = sadd.s32 %s205, 58
          %s2237 = sld [smem:[#allocation2 + %s2236]]
          %s2238 = sadd.s32 %s208, 58
          %s2239 = sld [smem:[#allocation2 + %s2238]]
          %v2240 = vstv %s2235
          %v2241 = vsub.f32 %v179, %v2240
          %v2242 = vstv %s2237
          %v2243 = vsub.f32 %v198, %v2242
          %v2244 = vsub.f32 %v199, %v2242
          %v2245 = vsub.f32 %v200, %v2242
          %v2246 = vsub.f32 %v201, %v2242
          %v2247 = vmul.f32 %v2241, %v2241
          %v2248 = vmul.f32 %v2243, %v2243
          %v2249 = vmul.f32 %v2244, %v2244
          %v2250 = vmul.f32 %v2245, %v2245
          %v2251 = vmul.f32 %v2246, %v2246
          %v2252 = vadd.f32 %v2247, %v2248
          %v2253 = vadd.f32 %v2247, %v2249
          %v2254 = vadd.f32 %v2247, %v2250
          %v2255 = vadd.f32 %v2247, %v2251
          %vm2256 = vcmp.lt.f32.partialorder %v2252, %v2225
          %vm2257 = vcmp.lt.f32.partialorder %v2253, %v2226
          %vm2258 = vcmp.lt.f32.partialorder %v2254, %v2227
          %vm2259 = vcmp.lt.f32.partialorder %v2255, %v2228
          %v2260 = vmin.f32 %v2225, %v2252
          %v2261 = vmin.f32 %v2226, %v2253
          %v2262 = vmin.f32 %v2227, %v2254
          %v2263 = vmin.f32 %v2228, %v2255
          %v2264 = vstv %s2239
          %v2265 = vsel %vm2256, %v2264, %v2230
          %v2266 = vsel %vm2257, %v2264, %v2231
          %v2267 = vsel %vm2258, %v2264, %v2232
          %v2268 = vsel %vm2259, %v2264, %v2233
          %s2269 = sadd.s32 %s202, 59
          %s2270 = sld [smem:[#allocation2 + %s2269]]
          %s2271 = sadd.s32 %s205, 59
          %s2272 = sld [smem:[#allocation2 + %s2271]]
          %s2273 = sadd.s32 %s208, 59
          %s2274 = sld [smem:[#allocation2 + %s2273]]
          %v2275 = vstv %s2270
          %v2276 = vsub.f32 %v179, %v2275
          %v2277 = vstv %s2272
          %v2278 = vsub.f32 %v198, %v2277
          %v2279 = vsub.f32 %v199, %v2277
          %v2280 = vsub.f32 %v200, %v2277
          %v2281 = vsub.f32 %v201, %v2277
          %v2282 = vmul.f32 %v2276, %v2276
          %v2283 = vmul.f32 %v2278, %v2278
          %v2284 = vmul.f32 %v2279, %v2279
          %v2285 = vmul.f32 %v2280, %v2280
          %v2286 = vmul.f32 %v2281, %v2281
          %v2287 = vadd.f32 %v2282, %v2283
          %v2288 = vadd.f32 %v2282, %v2284
          %v2289 = vadd.f32 %v2282, %v2285
          %v2290 = vadd.f32 %v2282, %v2286
          %vm2291 = vcmp.lt.f32.partialorder %v2287, %v2260
          %vm2292 = vcmp.lt.f32.partialorder %v2288, %v2261
          %vm2293 = vcmp.lt.f32.partialorder %v2289, %v2262
          %vm2294 = vcmp.lt.f32.partialorder %v2290, %v2263
          %v2295 = vmin.f32 %v2260, %v2287
          %v2296 = vmin.f32 %v2261, %v2288
          %v2297 = vmin.f32 %v2262, %v2289
          %v2298 = vmin.f32 %v2263, %v2290
          %v2299 = vstv %s2274
          %v2300 = vsel %vm2291, %v2299, %v2265
          %v2301 = vsel %vm2292, %v2299, %v2266
          %v2302 = vsel %vm2293, %v2299, %v2267
          %v2303 = vsel %vm2294, %v2299, %v2268
          %s2304 = sadd.s32 %s202, 60
          %s2305 = sld [smem:[#allocation2 + %s2304]]
          %s2306 = sadd.s32 %s205, 60
          %s2307 = sld [smem:[#allocation2 + %s2306]]
          %s2308 = sadd.s32 %s208, 60
          %s2309 = sld [smem:[#allocation2 + %s2308]]
          %v2310 = vstv %s2305
          %v2311 = vsub.f32 %v179, %v2310
          %v2312 = vstv %s2307
          %v2313 = vsub.f32 %v198, %v2312
          %v2314 = vsub.f32 %v199, %v2312
          %v2315 = vsub.f32 %v200, %v2312
          %v2316 = vsub.f32 %v201, %v2312
          %v2317 = vmul.f32 %v2311, %v2311
          %v2318 = vmul.f32 %v2313, %v2313
          %v2319 = vmul.f32 %v2314, %v2314
          %v2320 = vmul.f32 %v2315, %v2315
          %v2321 = vmul.f32 %v2316, %v2316
          %v2322 = vadd.f32 %v2317, %v2318
          %v2323 = vadd.f32 %v2317, %v2319
          %v2324 = vadd.f32 %v2317, %v2320
          %v2325 = vadd.f32 %v2317, %v2321
          %vm2326 = vcmp.lt.f32.partialorder %v2322, %v2295
          %vm2327 = vcmp.lt.f32.partialorder %v2323, %v2296
          %vm2328 = vcmp.lt.f32.partialorder %v2324, %v2297
          %vm2329 = vcmp.lt.f32.partialorder %v2325, %v2298
          %v2330 = vmin.f32 %v2295, %v2322
          %v2331 = vmin.f32 %v2296, %v2323
          %v2332 = vmin.f32 %v2297, %v2324
          %v2333 = vmin.f32 %v2298, %v2325
          %v2334 = vstv %s2309
          %v2335 = vsel %vm2326, %v2334, %v2300
          %v2336 = vsel %vm2327, %v2334, %v2301
          %v2337 = vsel %vm2328, %v2334, %v2302
          %v2338 = vsel %vm2329, %v2334, %v2303
          %s2339 = sadd.s32 %s202, 61
          %s2340 = sld [smem:[#allocation2 + %s2339]]
          %s2341 = sadd.s32 %s205, 61
          %s2342 = sld [smem:[#allocation2 + %s2341]]
          %s2343 = sadd.s32 %s208, 61
          %s2344 = sld [smem:[#allocation2 + %s2343]]
          %v2345 = vstv %s2340
          %v2346 = vsub.f32 %v179, %v2345
          %v2347 = vstv %s2342
          %v2348 = vsub.f32 %v198, %v2347
          %v2349 = vsub.f32 %v199, %v2347
          %v2350 = vsub.f32 %v200, %v2347
          %v2351 = vsub.f32 %v201, %v2347
          %v2352 = vmul.f32 %v2346, %v2346
          %v2353 = vmul.f32 %v2348, %v2348
          %v2354 = vmul.f32 %v2349, %v2349
          %v2355 = vmul.f32 %v2350, %v2350
          %v2356 = vmul.f32 %v2351, %v2351
          %v2357 = vadd.f32 %v2352, %v2353
          %v2358 = vadd.f32 %v2352, %v2354
          %v2359 = vadd.f32 %v2352, %v2355
          %v2360 = vadd.f32 %v2352, %v2356
          %vm2361 = vcmp.lt.f32.partialorder %v2357, %v2330
          %vm2362 = vcmp.lt.f32.partialorder %v2358, %v2331
          %vm2363 = vcmp.lt.f32.partialorder %v2359, %v2332
          %vm2364 = vcmp.lt.f32.partialorder %v2360, %v2333
          %v2365 = vmin.f32 %v2330, %v2357
          %v2366 = vmin.f32 %v2331, %v2358
          %v2367 = vmin.f32 %v2332, %v2359
          %v2368 = vmin.f32 %v2333, %v2360
          %v2369 = vstv %s2344
          %v2370 = vsel %vm2361, %v2369, %v2335
          %v2371 = vsel %vm2362, %v2369, %v2336
          %v2372 = vsel %vm2363, %v2369, %v2337
          %v2373 = vsel %vm2364, %v2369, %v2338
          %s2374 = sadd.s32 %s202, 62
          %s2375 = sld [smem:[#allocation2 + %s2374]]
          %s2376 = sadd.s32 %s205, 62
          %s2377 = sld [smem:[#allocation2 + %s2376]]
          %s2378 = sadd.s32 %s208, 62
          %s2379 = sld [smem:[#allocation2 + %s2378]]
          %v2380 = vstv %s2375
          %v2381 = vsub.f32 %v179, %v2380
          %v2382 = vstv %s2377
          %v2383 = vsub.f32 %v198, %v2382
          %v2384 = vsub.f32 %v199, %v2382
          %v2385 = vsub.f32 %v200, %v2382
          %v2386 = vsub.f32 %v201, %v2382
          %v2387 = vmul.f32 %v2381, %v2381
          %v2388 = vmul.f32 %v2383, %v2383
          %v2389 = vmul.f32 %v2384, %v2384
          %v2390 = vmul.f32 %v2385, %v2385
          %v2391 = vmul.f32 %v2386, %v2386
          %v2392 = vadd.f32 %v2387, %v2388
          %v2393 = vadd.f32 %v2387, %v2389
          %v2394 = vadd.f32 %v2387, %v2390
          %v2395 = vadd.f32 %v2387, %v2391
          %vm2396 = vcmp.lt.f32.partialorder %v2392, %v2365
          %vm2397 = vcmp.lt.f32.partialorder %v2393, %v2366
          %vm2398 = vcmp.lt.f32.partialorder %v2394, %v2367
          %vm2399 = vcmp.lt.f32.partialorder %v2395, %v2368
          %v2400 = vmin.f32 %v2365, %v2392
          %v2401 = vmin.f32 %v2366, %v2393
          %v2402 = vmin.f32 %v2367, %v2394
          %v2403 = vmin.f32 %v2368, %v2395
          %v2404 = vstv %s2379
          %v2405 = vsel %vm2396, %v2404, %v2370
          %v2406 = vsel %vm2397, %v2404, %v2371
          %v2407 = vsel %vm2398, %v2404, %v2372
          %v2408 = vsel %vm2399, %v2404, %v2373
          %s2409 = sadd.s32 %s202, 63
          %s2410 = sld [smem:[#allocation2 + %s2409]]
          %s2411 = sadd.s32 %s205, 63
          %s2412 = sld [smem:[#allocation2 + %s2411]]
          %s2413 = sadd.s32 %s208, 63
          %s2414 = sld [smem:[#allocation2 + %s2413]]
          %v2415 = vstv %s2410
          %v2416 = vsub.f32 %v179, %v2415
          %v2417 = vstv %s2412
          %v2418 = vsub.f32 %v198, %v2417
          %v2419 = vsub.f32 %v199, %v2417
          %v2420 = vsub.f32 %v200, %v2417
          %v2421 = vsub.f32 %v201, %v2417
          %v2422 = vmul.f32 %v2416, %v2416
          %v2423 = vmul.f32 %v2418, %v2418
          %v2424 = vmul.f32 %v2419, %v2419
          %v2425 = vmul.f32 %v2420, %v2420
          %v2426 = vmul.f32 %v2421, %v2421
          %v2427 = vadd.f32 %v2422, %v2423
          %v2428 = vadd.f32 %v2422, %v2424
          %v2429 = vadd.f32 %v2422, %v2425
          %v2430 = vadd.f32 %v2422, %v2426
          %vm2431 = vcmp.lt.f32.partialorder %v2427, %v2400
          %vm2432 = vcmp.lt.f32.partialorder %v2428, %v2401
          %vm2433 = vcmp.lt.f32.partialorder %v2429, %v2402
          %vm2434 = vcmp.lt.f32.partialorder %v2430, %v2403
          %v2435 = vmin.f32 %v2400, %v2427
          %v2436 = vmin.f32 %v2401, %v2428
          %v2437 = vmin.f32 %v2402, %v2429
          %v2438 = vmin.f32 %v2403, %v2430
          %v2439 = vstv %s2414
          %v2440 = vsel %vm2431, %v2439, %v2405
          %v2441 = vsel %vm2432, %v2439, %v2406
          %v2442 = vsel %vm2433, %v2439, %v2407
          %v2443 = vsel %vm2434, %v2439, %v2408
          %v2444 = vmul.f32 %v2440, 1.5258789e-05
          %v2445 = vmul.f32 %v2441, 1.5258789e-05
          %v2446 = vmul.f32 %v2442, 1.5258789e-05
          %v2447 = vmul.f32 %v2443, 1.5258789e-05
          %v2448 = vfloor.f32 %v2444
          %v2449 = vfloor.f32 %v2445
          %v2450 = vfloor.f32 %v2446
          %v2451 = vfloor.f32 %v2447
          %v2452 = vmul.f32 %v2448, 65536.0
          %v2453 = vmul.f32 %v2449, 65536.0
          %v2454 = vmul.f32 %v2450, 65536.0
          %v2455 = vmul.f32 %v2451, 65536.0
          %v2456 = vsub.f32 %v2440, %v2452
          %v2457 = vsub.f32 %v2441, %v2453
          %v2458 = vsub.f32 %v2442, %v2454
          %v2459 = vsub.f32 %v2443, %v2455
          %v2460 = vmul.f32 %v2456, 0.00390625
          %v2461 = vmul.f32 %v2457, 0.00390625
          %v2462 = vmul.f32 %v2458, 0.00390625
          %v2463 = vmul.f32 %v2459, 0.00390625
          %v2464 = vfloor.f32 %v2460
          %v2465 = vfloor.f32 %v2461
          %v2466 = vfloor.f32 %v2462
          %v2467 = vfloor.f32 %v2463
          %v2468 = vmul.f32 %v2464, 256.0
          %v2469 = vmul.f32 %v2465, 256.0
          %v2470 = vmul.f32 %v2466, 256.0
          %v2471 = vmul.f32 %v2467, 256.0
          %v2472 = vsub.f32 %v2456, %v2468
          %v2473 = vsub.f32 %v2457, %v2469
          %v2474 = vsub.f32 %v2458, %v2470
          %v2475 = vsub.f32 %v2459, %v2471
          %vm2476 = vcmp.lt.f32.partialorder %v2435, 36.0
          %vm2477 = vcmp.lt.f32.partialorder %v2436, 36.0
          %vm2478 = vcmp.lt.f32.partialorder %v2437, 36.0
          %vm2479 = vcmp.lt.f32.partialorder %v2438, 36.0
          %s2480 = scalar_lea.vmem %s154, %s186 [#allocation6]
          %v2481 = vld [vmem:[%s2480] sm:$0xff]
          %v2482 = vld [vmem:[%s2480 + $0x8] sm:$0xff]
          %v2483 = vld [vmem:[%s2480 + $0x10] sm:$0xff]
          %v2484 = vld [vmem:[%s2480 + $0x18] sm:$0xff]
          %v2485 = vsel %vm2476, %v2472, %v2481
          %v2486 = vsel %vm2477, %v2473, %v2482
          %v2487 = vsel %vm2478, %v2474, %v2483
          %v2488 = vsel %vm2479, %v2475, %v2484
          %s2489 = scalar_lea.vmem %s175, %s186 [#allocation7]
          %2490 = vst [vmem:[%s2489] sm:$0xff] %v2485
          %2491 = vst [vmem:[%s2489 + $0x8] sm:$0xff] %v2486
          %2492 = vst [vmem:[%s2489 + $0x10] sm:$0xff] %v2487
          %2493 = vst [vmem:[%s2489 + $0x18] sm:$0xff] %v2488
          %s2494 = sadd.s32 %s186, 128
          %s2495 = scalar_lea.vmem %s154, %s2494 [#allocation6]
          %v2496 = vld [vmem:[%s2495] sm:$0xff]
          %v2497 = vld [vmem:[%s2495 + $0x8] sm:$0xff]
          %v2498 = vld [vmem:[%s2495 + $0x10] sm:$0xff]
          %v2499 = vld [vmem:[%s2495 + $0x18] sm:$0xff]
          %v2500 = vsel %vm2476, %v2464, %v2496
          %v2501 = vsel %vm2477, %v2465, %v2497
          %v2502 = vsel %vm2478, %v2466, %v2498
          %v2503 = vsel %vm2479, %v2467, %v2499
          %s2504 = scalar_lea.vmem %s175, %s2494 [#allocation7]
          %2505 = vst [vmem:[%s2504] sm:$0xff] %v2500
          %2506 = vst [vmem:[%s2504 + $0x8] sm:$0xff] %v2501
          %2507 = vst [vmem:[%s2504 + $0x10] sm:$0xff] %v2502
          %2508 = vst [vmem:[%s2504 + $0x18] sm:$0xff] %v2503
          %s2509 = sadd.s32 %s186, 256
          %s2510 = scalar_lea.vmem %s154, %s2509 [#allocation6]
          %v2511 = vld [vmem:[%s2510] sm:$0xff]
          %v2512 = vld [vmem:[%s2510 + $0x8] sm:$0xff]
          %v2513 = vld [vmem:[%s2510 + $0x10] sm:$0xff]
          %v2514 = vld [vmem:[%s2510 + $0x18] sm:$0xff]
          %v2515 = vsel %vm2476, %v2448, %v2511
          %v2516 = vsel %vm2477, %v2449, %v2512
          %v2517 = vsel %vm2478, %v2450, %v2513
          %v2518 = vsel %vm2479, %v2451, %v2514
          %s2519 = scalar_lea.vmem %s175, %s2509 [#allocation7]
          %2520 = vst [vmem:[%s2519] sm:$0xff] %v2515
          %2521 = vst [vmem:[%s2519 + $0x8] sm:$0xff] %v2516
          %2522 = vst [vmem:[%s2519 + $0x10] sm:$0xff] %v2517
          %2523 = vst [vmem:[%s2519 + $0x18] sm:$0xff] %v2518
        $region41: #{tpu_custom_call.1} parent=27 // loop_footer
          %s185 = sadd.s32 1, %s181
        $region42: #{tpu_custom_call.1} parent=27 // loop_footer_branch
          %180 = sbr.rel target = $region38
        $region43: #{tpu_custom_call.1} parent=27 // loop_exit
          _
        %s2524 = sand.u32 %s75, 1
        %s2525 = scalar_lea.sflag [#allocation4], %s2524
        %s2526 = sand.u32 %s75, 1
        %s2527 = smul.addr %s2526, 384
        %s2528 = scalar_lea.vmem [#allocation7], %s2527
        // Predicated region
        $region44: #{tpu_custom_call.1} parent=27 // pred_check
          %p2529 = pneg %p85
        $region45: #{tpu_custom_call.1} parent=27 // pred_check_branch
          %2531 = sbr.rel (%p2529) target = $region47
        $region46: #{tpu_custom_call.1} parent=27 // pred_region
          %s2533 = ssub.s32 6144, 6144
          %2534 = vsyncadd %s2525, %s2533
          %s2535 = smul.addr %s20, 48
          %s2536 = smul.addr %s2535, 128
          %s2537 = scalar_lea.hbm %s2, %s2536
          %s2538 = sshll.u32 %s2528, 4
          %s2539 = int_to_ptr.vmem [resolvable:$true] %s2538
          %2544 = dma.vmem_to_hbm [thread:$0]  %s2539, 6144, %s2537, %s2525, 128, 128, 8
        $region47: #{tpu_custom_call.1} parent=27 // pred_fallthru
          _
      $region28: #{tpu_custom_call.1} parent=5 // pred_fallthru
        _
      %p2545 = scmp.le.s32.totalorder 2, %s15
      // Predicated region
      $region48: #{tpu_custom_call.1} parent=5 // pred_check
        %p2546 = pneg %p2545
      $region49: #{tpu_custom_call.1} parent=5 // pred_check_branch
        %2548 = sbr.rel (%p2546) target = $region51
      $region50: #{tpu_custom_call.1} parent=5 // pred_region
        %s2549 = ssub.s32 %s15, 2
        // Predicated region
        $region52: #{tpu_custom_call.1} parent=50 // pred_check
          %p2550 = pneg %p91
        $region53: #{tpu_custom_call.1} parent=50 // pred_check_branch
          %2552 = sbr.rel (%p2550) target = $region55
        $region54: #{tpu_custom_call.1} parent=50 // pred_region
          %s2553 = sand.u32 %s76, 1
          %s2554 = scalar_lea.sflag [#allocation4], %s2553
          %s2555 = sand.u32 %s76, 1
          %s2556 = smul.addr %s2555, 384
          %s2557 = scalar_lea.vmem [#allocation7], %s2556
          %2558 = dma.done %s2554, 6144
        $region55: #{tpu_custom_call.1} parent=50 // pred_fallthru
          _
      $region51: #{tpu_custom_call.1} parent=5 // pred_fallthru
        _
    $region6: #{tpu_custom_call.1} parent=1 // loop_footer
      %s19 = sadd.s32 1, %s15
    $region7: #{tpu_custom_call.1} parent=1 // loop_footer_branch
      %14 = sbr.rel target = $region3
    $region8: #{tpu_custom_call.1} parent=1 // loop_exit
      _
    %2559 = vsyncpa [#allocation3], 1
    %s2560 = scalar_lea.sflag [#allocation3], 1
    %2561 = vsyncpa %s2560, 1
    %2562 = vsyncpa [#allocation4], 1
    %s2563 = scalar_lea.sflag [#allocation4], 1
    %2564 = vsyncpa %s2563, 1
    %2565 = vsyncpa [#allocation5], 1
    %s2566 = scalar_lea.sflag [#allocation5], 1
    %2567 = vsyncpa %s2566, 1

</llo_original>
